<compile_context>
chip_gen: v7x
topology: tpu7x:2x2x1
jax: 0.10.0
libtpu: 0.0.40
codegen_flags: <defaults>
</compile_context>

<pallas_src>
import math

import jax
import jax.numpy as jnp
from jax import lax
from jax.experimental import pallas as pl
from jax.experimental.pallas import tpu as pltpu

# ---- small DeBERTa-V2-like config ------------------------------------------
VOCAB = 100
TYPE_VOCAB = 2
MAX_POS = 16
HIDDEN = 32
NUM_HEADS = 4
HEAD_DIM = HIDDEN // NUM_HEADS
FFN = 64
NUM_LAYERS = 2
NUM_LABELS = 3            # len(ID2PREFERENCE) -> e.g. {better, worse, tie}
CLS_PAD = 128             # lane-dense padded classifier width (sliced outside)
LN_EPS = 1e-7             # DeBERTa-V2 default layer_norm_eps
ATTN_SCALE = 1.0 / math.sqrt(HEAD_DIM)


# ---------------------------- in-kernel math helpers --------------------------
def _layernorm(x, g, b):
    """f32 LayerNorm over the last (lane) axis."""
    mu = jnp.mean(x, axis=-1, keepdims=True)
    var = jnp.mean(jnp.square(x - mu), axis=-1, keepdims=True)
    return (x - mu) * lax.rsqrt(var + LN_EPS) * g + b


def _gelu(x):
    # TODO(synk): HF DeBERTa-V2 uses exact (erf) GELU; tanh approximation here.
    return 0.5 * x * (1.0 + jnp.tanh(0.7978845608028654 * (x + 0.044715 * x * x * x)))


# ---------------------------- fused encoder kernel ----------------------------
def _encoder_kernel(emb_ref, bias_ref, emb_ln_g_ref, emb_ln_b_ref,
                    wqkv_ref, bqkv_ref, wo_ref, bo_ref,
                    ln1_g_ref, ln1_b_ref,
                    w1_ref, b1_ref, w2_ref, b2_ref,
                    ln2_g_ref, ln2_b_ref,
                    cls_w_ref, cls_b_ref,
                    o_ref):
    # One grid program == one sequence (grid is over the batch).
    S = emb_ref.shape[1]
    H, NH, HD = HIDDEN, NUM_HEADS, HEAD_DIM

    # Embedding LayerNorm (no residual, f32 VPU math).
    x = _layernorm(emb_ref[0].astype(jnp.float32),
                   emb_ln_g_ref[...], emb_ln_b_ref[...])                 # (S, H)

    # Additive key-padding bias, broadcast ONCE (hoisted out of layer loop).
    bias_full = jnp.broadcast_to(bias_ref[...], (NH, S, S))              # (NH, S, S)

    # NUM_LAYERS == 2 -> statically unrolled layer loop over stacked weights.
    for l in range(NUM_LAYERS):
        xb = x.astype(jnp.bfloat16)
        xh = jnp.broadcast_to(xb[None], (NH, S, H))                      # heads -> batch dim

        # Fused head-major QKV projection: ONE batched MXU dot (K = H),
        # output is already head-major so no per-head lane slicing of q/k/v.
        qkv = jnp.einsum('hsk,hkd->hsd', xh, wqkv_ref[l],
                         preferred_element_type=jnp.float32) + bqkv_ref[l]   # (NH, S, 3*HD)
        q = qkv[:, :, 0 * HD:1 * HD] * ATTN_SCALE                        # scale folded into q
        k = qkv[:, :, 1 * HD:2 * HD]
        v = qkv[:, :, 2 * HD:3 * HD]

        # Attention with heads in the batch dim of the contraction.
        s = jnp.einsum('hqd,hkd->hqk', q.astype(jnp.bfloat16), k.astype(jnp.bfloat16),
                       preferred_element_type=jnp.float32) + bias_full   # (NH, S, S)
        m = jnp.max(s, axis=-1, keepdims=True)
        p = jnp.exp(s - m)
        p = p * pl.reciprocal(jnp.sum(p, axis=-1, keepdims=True), approx=True)
        ctx = jnp.einsum('hqk,hkd->hqd', p.astype(jnp.bfloat16), v.astype(jnp.bfloat16),
                         preferred_element_type=jnp.float32)             # (NH, S, HD)

        # Merge heads on the lane axis -> ONE (S,H)x(H,H) output projection.
        ctx_cat = jnp.concatenate([ctx[h] for h in range(NH)], axis=-1)  # (S, H)
        attn = jnp.dot(ctx_cat.astype(jnp.bfloat16), wo_ref[l],
                       preferred_element_type=jnp.float32) + bo_ref[l]
        x = _layernorm(attn + x, ln1_g_ref[l], ln1_b_ref[l])

        # Feed-forward (bf16 matmuls, f32 GELU).
        hmid = jnp.dot(x.astype(jnp.bfloat16), w1_ref[l],
                       preferred_element_type=jnp.float32) + b1_ref[l]
        hmid = _gelu(hmid)
        ff = jnp.dot(hmid.astype(jnp.bfloat16), w2_ref[l],
                     preferred_element_type=jnp.float32) + b2_ref[l]
        x = _layernorm(ff + x, ln2_g_ref[l], ln2_b_ref[l])

    # TODO(synk): at real dims, compute the last layer's Q-side / FFN for the
    # CLS row only; negligible at S=8 so the full sequence is kept here.
    cls = x[0:1, :]                                                      # (1, H) CLS hidden state
    scores = jnp.dot(cls.astype(jnp.bfloat16), cls_w_ref[...],
                     preferred_element_type=jnp.float32) + cls_b_ref[...]    # (1, CLS_PAD)
    o_ref[...] = scores[None].astype(o_ref.dtype)                        # (1, 1, CLS_PAD)


# ---------------------------- parameters --------------------------------------
def init_params(key):
    def normal(k, shape, scale=0.02):
        return scale * jax.random.normal(k, shape, jnp.float32)

    keys = iter(jax.random.split(key, 64))
    wq = normal(next(keys), (NUM_LAYERS, HIDDEN, HIDDEN))
    wk = normal(next(keys), (NUM_LAYERS, HIDDEN, HIDDEN))
    wv = normal(next(keys), (NUM_LAYERS, HIDDEN, HIDDEN))
    return {
        'word_emb': normal(next(keys), (VOCAB, HIDDEN)),
        'pos_emb': normal(next(keys), (MAX_POS, HIDDEN)),
        'type_emb': normal(next(keys), (TYPE_VOCAB, HIDDEN)),
        'emb_ln_g': jnp.ones((1, HIDDEN), jnp.float32),
        'emb_ln_b': jnp.zeros((1, HIDDEN), jnp.float32),
        # stacked per-layer weights (leading L axis); QKV fused along lanes.
        'wqkv': jnp.concatenate([wq, wk, wv], axis=-1),            # (L, H, 3H)
        'bqkv': jnp.zeros((NUM_LAYERS, 1, 3 * HIDDEN), jnp.float32),
        'wo': normal(next(keys), (NUM_LAYERS, HIDDEN, HIDDEN)),
        'bo': jnp.zeros((NUM_LAYERS, 1, HIDDEN), jnp.float32),
        'ln1_g': jnp.ones((NUM_LAYERS, 1, HIDDEN), jnp.float32),
        'ln1_b': jnp.zeros((NUM_LAYERS, 1, HIDDEN), jnp.float32),
        'w1': normal(next(keys), (NUM_LAYERS, HIDDEN, FFN)),
        'b1': jnp.zeros((NUM_LAYERS, 1, FFN), jnp.float32),
        'w2': normal(next(keys), (NUM_LAYERS, FFN, HIDDEN)),
        'b2': jnp.zeros((NUM_LAYERS, 1, HIDDEN), jnp.float32),
        'ln2_g': jnp.ones((NUM_LAYERS, 1, HIDDEN), jnp.float32),
        'ln2_b': jnp.zeros((NUM_LAYERS, 1, HIDDEN), jnp.float32),
        'cls_w': normal(next(keys), (HIDDEN, NUM_LABELS)),
        'cls_b': jnp.zeros((NUM_LABELS,), jnp.float32),
    }


def _head_major_qkv(wqkv, bqkv):
    """(L,H,3H)/(L,1,3H) [Wq|Wk|Wv] -> head-major (L,NH,H,3*HD)/(L,NH,1,3*HD)."""
    L = wqkv.shape[0]
    w = wqkv.reshape(L, HIDDEN, 3, NUM_HEADS, HEAD_DIM)
    w = w.transpose(0, 3, 1, 2, 4).reshape(L, NUM_HEADS, HIDDEN, 3 * HEAD_DIM)
    b = bqkv.reshape(L, 1, 3, NUM_HEADS, HEAD_DIM)
    b = b.transpose(0, 3, 1, 2, 4).reshape(L, NUM_HEADS, 1, 3 * HEAD_DIM)
    return w, b


# ---------------------------- forward pass -------------------------------------
@jax.jit
def mrc_for_cpc_forward(params, input_ids, attention_mask, token_type_ids):
    B, S = input_ids.shape
    assert S <= MAX_POS, "sequence length exceeds position-embedding table"

    # Embedding gathers are plain-JAX glue; everything downstream runs in the
    # single fused Pallas kernel (gridded over the batch).
    emb = (params['word_emb'][input_ids]
           + params['pos_emb'][jnp.arange(S)][None, :, :]
           + params['type_emb'][token_type_ids]).astype(jnp.float32)          # (B, S, H)

    # Additive key-padding bias, (B, 1, S).
    bias = ((1.0 - attention_mask.astype(jnp.float32)) * -1e9)[:, None, :]

    # Lane-dense classifier: pad N = NUM_LABELS -> 128 lanes, slice afterwards.
    cls_w_pad = jnp.zeros((HIDDEN, CLS_PAD), jnp.float32).at[:, :NUM_LABELS].set(params['cls_w'])
    cls_b_pad = jnp.zeros((1, CLS_PAD), jnp.float32).at[0, :NUM_LABELS].set(params['cls_b'])

    # Head-major fused QKV weights so the kernel never lane-slices activations.
    wqkv_hm, bqkv_hm = _head_major_qkv(params['wqkv'], params['bqkv'])

    bf = jnp.bfloat16
    operands = (
        emb, bias,
        params['emb_ln_g'], params['emb_ln_b'],
        wqkv_hm.astype(bf), bqkv_hm,
        params['wo'].astype(bf), params['bo'],          # wo now bf16 from the wrapper
        params['ln1_g'], params['ln1_b'],
        params['w1'].astype(bf), params['b1'],
        params['w2'].astype(bf), params['b2'],
        params['ln2_g'], params['ln2_b'],
        cls_w_pad.astype(bf), cls_b_pad,
    )

    def rep_spec(a):
        # Full-array block, same (0,..,0) block index for every grid step
        # (weights stay VMEM-resident, not re-fetched per batch element).
        zeros = (0,) * a.ndim
        return pl.BlockSpec(a.shape, lambda b, _z=zeros: _z)

    in_specs = [pl.BlockSpec((1, S, HIDDEN), lambda b: (b, 0, 0)),   # emb: one sequence/step
                pl.BlockSpec((1, 1, S), lambda b: (b, 0, 0))]        # mask bias
    in_specs += [rep_spec(a) for a in operands[2:]]

    scores_pad = pl.pallas_call(
        _encoder_kernel,
        grid=(B,),
        in_specs=in_specs,
        out_specs=pl.BlockSpec((1, 1, CLS_PAD), lambda b: (b, 0, 0)),
        out_shape=jax.ShapeDtypeStruct((B, 1, CLS_PAD), jnp.float32),
        compiler_params=pltpu.CompilerParams(dimension_semantics=("parallel",)),
    )(*operands)

    return scores_pad[:, 0, :NUM_LABELS]                 # (B, NUM_LABELS)


# ---------------------------- pure-JAX reference (f32) -------------------------
def mrc_forward_reference(params, input_ids, attention_mask, token_type_ids):
    B, S = input_ids.shape
    emb = (params['word_emb'][input_ids]
           + params['pos_emb'][jnp.arange(S)][None, :, :]
           + params['type_emb'][token_type_ids])

    def ln(x, g, b):
        mu = jnp.mean(x, -1, keepdims=True)
        var = jnp.mean(jnp.square(x - mu), -1, keepdims=True)
        return (x - mu) * lax.rsqrt(var + LN_EPS) * g + b

    x = ln(emb, params['emb_ln_g'], params['emb_ln_b'])
    bias = ((1.0 - attention_mask.astype(jnp.float32)) * -1e9)[:, None, None, :]
    for l in range(NUM_LAYERS):
        qkv = x @ params['wqkv'][l] + params['bqkv'][l]
        q, k, v = jnp.split(qkv, 3, axis=-1)
        q = (q * ATTN_SCALE).reshape(B, S, NUM_HEADS, HEAD_DIM).transpose(0, 2, 1, 3)
        k = k.reshape(B, S, NUM_HEADS, HEAD_DIM).transpose(0, 2, 1, 3)
        v = v.reshape(B, S, NUM_HEADS, HEAD_DIM).transpose(0, 2, 1, 3)
        s = jnp.einsum('bhqd,bhkd->bhqk', q, k) + bias
        p = jax.nn.softmax(s, axis=-1)
        ctx = jnp.einsum('bhqk,bhkd->bhqd', p, v).transpose(0, 2, 1, 3).reshape(B, S, HIDDEN)
        x = ln(ctx @ params['wo'][l] + params['bo'][l] + x, params['ln1_g'][l], params['ln1_b'][l])
        h = x @ params['w1'][l] + params['b1'][l]
        h = 0.5 * h * (1.0 + jnp.tanh(0.7978845608028654 * (h + 0.044715 * h ** 3)))
        x = ln(h @ params['w2'][l] + params['b2'][l] + x, params['ln2_g'][l], params['ln2_b'][l])
    cls = x[:, 0, :]
    return cls @ params['cls_w'] + params['cls_b']


# ---------------------------- main ----------------------------------------------
if __name__ == "__main__":
    key = jax.random.PRNGKey(0)
    pkey, ikey = jax.random.split(key, 2)
    params = init_params(pkey)

    B, S = 2, 8
    input_ids = jax.random.randint(ikey, (B, S), 0, VOCAB, dtype=jnp.int32)
    attention_mask = jnp.ones((B, S), jnp.int32).at[1, 6:].set(0)   # second seq padded
    token_type_ids = jnp.concatenate(
        [jnp.zeros((B, S // 2), jnp.int32), jnp.ones((B, S // 2), jnp.int32)], axis=1)

    scores = mrc_for_cpc_forward(params, input_ids, attention_mask, token_type_ids)
    scores = jax.block_until_ready(scores)
    assert scores.shape == (B, NUM_LABELS) and scores.dtype == jnp.float32
    assert bool(jnp.all(jnp.isfinite(scores)))

    # Sanity check against f32 plain-JAX reference (bf16 MXU operands => loose tol).
    ref = mrc_forward_reference(params, input_ids, attention_mask, token_type_ids)
    assert float(jnp.max(jnp.abs(scores - ref))) < 2e-2

    print("KERNEL_OK")
</pallas_src>

<mosaic_0001>
module attributes {stable_mosaic.version = 11 : i64} {
  func.func @_encoder_kernel(%arg0: i32, %arg1: memref<1x8x32xf32, #tpu.memory_space<vmem>>, %arg2: memref<1x1x8xf32, #tpu.memory_space<vmem>>, %arg3: memref<1x32xf32, #tpu.memory_space<vmem>>, %arg4: memref<1x32xf32, #tpu.memory_space<vmem>>, %arg5: memref<2x4x32x24xbf16, #tpu.memory_space<vmem>>, %arg6: memref<2x4x1x24xf32, #tpu.memory_space<vmem>>, %arg7: memref<2x32x32xbf16, #tpu.memory_space<vmem>>, %arg8: memref<2x1x32xf32, #tpu.memory_space<vmem>>, %arg9: memref<2x1x32xf32, #tpu.memory_space<vmem>>, %arg10: memref<2x1x32xf32, #tpu.memory_space<vmem>>, %arg11: memref<2x32x64xbf16, #tpu.memory_space<vmem>>, %arg12: memref<2x1x64xf32, #tpu.memory_space<vmem>>, %arg13: memref<2x64x32xbf16, #tpu.memory_space<vmem>>, %arg14: memref<2x1x32xf32, #tpu.memory_space<vmem>>, %arg15: memref<2x1x32xf32, #tpu.memory_space<vmem>>, %arg16: memref<2x1x32xf32, #tpu.memory_space<vmem>>, %arg17: memref<32x128xbf16, #tpu.memory_space<vmem>>, %arg18: memref<1x128xf32, #tpu.memory_space<vmem>>, %arg19: memref<1x1x128xf32, #tpu.memory_space<vmem>>) attributes {dimension_semantics = [#tpu.dimension_semantics<parallel>], iteration_bounds = array<i64: 2>, scalar_prefetch = 0 : i64, scratch_operands = 0 : i64, tpu.core_type = #tpu.core_type<tc>, window_params = [{transform_indices = @transform_0, window_bounds = array<i64: 1, 8, 32>}, {transform_indices = @transform_1, window_bounds = array<i64: 1, 1, 8>}, {pipeline_mode = #tpu.pipeline_mode<synchronous>, transform_indices = @transform_2, window_bounds = array<i64: 1, 32>}, {pipeline_mode = #tpu.pipeline_mode<synchronous>, transform_indices = @transform_3, window_bounds = array<i64: 1, 32>}, {pipeline_mode = #tpu.pipeline_mode<synchronous>, transform_indices = @transform_4, window_bounds = array<i64: 2, 4, 32, 24>}, {pipeline_mode = #tpu.pipeline_mode<synchronous>, transform_indices = @transform_5, window_bounds = array<i64: 2, 4, 1, 24>}, {pipeline_mode = #tpu.pipeline_mode<synchronous>, transform_indices = @transform_6, window_bounds = array<i64: 2, 32, 32>}, {pipeline_mode = #tpu.pipeline_mode<synchronous>, transform_indices = @transform_7, window_bounds = array<i64: 2, 1, 32>}, {pipeline_mode = #tpu.pipeline_mode<synchronous>, transform_indices = @transform_8, window_bounds = array<i64: 2, 1, 32>}, {pipeline_mode = #tpu.pipeline_mode<synchronous>, transform_indices = @transform_9, window_bounds = array<i64: 2, 1, 32>}, {pipeline_mode = #tpu.pipeline_mode<synchronous>, transform_indices = @transform_10, window_bounds = array<i64: 2, 32, 64>}, {pipeline_mode = #tpu.pipeline_mode<synchronous>, transform_indices = @transform_11, window_bounds = array<i64: 2, 1, 64>}, {pipeline_mode = #tpu.pipeline_mode<synchronous>, transform_indices = @transform_12, window_bounds = array<i64: 2, 64, 32>}, {pipeline_mode = #tpu.pipeline_mode<synchronous>, transform_indices = @transform_13, window_bounds = array<i64: 2, 1, 32>}, {pipeline_mode = #tpu.pipeline_mode<synchronous>, transform_indices = @transform_14, window_bounds = array<i64: 2, 1, 32>}, {pipeline_mode = #tpu.pipeline_mode<synchronous>, transform_indices = @transform_15, window_bounds = array<i64: 2, 1, 32>}, {pipeline_mode = #tpu.pipeline_mode<synchronous>, transform_indices = @transform_16, window_bounds = array<i64: 32, 128>}, {pipeline_mode = #tpu.pipeline_mode<synchronous>, transform_indices = @transform_17, window_bounds = array<i64: 1, 128>}, {transform_indices = @transform_18, window_bounds = array<i64: 1, 1, 128>}]} {
    %c0 = arith.constant 0 : index
    %c0_0 = arith.constant 0 : index
    %c0_1 = arith.constant 0 : index
    %0 = vector.load %arg1[%c0, %c0_0, %c0_1] : memref<1x8x32xf32, #tpu.memory_space<vmem>>, vector<1x8x32xf32>
    %1 = vector.shape_cast %0 : vector<1x8x32xf32> to vector<8x32xf32>
    %c0_2 = arith.constant 0 : index
    %c0_3 = arith.constant 0 : index
    %2 = vector.load %arg3[%c0_2, %c0_3] : memref<1x32xf32, #tpu.memory_space<vmem>>, vector<1x32xf32>
    %c0_4 = arith.constant 0 : index
    %c0_5 = arith.constant 0 : index
    %3 = vector.load %arg4[%c0_4, %c0_5] : memref<1x32xf32, #tpu.memory_space<vmem>>, vector<1x32xf32>
    %cst = arith.constant dense<0.000000e+00> : vector<8xf32>
    %4 = vector.multi_reduction <add>, %1, %cst [1] : vector<8x32xf32> to vector<8xf32>
    %5 = vector.shape_cast %4 : vector<8xf32> to vector<8x1xf32>
    %cst_6 = arith.constant 3.200000e+01 : f32
    %6 = vector.broadcast %cst_6 : f32 to vector<8x1xf32>
    %7 = arith.divf %5, %6 : vector<8x1xf32>
    %8 = vector.broadcast %7 : vector<8x1xf32> to vector<8x32xf32>
    %9 = arith.subf %1, %8 : vector<8x32xf32>
    %10 = arith.mulf %9, %9 : vector<8x32xf32>
    %cst_7 = arith.constant dense<0.000000e+00> : vector<8xf32>
    %11 = vector.multi_reduction <add>, %10, %cst_7 [1] : vector<8x32xf32> to vector<8xf32>
    %12 = vector.shape_cast %11 : vector<8xf32> to vector<8x1xf32>
    %cst_8 = arith.constant 3.200000e+01 : f32
    %13 = vector.broadcast %cst_8 : f32 to vector<8x1xf32>
    %14 = arith.divf %12, %13 : vector<8x1xf32>
    %15 = vector.broadcast %7 : vector<8x1xf32> to vector<8x32xf32>
    %16 = arith.subf %1, %15 : vector<8x32xf32>
    %cst_9 = arith.constant 1.000000e-07 : f32
    %17 = vector.broadcast %cst_9 : f32 to vector<8x1xf32>
    %18 = arith.addf %14, %17 : vector<8x1xf32>
    %19 = math.rsqrt %18 : vector<8x1xf32>
    %20 = vector.broadcast %19 : vector<8x1xf32> to vector<8x32xf32>
    %21 = arith.mulf %16, %20 : vector<8x32xf32>
    %22 = vector.broadcast %2 : vector<1x32xf32> to vector<8x32xf32>
    %23 = arith.mulf %21, %22 : vector<8x32xf32>
    %24 = vector.broadcast %3 : vector<1x32xf32> to vector<8x32xf32>
    %25 = arith.addf %23, %24 : vector<8x32xf32>
    %c0_10 = arith.constant 0 : index
    %c0_11 = arith.constant 0 : index
    %c0_12 = arith.constant 0 : index
    %26 = vector.load %arg2[%c0_10, %c0_11, %c0_12] : memref<1x1x8xf32, #tpu.memory_space<vmem>>, vector<1x1x8xf32>
    %27 = vector.shape_cast %26 : vector<1x1x8xf32> to vector<1x1x8xf32>
    %28 = vector.broadcast %27 : vector<1x1x8xf32> to vector<4x8x8xf32>
    %29 = arith.truncf %25 : vector<8x32xf32> to vector<8x32xbf16>
    %30 = vector.shape_cast %29 : vector<8x32xbf16> to vector<1x8x32xbf16>
    %31 = vector.shape_cast %30 : vector<1x8x32xbf16> to vector<1x8x32xbf16>
    %32 = vector.broadcast %31 : vector<1x8x32xbf16> to vector<4x8x32xbf16>
    %c0_13 = arith.constant 0 : index
    %c0_14 = arith.constant 0 : index
    %c0_15 = arith.constant 0 : index
    %c0_16 = arith.constant 0 : index
    %33 = vector.load %arg5[%c0_13, %c0_14, %c0_15, %c0_16] : memref<2x4x32x24xbf16, #tpu.memory_space<vmem>>, vector<1x4x32x24xbf16>
    %34 = vector.shape_cast %33 : vector<1x4x32x24xbf16> to vector<4x32x24xbf16>
    "tpu.trace_start"() <{level = 10 : i32, message = "hsk,hkd->hsd"}> : () -> ()
    %cst_17 = arith.constant dense<0.000000e+00> : vector<4x8x24xf32>
    %35 = tpu.matmul %32, %34, %cst_17 {dimension_numbers = #tpu.dot_dimension_numbers<[2], [1], [1], [2], [0, 0, 0, 1, 1, 2], [0], [0]>} : vector<4x8x32xbf16>, vector<4x32x24xbf16>, vector<4x8x24xf32> -> vector<4x8x24xf32>
    "tpu.trace_stop"() : () -> ()
    %c0_18 = arith.constant 0 : index
    %c0_19 = arith.constant 0 : index
    %c0_20 = arith.constant 0 : index
    %c0_21 = arith.constant 0 : index
    %36 = vector.load %arg6[%c0_18, %c0_19, %c0_20, %c0_21] : memref<2x4x1x24xf32, #tpu.memory_space<vmem>>, vector<1x4x1x24xf32>
    %37 = vector.shape_cast %36 : vector<1x4x1x24xf32> to vector<4x1x24xf32>
    %38 = vector.broadcast %37 : vector<4x1x24xf32> to vector<4x8x24xf32>
    %39 = arith.addf %35, %38 : vector<4x8x24xf32>
    %40 = vector.extract_strided_slice %39 {offsets = [0, 0, 0], sizes = [4, 8, 8], strides = [1, 1, 1]} : vector<4x8x24xf32> to vector<4x8x8xf32>
    %cst_22 = arith.constant 0.353553385 : f32
    %41 = vector.broadcast %cst_22 : f32 to vector<4x8x8xf32>
    %42 = arith.mulf %40, %41 : vector<4x8x8xf32>
    %43 = vector.extract_strided_slice %39 {offsets = [0, 0, 8], sizes = [4, 8, 8], strides = [1, 1, 1]} : vector<4x8x24xf32> to vector<4x8x8xf32>
    %44 = vector.extract_strided_slice %39 {offsets = [0, 0, 16], sizes = [4, 8, 8], strides = [1, 1, 1]} : vector<4x8x24xf32> to vector<4x8x8xf32>
    %45 = arith.truncf %42 : vector<4x8x8xf32> to vector<4x8x8xbf16>
    %46 = arith.truncf %43 : vector<4x8x8xf32> to vector<4x8x8xbf16>
    "tpu.trace_start"() <{level = 10 : i32, message = "hqd,hkd->hqk"}> : () -> ()
    %cst_23 = arith.constant dense<0.000000e+00> : vector<4x8x8xf32>
    %47 = tpu.matmul %45, %46, %cst_23 {dimension_numbers = #tpu.dot_dimension_numbers<[2], [2], [1], [1], [0, 0, 0, 1, 1, 1], [0], [0]>} : vector<4x8x8xbf16>, vector<4x8x8xbf16>, vector<4x8x8xf32> -> vector<4x8x8xf32>
    "tpu.trace_stop"() : () -> ()
    %48 = arith.addf %47, %28 : vector<4x8x8xf32>
    %cst_24 = arith.constant dense<0xFF800000> : vector<4x8xf32>
    %49 = vector.multi_reduction <maximumf>, %48, %cst_24 [2] : vector<4x8x8xf32> to vector<4x8xf32>
    %50 = vector.shape_cast %49 : vector<4x8xf32> to vector<4x8x1xf32>
    %51 = vector.broadcast %50 : vector<4x8x1xf32> to vector<4x8x8xf32>
    %52 = arith.subf %48, %51 : vector<4x8x8xf32>
    %53 = math.exp %52 : vector<4x8x8xf32>
    %cst_25 = arith.constant dense<0.000000e+00> : vector<4x8xf32>
    %54 = vector.multi_reduction <add>, %53, %cst_25 [2] : vector<4x8x8xf32> to vector<4x8xf32>
    %55 = vector.shape_cast %54 : vector<4x8xf32> to vector<4x8x1xf32>
    %56 = tpu.reciprocal %55 {approx = true} : vector<4x8x1xf32> -> vector<4x8x1xf32>
    %57 = vector.broadcast %56 : vector<4x8x1xf32> to vector<4x8x8xf32>
    %58 = arith.mulf %53, %57 : vector<4x8x8xf32>
    %59 = arith.truncf %58 : vector<4x8x8xf32> to vector<4x8x8xbf16>
    %60 = arith.truncf %44 : vector<4x8x8xf32> to vector<4x8x8xbf16>
    "tpu.trace_start"() <{level = 10 : i32, message = "hqk,hkd->hqd"}> : () -> ()
    %cst_26 = arith.constant dense<0.000000e+00> : vector<4x8x8xf32>
    %61 = tpu.matmul %59, %60, %cst_26 {dimension_numbers = #tpu.dot_dimension_numbers<[2], [1], [1], [2], [0, 0, 0, 1, 1, 2], [0], [0]>} : vector<4x8x8xbf16>, vector<4x8x8xbf16>, vector<4x8x8xf32> -> vector<4x8x8xf32>
    "tpu.trace_stop"() : () -> ()
    %62 = vector.extract_strided_slice %61 {offsets = [0, 0, 0], sizes = [1, 8, 8], strides = [1, 1, 1]} : vector<4x8x8xf32> to vector<1x8x8xf32>
    %63 = vector.shape_cast %62 : vector<1x8x8xf32> to vector<8x8xf32>
    %64 = vector.extract_strided_slice %61 {offsets = [1, 0, 0], sizes = [1, 8, 8], strides = [1, 1, 1]} : vector<4x8x8xf32> to vector<1x8x8xf32>
    %65 = vector.shape_cast %64 : vector<1x8x8xf32> to vector<8x8xf32>
    %66 = vector.extract_strided_slice %61 {offsets = [2, 0, 0], sizes = [1, 8, 8], strides = [1, 1, 1]} : vector<4x8x8xf32> to vector<1x8x8xf32>
    %67 = vector.shape_cast %66 : vector<1x8x8xf32> to vector<8x8xf32>
    %68 = vector.extract_strided_slice %61 {offsets = [3, 0, 0], sizes = [1, 8, 8], strides = [1, 1, 1]} : vector<4x8x8xf32> to vector<1x8x8xf32>
    %69 = vector.shape_cast %68 : vector<1x8x8xf32> to vector<8x8xf32>
    %70 = tpu.concatenate %63, %65, %67, %69 in 1 : vector<8x8xf32>, vector<8x8xf32>, vector<8x8xf32>, vector<8x8xf32> -> vector<8x32xf32>
    %71 = arith.truncf %70 : vector<8x32xf32> to vector<8x32xbf16>
    %c0_27 = arith.constant 0 : index
    %c0_28 = arith.constant 0 : index
    %c0_29 = arith.constant 0 : index
    %72 = vector.load %arg7[%c0_27, %c0_28, %c0_29] : memref<2x32x32xbf16, #tpu.memory_space<vmem>>, vector<1x32x32xbf16>
    %73 = vector.shape_cast %72 : vector<1x32x32xbf16> to vector<32x32xbf16>
    %cst_30 = arith.constant dense<0.000000e+00> : vector<8x32xf32>
    %74 = tpu.matmul %71, %73, %cst_30 {dimension_numbers = #tpu.dot_dimension_numbers<[1], [0], [0], [1], [0, 0, 1, 1], [], []>} : vector<8x32xbf16>, vector<32x32xbf16>, vector<8x32xf32> -> vector<8x32xf32>
    %c0_31 = arith.constant 0 : index
    %c0_32 = arith.constant 0 : index
    %c0_33 = arith.constant 0 : index
    %75 = vector.load %arg8[%c0_31, %c0_32, %c0_33] : memref<2x1x32xf32, #tpu.memory_space<vmem>>, vector<1x1x32xf32>
    %76 = vector.shape_cast %75 : vector<1x1x32xf32> to vector<1x32xf32>
    %77 = vector.broadcast %76 : vector<1x32xf32> to vector<8x32xf32>
    %78 = arith.addf %74, %77 : vector<8x32xf32>
    %79 = arith.addf %78, %25 : vector<8x32xf32>
    %c0_34 = arith.constant 0 : index
    %c0_35 = arith.constant 0 : index
    %c0_36 = arith.constant 0 : index
    %80 = vector.load %arg9[%c0_34, %c0_35, %c0_36] : memref<2x1x32xf32, #tpu.memory_space<vmem>>, vector<1x1x32xf32>
    %81 = vector.shape_cast %80 : vector<1x1x32xf32> to vector<1x32xf32>
    %c0_37 = arith.constant 0 : index
    %c0_38 = arith.constant 0 : index
    %c0_39 = arith.constant 0 : index
    %82 = vector.load %arg10[%c0_37, %c0_38, %c0_39] : memref<2x1x32xf32, #tpu.memory_space<vmem>>, vector<1x1x32xf32>
    %83 = vector.shape_cast %82 : vector<1x1x32xf32> to vector<1x32xf32>
    %cst_40 = arith.constant dense<0.000000e+00> : vector<8xf32>
    %84 = vector.multi_reduction <add>, %79, %cst_40 [1] : vector<8x32xf32> to vector<8xf32>
    %85 = vector.shape_cast %84 : vector<8xf32> to vector<8x1xf32>
    %cst_41 = arith.constant 3.200000e+01 : f32
    %86 = vector.broadcast %cst_41 : f32 to vector<8x1xf32>
    %87 = arith.divf %85, %86 : vector<8x1xf32>
    %88 = vector.broadcast %87 : vector<8x1xf32> to vector<8x32xf32>
    %89 = arith.subf %79, %88 : vector<8x32xf32>
    %90 = arith.mulf %89, %89 : vector<8x32xf32>
    %cst_42 = arith.constant dense<0.000000e+00> : vector<8xf32>
    %91 = vector.multi_reduction <add>, %90, %cst_42 [1] : vector<8x32xf32> to vector<8xf32>
    %92 = vector.shape_cast %91 : vector<8xf32> to vector<8x1xf32>
    %cst_43 = arith.constant 3.200000e+01 : f32
    %93 = vector.broadcast %cst_43 : f32 to vector<8x1xf32>
    %94 = arith.divf %92, %93 : vector<8x1xf32>
    %95 = vector.broadcast %87 : vector<8x1xf32> to vector<8x32xf32>
    %96 = arith.subf %79, %95 : vector<8x32xf32>
    %cst_44 = arith.constant 1.000000e-07 : f32
    %97 = vector.broadcast %cst_44 : f32 to vector<8x1xf32>
    %98 = arith.addf %94, %97 : vector<8x1xf32>
    %99 = math.rsqrt %98 : vector<8x1xf32>
    %100 = vector.broadcast %99 : vector<8x1xf32> to vector<8x32xf32>
    %101 = arith.mulf %96, %100 : vector<8x32xf32>
    %102 = vector.broadcast %81 : vector<1x32xf32> to vector<8x32xf32>
    %103 = arith.mulf %101, %102 : vector<8x32xf32>
    %104 = vector.broadcast %83 : vector<1x32xf32> to vector<8x32xf32>
    %105 = arith.addf %103, %104 : vector<8x32xf32>
    %106 = arith.truncf %105 : vector<8x32xf32> to vector<8x32xbf16>
    %c0_45 = arith.constant 0 : index
    %c0_46 = arith.constant 0 : index
    %c0_47 = arith.constant 0 : index
    %107 = vector.load %arg11[%c0_45, %c0_46, %c0_47] : memref<2x32x64xbf16, #tpu.memory_space<vmem>>, vector<1x32x64xbf16>
    %108 = vector.shape_cast %107 : vector<1x32x64xbf16> to vector<32x64xbf16>
    %cst_48 = arith.constant dense<0.000000e+00> : vector<8x64xf32>
    %109 = tpu.matmul %106, %108, %cst_48 {dimension_numbers = #tpu.dot_dimension_numbers<[1], [0], [0], [1], [0, 0, 1, 1], [], []>} : vector<8x32xbf16>, vector<32x64xbf16>, vector<8x64xf32> -> vector<8x64xf32>
    %c0_49 = arith.constant 0 : index
    %c0_50 = arith.constant 0 : index
    %c0_51 = arith.constant 0 : index
    %110 = vector.load %arg12[%c0_49, %c0_50, %c0_51] : memref<2x1x64xf32, #tpu.memory_space<vmem>>, vector<1x1x64xf32>
    %111 = vector.shape_cast %110 : vector<1x1x64xf32> to vector<1x64xf32>
    %112 = vector.broadcast %111 : vector<1x64xf32> to vector<8x64xf32>
    %113 = arith.addf %109, %112 : vector<8x64xf32>
    %cst_52 = arith.constant 5.000000e-01 : f32
    %114 = vector.broadcast %cst_52 : f32 to vector<8x64xf32>
    %115 = arith.mulf %114, %113 : vector<8x64xf32>
    %cst_53 = arith.constant 4.471500e-02 : f32
    %116 = vector.broadcast %cst_53 : f32 to vector<8x64xf32>
    %117 = arith.mulf %116, %113 : vector<8x64xf32>
    %118 = arith.mulf %117, %113 : vector<8x64xf32>
    %119 = arith.mulf %118, %113 : vector<8x64xf32>
    %120 = arith.addf %113, %119 : vector<8x64xf32>
    %cst_54 = arith.constant 0.797884583 : f32
    %121 = vector.broadcast %cst_54 : f32 to vector<8x64xf32>
    %122 = arith.mulf %121, %120 : vector<8x64xf32>
    %123 = math.tanh %122 : vector<8x64xf32>
    %cst_55 = arith.constant 1.000000e+00 : f32
    %124 = vector.broadcast %cst_55 : f32 to vector<8x64xf32>
    %125 = arith.addf %124, %123 : vector<8x64xf32>
    %126 = arith.mulf %115, %125 : vector<8x64xf32>
    %127 = arith.truncf %126 : vector<8x64xf32> to vector<8x64xbf16>
    %c0_56 = arith.constant 0 : index
    %c0_57 = arith.constant 0 : index
    %c0_58 = arith.constant 0 : index
    %128 = vector.load %arg13[%c0_56, %c0_57, %c0_58] : memref<2x64x32xbf16, #tpu.memory_space<vmem>>, vector<1x64x32xbf16>
    %129 = vector.shape_cast %128 : vector<1x64x32xbf16> to vector<64x32xbf16>
    %cst_59 = arith.constant dense<0.000000e+00> : vector<8x32xf32>
    %130 = tpu.matmul %127, %129, %cst_59 {dimension_numbers = #tpu.dot_dimension_numbers<[1], [0], [0], [1], [0, 0, 1, 1], [], []>} : vector<8x64xbf16>, vector<64x32xbf16>, vector<8x32xf32> -> vector<8x32xf32>
    %c0_60 = arith.constant 0 : index
    %c0_61 = arith.constant 0 : index
    %c0_62 = arith.constant 0 : index
    %131 = vector.load %arg14[%c0_60, %c0_61, %c0_62] : memref<2x1x32xf32, #tpu.memory_space<vmem>>, vector<1x1x32xf32>
    %132 = vector.shape_cast %131 : vector<1x1x32xf32> to vector<1x32xf32>
    %133 = vector.broadcast %132 : vector<1x32xf32> to vector<8x32xf32>
    %134 = arith.addf %130, %133 : vector<8x32xf32>
    %135 = arith.addf %134, %105 : vector<8x32xf32>
    %c0_63 = arith.constant 0 : index
    %c0_64 = arith.constant 0 : index
    %c0_65 = arith.constant 0 : index
    %136 = vector.load %arg15[%c0_63, %c0_64, %c0_65] : memref<2x1x32xf32, #tpu.memory_space<vmem>>, vector<1x1x32xf32>
    %137 = vector.shape_cast %136 : vector<1x1x32xf32> to vector<1x32xf32>
    %c0_66 = arith.constant 0 : index
    %c0_67 = arith.constant 0 : index
    %c0_68 = arith.constant 0 : index
    %138 = vector.load %arg16[%c0_66, %c0_67, %c0_68] : memref<2x1x32xf32, #tpu.memory_space<vmem>>, vector<1x1x32xf32>
    %139 = vector.shape_cast %138 : vector<1x1x32xf32> to vector<1x32xf32>
    %cst_69 = arith.constant dense<0.000000e+00> : vector<8xf32>
    %140 = vector.multi_reduction <add>, %135, %cst_69 [1] : vector<8x32xf32> to vector<8xf32>
    %141 = vector.shape_cast %140 : vector<8xf32> to vector<8x1xf32>
    %cst_70 = arith.constant 3.200000e+01 : f32
    %142 = vector.broadcast %cst_70 : f32 to vector<8x1xf32>
    %143 = arith.divf %141, %142 : vector<8x1xf32>
    %144 = vector.broadcast %143 : vector<8x1xf32> to vector<8x32xf32>
    %145 = arith.subf %135, %144 : vector<8x32xf32>
    %146 = arith.mulf %145, %145 : vector<8x32xf32>
    %cst_71 = arith.constant dense<0.000000e+00> : vector<8xf32>
    %147 = vector.multi_reduction <add>, %146, %cst_71 [1] : vector<8x32xf32> to vector<8xf32>
    %148 = vector.shape_cast %147 : vector<8xf32> to vector<8x1xf32>
    %cst_72 = arith.constant 3.200000e+01 : f32
    %149 = vector.broadcast %cst_72 : f32 to vector<8x1xf32>
    %150 = arith.divf %148, %149 : vector<8x1xf32>
    %151 = vector.broadcast %143 : vector<8x1xf32> to vector<8x32xf32>
    %152 = arith.subf %135, %151 : vector<8x32xf32>
    %cst_73 = arith.constant 1.000000e-07 : f32
    %153 = vector.broadcast %cst_73 : f32 to vector<8x1xf32>
    %154 = arith.addf %150, %153 : vector<8x1xf32>
    %155 = math.rsqrt %154 : vector<8x1xf32>
    %156 = vector.broadcast %155 : vector<8x1xf32> to vector<8x32xf32>
    %157 = arith.mulf %152, %156 : vector<8x32xf32>
    %158 = vector.broadcast %137 : vector<1x32xf32> to vector<8x32xf32>
    %159 = arith.mulf %157, %158 : vector<8x32xf32>
    %160 = vector.broadcast %139 : vector<1x32xf32> to vector<8x32xf32>
    %161 = arith.addf %159, %160 : vector<8x32xf32>
    %162 = arith.truncf %161 : vector<8x32xf32> to vector<8x32xbf16>
    %163 = vector.shape_cast %162 : vector<8x32xbf16> to vector<1x8x32xbf16>
    %164 = vector.shape_cast %163 : vector<1x8x32xbf16> to vector<1x8x32xbf16>
    %165 = vector.broadcast %164 : vector<1x8x32xbf16> to vector<4x8x32xbf16>
    %c1 = arith.constant 1 : index
    %c0_74 = arith.constant 0 : index
    %c0_75 = arith.constant 0 : index
    %c0_76 = arith.constant 0 : index
    %166 = vector.load %arg5[%c1, %c0_74, %c0_75, %c0_76] : memref<2x4x32x24xbf16, #tpu.memory_space<vmem>>, vector<1x4x32x24xbf16>
    %167 = vector.shape_cast %166 : vector<1x4x32x24xbf16> to vector<4x32x24xbf16>
    "tpu.trace_start"() <{level = 10 : i32, message = "hsk,hkd->hsd"}> : () -> ()
    %cst_77 = arith.constant dense<0.000000e+00> : vector<4x8x24xf32>
    %168 = tpu.matmul %165, %167, %cst_77 {dimension_numbers = #tpu.dot_dimension_numbers<[2], [1], [1], [2], [0, 0, 0, 1, 1, 2], [0], [0]>} : vector<4x8x32xbf16>, vector<4x32x24xbf16>, vector<4x8x24xf32> -> vector<4x8x24xf32>
    "tpu.trace_stop"() : () -> ()
    %c1_78 = arith.constant 1 : index
    %c0_79 = arith.constant 0 : index
    %c0_80 = arith.constant 0 : index
    %c0_81 = arith.constant 0 : index
    %169 = vector.load %arg6[%c1_78, %c0_79, %c0_80, %c0_81] : memref<2x4x1x24xf32, #tpu.memory_space<vmem>>, vector<1x4x1x24xf32>
    %170 = vector.shape_cast %169 : vector<1x4x1x24xf32> to vector<4x1x24xf32>
    %171 = vector.broadcast %170 : vector<4x1x24xf32> to vector<4x8x24xf32>
    %172 = arith.addf %168, %171 : vector<4x8x24xf32>
    %173 = vector.extract_strided_slice %172 {offsets = [0, 0, 0], sizes = [4, 8, 8], strides = [1, 1, 1]} : vector<4x8x24xf32> to vector<4x8x8xf32>
    %cst_82 = arith.constant 0.353553385 : f32
    %174 = vector.broadcast %cst_82 : f32 to vector<4x8x8xf32>
    %175 = arith.mulf %173, %174 : vector<4x8x8xf32>
    %176 = vector.extract_strided_slice %172 {offsets = [0, 0, 8], sizes = [4, 8, 8], strides = [1, 1, 1]} : vector<4x8x24xf32> to vector<4x8x8xf32>
    %177 = vector.extract_strided_slice %172 {offsets = [0, 0, 16], sizes = [4, 8, 8], strides = [1, 1, 1]} : vector<4x8x24xf32> to vector<4x8x8xf32>
    %178 = arith.truncf %175 : vector<4x8x8xf32> to vector<4x8x8xbf16>
    %179 = arith.truncf %176 : vector<4x8x8xf32> to vector<4x8x8xbf16>
    "tpu.trace_start"() <{level = 10 : i32, message = "hqd,hkd->hqk"}> : () -> ()
    %cst_83 = arith.constant dense<0.000000e+00> : vector<4x8x8xf32>
    %180 = tpu.matmul %178, %179, %cst_83 {dimension_numbers = #tpu.dot_dimension_numbers<[2], [2], [1], [1], [0, 0, 0, 1, 1, 1], [0], [0]>} : vector<4x8x8xbf16>, vector<4x8x8xbf16>, vector<4x8x8xf32> -> vector<4x8x8xf32>
    "tpu.trace_stop"() : () -> ()
    %181 = arith.addf %180, %28 : vector<4x8x8xf32>
    %cst_84 = arith.constant dense<0xFF800000> : vector<4x8xf32>
    %182 = vector.multi_reduction <maximumf>, %181, %cst_84 [2] : vector<4x8x8xf32> to vector<4x8xf32>
    %183 = vector.shape_cast %182 : vector<4x8xf32> to vector<4x8x1xf32>
    %184 = vector.broadcast %183 : vector<4x8x1xf32> to vector<4x8x8xf32>
    %185 = arith.subf %181, %184 : vector<4x8x8xf32>
    %186 = math.exp %185 : vector<4x8x8xf32>
    %cst_85 = arith.constant dense<0.000000e+00> : vector<4x8xf32>
    %187 = vector.multi_reduction <add>, %186, %cst_85 [2] : vector<4x8x8xf32> to vector<4x8xf32>
    %188 = vector.shape_cast %187 : vector<4x8xf32> to vector<4x8x1xf32>
    %189 = tpu.reciprocal %188 {approx = true} : vector<4x8x1xf32> -> vector<4x8x1xf32>
    %190 = vector.broadcast %189 : vector<4x8x1xf32> to vector<4x8x8xf32>
    %191 = arith.mulf %186, %190 : vector<4x8x8xf32>
    %192 = arith.truncf %191 : vector<4x8x8xf32> to vector<4x8x8xbf16>
    %193 = arith.truncf %177 : vector<4x8x8xf32> to vector<4x8x8xbf16>
    "tpu.trace_start"() <{level = 10 : i32, message = "hqk,hkd->hqd"}> : () -> ()
    %cst_86 = arith.constant dense<0.000000e+00> : vector<4x8x8xf32>
    %194 = tpu.matmul %192, %193, %cst_86 {dimension_numbers = #tpu.dot_dimension_numbers<[2], [1], [1], [2], [0, 0, 0, 1, 1, 2], [0], [0]>} : vector<4x8x8xbf16>, vector<4x8x8xbf16>, vector<4x8x8xf32> -> vector<4x8x8xf32>
    "tpu.trace_stop"() : () -> ()
    %195 = vector.extract_strided_slice %194 {offsets = [0, 0, 0], sizes = [1, 8, 8], strides = [1, 1, 1]} : vector<4x8x8xf32> to vector<1x8x8xf32>
    %196 = vector.shape_cast %195 : vector<1x8x8xf32> to vector<8x8xf32>
    %197 = vector.extract_strided_slice %194 {offsets = [1, 0, 0], sizes = [1, 8, 8], strides = [1, 1, 1]} : vector<4x8x8xf32> to vector<1x8x8xf32>
    %198 = vector.shape_cast %197 : vector<1x8x8xf32> to vector<8x8xf32>
    %199 = vector.extract_strided_slice %194 {offsets = [2, 0, 0], sizes = [1, 8, 8], strides = [1, 1, 1]} : vector<4x8x8xf32> to vector<1x8x8xf32>
    %200 = vector.shape_cast %199 : vector<1x8x8xf32> to vector<8x8xf32>
    %201 = vector.extract_strided_slice %194 {offsets = [3, 0, 0], sizes = [1, 8, 8], strides = [1, 1, 1]} : vector<4x8x8xf32> to vector<1x8x8xf32>
    %202 = vector.shape_cast %201 : vector<1x8x8xf32> to vector<8x8xf32>
    %203 = tpu.concatenate %196, %198, %200, %202 in 1 : vector<8x8xf32>, vector<8x8xf32>, vector<8x8xf32>, vector<8x8xf32> -> vector<8x32xf32>
    %204 = arith.truncf %203 : vector<8x32xf32> to vector<8x32xbf16>
    %c1_87 = arith.constant 1 : index
    %c0_88 = arith.constant 0 : index
    %c0_89 = arith.constant 0 : index
    %205 = vector.load %arg7[%c1_87, %c0_88, %c0_89] : memref<2x32x32xbf16, #tpu.memory_space<vmem>>, vector<1x32x32xbf16>
    %206 = vector.shape_cast %205 : vector<1x32x32xbf16> to vector<32x32xbf16>
    %cst_90 = arith.constant dense<0.000000e+00> : vector<8x32xf32>
    %207 = tpu.matmul %204, %206, %cst_90 {dimension_numbers = #tpu.dot_dimension_numbers<[1], [0], [0], [1], [0, 0, 1, 1], [], []>} : vector<8x32xbf16>, vector<32x32xbf16>, vector<8x32xf32> -> vector<8x32xf32>
    %c1_91 = arith.constant 1 : index
    %c0_92 = arith.constant 0 : index
    %c0_93 = arith.constant 0 : index
    %208 = vector.load %arg8[%c1_91, %c0_92, %c0_93] : memref<2x1x32xf32, #tpu.memory_space<vmem>>, vector<1x1x32xf32>
    %209 = vector.shape_cast %208 : vector<1x1x32xf32> to vector<1x32xf32>
    %210 = vector.broadcast %209 : vector<1x32xf32> to vector<8x32xf32>
    %211 = arith.addf %207, %210 : vector<8x32xf32>
    %212 = arith.addf %211, %161 : vector<8x32xf32>
    %c1_94 = arith.constant 1 : index
    %c0_95 = arith.constant 0 : index
    %c0_96 = arith.constant 0 : index
    %213 = vector.load %arg9[%c1_94, %c0_95, %c0_96] : memref<2x1x32xf32, #tpu.memory_space<vmem>>, vector<1x1x32xf32>
    %214 = vector.shape_cast %213 : vector<1x1x32xf32> to vector<1x32xf32>
    %c1_97 = arith.constant 1 : index
    %c0_98 = arith.constant 0 : index
    %c0_99 = arith.constant 0 : index
    %215 = vector.load %arg10[%c1_97, %c0_98, %c0_99] : memref<2x1x32xf32, #tpu.memory_space<vmem>>, vector<1x1x32xf32>
    %216 = vector.shape_cast %215 : vector<1x1x32xf32> to vector<1x32xf32>
    %cst_100 = arith.constant dense<0.000000e+00> : vector<8xf32>
    %217 = vector.multi_reduction <add>, %212, %cst_100 [1] : vector<8x32xf32> to vector<8xf32>
    %218 = vector.shape_cast %217 : vector<8xf32> to vector<8x1xf32>
    %cst_101 = arith.constant 3.200000e+01 : f32
    %219 = vector.broadcast %cst_101 : f32 to vector<8x1xf32>
    %220 = arith.divf %218, %219 : vector<8x1xf32>
    %221 = vector.broadcast %220 : vector<8x1xf32> to vector<8x32xf32>
    %222 = arith.subf %212, %221 : vector<8x32xf32>
    %223 = arith.mulf %222, %222 : vector<8x32xf32>
    %cst_102 = arith.constant dense<0.000000e+00> : vector<8xf32>
    %224 = vector.multi_reduction <add>, %223, %cst_102 [1] : vector<8x32xf32> to vector<8xf32>
    %225 = vector.shape_cast %224 : vector<8xf32> to vector<8x1xf32>
    %cst_103 = arith.constant 3.200000e+01 : f32
    %226 = vector.broadcast %cst_103 : f32 to vector<8x1xf32>
    %227 = arith.divf %225, %226 : vector<8x1xf32>
    %228 = vector.broadcast %220 : vector<8x1xf32> to vector<8x32xf32>
    %229 = arith.subf %212, %228 : vector<8x32xf32>
    %cst_104 = arith.constant 1.000000e-07 : f32
    %230 = vector.broadcast %cst_104 : f32 to vector<8x1xf32>
    %231 = arith.addf %227, %230 : vector<8x1xf32>
    %232 = math.rsqrt %231 : vector<8x1xf32>
    %233 = vector.broadcast %232 : vector<8x1xf32> to vector<8x32xf32>
    %234 = arith.mulf %229, %233 : vector<8x32xf32>
    %235 = vector.broadcast %214 : vector<1x32xf32> to vector<8x32xf32>
    %236 = arith.mulf %234, %235 : vector<8x32xf32>
    %237 = vector.broadcast %216 : vector<1x32xf32> to vector<8x32xf32>
    %238 = arith.addf %236, %237 : vector<8x32xf32>
    %239 = arith.truncf %238 : vector<8x32xf32> to vector<8x32xbf16>
    %c1_105 = arith.constant 1 : index
    %c0_106 = arith.constant 0 : index
    %c0_107 = arith.constant 0 : index
    %240 = vector.load %arg11[%c1_105, %c0_106, %c0_107] : memref<2x32x64xbf16, #tpu.memory_space<vmem>>, vector<1x32x64xbf16>
    %241 = vector.shape_cast %240 : vector<1x32x64xbf16> to vector<32x64xbf16>
    %cst_108 = arith.constant dense<0.000000e+00> : vector<8x64xf32>
    %242 = tpu.matmul %239, %241, %cst_108 {dimension_numbers = #tpu.dot_dimension_numbers<[1], [0], [0], [1], [0, 0, 1, 1], [], []>} : vector<8x32xbf16>, vector<32x64xbf16>, vector<8x64xf32> -> vector<8x64xf32>
    %c1_109 = arith.constant 1 : index
    %c0_110 = arith.constant 0 : index
    %c0_111 = arith.constant 0 : index
    %243 = vector.load %arg12[%c1_109, %c0_110, %c0_111] : memref<2x1x64xf32, #tpu.memory_space<vmem>>, vector<1x1x64xf32>
    %244 = vector.shape_cast %243 : vector<1x1x64xf32> to vector<1x64xf32>
    %245 = vector.broadcast %244 : vector<1x64xf32> to vector<8x64xf32>
    %246 = arith.addf %242, %245 : vector<8x64xf32>
    %cst_112 = arith.constant 5.000000e-01 : f32
    %247 = vector.broadcast %cst_112 : f32 to vector<8x64xf32>
    %248 = arith.mulf %247, %246 : vector<8x64xf32>
    %cst_113 = arith.constant 4.471500e-02 : f32
    %249 = vector.broadcast %cst_113 : f32 to vector<8x64xf32>
    %250 = arith.mulf %249, %246 : vector<8x64xf32>
    %251 = arith.mulf %250, %246 : vector<8x64xf32>
    %252 = arith.mulf %251, %246 : vector<8x64xf32>
    %253 = arith.addf %246, %252 : vector<8x64xf32>
    %cst_114 = arith.constant 0.797884583 : f32
    %254 = vector.broadcast %cst_114 : f32 to vector<8x64xf32>
    %255 = arith.mulf %254, %253 : vector<8x64xf32>
    %256 = math.tanh %255 : vector<8x64xf32>
    %cst_115 = arith.constant 1.000000e+00 : f32
    %257 = vector.broadcast %cst_115 : f32 to vector<8x64xf32>
    %258 = arith.addf %257, %256 : vector<8x64xf32>
    %259 = arith.mulf %248, %258 : vector<8x64xf32>
    %260 = arith.truncf %259 : vector<8x64xf32> to vector<8x64xbf16>
    %c1_116 = arith.constant 1 : index
    %c0_117 = arith.constant 0 : index
    %c0_118 = arith.constant 0 : index
    %261 = vector.load %arg13[%c1_116, %c0_117, %c0_118] : memref<2x64x32xbf16, #tpu.memory_space<vmem>>, vector<1x64x32xbf16>
    %262 = vector.shape_cast %261 : vector<1x64x32xbf16> to vector<64x32xbf16>
    %cst_119 = arith.constant dense<0.000000e+00> : vector<8x32xf32>
    %263 = tpu.matmul %260, %262, %cst_119 {dimension_numbers = #tpu.dot_dimension_numbers<[1], [0], [0], [1], [0, 0, 1, 1], [], []>} : vector<8x64xbf16>, vector<64x32xbf16>, vector<8x32xf32> -> vector<8x32xf32>
    %c1_120 = arith.constant 1 : index
    %c0_121 = arith.constant 0 : index
    %c0_122 = arith.constant 0 : index
    %264 = vector.load %arg14[%c1_120, %c0_121, %c0_122] : memref<2x1x32xf32, #tpu.memory_space<vmem>>, vector<1x1x32xf32>
    %265 = vector.shape_cast %264 : vector<1x1x32xf32> to vector<1x32xf32>
    %266 = vector.broadcast %265 : vector<1x32xf32> to vector<8x32xf32>
    %267 = arith.addf %263, %266 : vector<8x32xf32>
    %268 = arith.addf %267, %238 : vector<8x32xf32>
    %c1_123 = arith.constant 1 : index
    %c0_124 = arith.constant 0 : index
    %c0_125 = arith.constant 0 : index
    %269 = vector.load %arg15[%c1_123, %c0_124, %c0_125] : memref<2x1x32xf32, #tpu.memory_space<vmem>>, vector<1x1x32xf32>
    %270 = vector.shape_cast %269 : vector<1x1x32xf32> to vector<1x32xf32>
    %c1_126 = arith.constant 1 : index
    %c0_127 = arith.constant 0 : index
    %c0_128 = arith.constant 0 : index
    %271 = vector.load %arg16[%c1_126, %c0_127, %c0_128] : memref<2x1x32xf32, #tpu.memory_space<vmem>>, vector<1x1x32xf32>
    %272 = vector.shape_cast %271 : vector<1x1x32xf32> to vector<1x32xf32>
    %cst_129 = arith.constant dense<0.000000e+00> : vector<8xf32>
    %273 = vector.multi_reduction <add>, %268, %cst_129 [1] : vector<8x32xf32> to vector<8xf32>
    %274 = vector.shape_cast %273 : vector<8xf32> to vector<8x1xf32>
    %cst_130 = arith.constant 3.200000e+01 : f32
    %275 = vector.broadcast %cst_130 : f32 to vector<8x1xf32>
    %276 = arith.divf %274, %275 : vector<8x1xf32>
    %277 = vector.broadcast %276 : vector<8x1xf32> to vector<8x32xf32>
    %278 = arith.subf %268, %277 : vector<8x32xf32>
    %279 = arith.mulf %278, %278 : vector<8x32xf32>
    %cst_131 = arith.constant dense<0.000000e+00> : vector<8xf32>
    %280 = vector.multi_reduction <add>, %279, %cst_131 [1] : vector<8x32xf32> to vector<8xf32>
    %281 = vector.shape_cast %280 : vector<8xf32> to vector<8x1xf32>
    %cst_132 = arith.constant 3.200000e+01 : f32
    %282 = vector.broadcast %cst_132 : f32 to vector<8x1xf32>
    %283 = arith.divf %281, %282 : vector<8x1xf32>
    %284 = vector.broadcast %276 : vector<8x1xf32> to vector<8x32xf32>
    %285 = arith.subf %268, %284 : vector<8x32xf32>
    %cst_133 = arith.constant 1.000000e-07 : f32
    %286 = vector.broadcast %cst_133 : f32 to vector<8x1xf32>
    %287 = arith.addf %283, %286 : vector<8x1xf32>
    %288 = math.rsqrt %287 : vector<8x1xf32>
    %289 = vector.broadcast %288 : vector<8x1xf32> to vector<8x32xf32>
    %290 = arith.mulf %285, %289 : vector<8x32xf32>
    %291 = vector.broadcast %270 : vector<1x32xf32> to vector<8x32xf32>
    %292 = arith.mulf %290, %291 : vector<8x32xf32>
    %293 = vector.broadcast %272 : vector<1x32xf32> to vector<8x32xf32>
    %294 = arith.addf %292, %293 : vector<8x32xf32>
    %295 = vector.extract_strided_slice %294 {offsets = [0, 0], sizes = [1, 32], strides = [1, 1]} : vector<8x32xf32> to vector<1x32xf32>
    %296 = arith.truncf %295 : vector<1x32xf32> to vector<1x32xbf16>
    %c0_134 = arith.constant 0 : index
    %c0_135 = arith.constant 0 : index
    %297 = vector.load %arg17[%c0_134, %c0_135] : memref<32x128xbf16, #tpu.memory_space<vmem>>, vector<32x128xbf16>
    %cst_136 = arith.constant dense<0.000000e+00> : vector<1x128xf32>
    %298 = tpu.matmul %296, %297, %cst_136 {dimension_numbers = #tpu.dot_dimension_numbers<[1], [0], [0], [1], [0, 0, 1, 1], [], []>} : vector<1x32xbf16>, vector<32x128xbf16>, vector<1x128xf32> -> vector<1x128xf32>
    %c0_137 = arith.constant 0 : index
    %c0_138 = arith.constant 0 : index
    %299 = vector.load %arg18[%c0_137, %c0_138] : memref<1x128xf32, #tpu.memory_space<vmem>>, vector<1x128xf32>
    %300 = arith.addf %298, %299 : vector<1x128xf32>
    %301 = vector.shape_cast %300 : vector<1x128xf32> to vector<1x1x128xf32>
    %c0_139 = arith.constant 0 : index
    %c0_140 = arith.constant 0 : index
    %c0_141 = arith.constant 0 : index
    %302 = vector.load %arg19[%c0_139, %c0_140, %c0_141] : memref<1x1x128xf32, #tpu.memory_space<vmem>>, vector<1x1x128xf32>
    tpu.vector_store %arg19[%c0_139, %c0_140, %c0_141], %301 {strides = array<i32>} : memref<1x1x128xf32, #tpu.memory_space<vmem>>, vector<1x1x128xf32>,
    return
  }
  func.func @transform_0(%arg0: i32) -> (i32, i32, i32) {
    %c0_i32 = arith.constant 0 : i32
    %c0_i32_0 = arith.constant 0 : i32
    %c0_i32_1 = arith.constant 0 : i32
    return %arg0, %c0_i32, %c0_i32_0 : i32, i32, i32
  }
  func.func @transform_1(%arg0: i32) -> (i32, i32, i32) {
    %c0_i32 = arith.constant 0 : i32
    %c0_i32_0 = arith.constant 0 : i32
    %c0_i32_1 = arith.constant 0 : i32
    return %arg0, %c0_i32, %c0_i32_0 : i32, i32, i32
  }
  func.func @transform_2(%arg0: i32) -> (i32, i32) {
    %c0_i32 = arith.constant 0 : i32
    %c0_i32_0 = arith.constant 0 : i32
    %c0_i32_1 = arith.constant 0 : i32
    return %c0_i32, %c0_i32_0 : i32, i32
  }
  func.func @transform_3(%arg0: i32) -> (i32, i32) {
    %c0_i32 = arith.constant 0 : i32
    %c0_i32_0 = arith.constant 0 : i32
    %c0_i32_1 = arith.constant 0 : i32
    return %c0_i32, %c0_i32_0 : i32, i32
  }
  func.func @transform_4(%arg0: i32) -> (i32, i32, i32, i32) {
    %c0_i32 = arith.constant 0 : i32
    %c0_i32_0 = arith.constant 0 : i32
    %c0_i32_1 = arith.constant 0 : i32
    %c0_i32_2 = arith.constant 0 : i32
    %c0_i32_3 = arith.constant 0 : i32
    return %c0_i32, %c0_i32_0, %c0_i32_1, %c0_i32_2 : i32, i32, i32, i32
  }
  func.func @transform_5(%arg0: i32) -> (i32, i32, i32, i32) {
    %c0_i32 = arith.constant 0 : i32
    %c0_i32_0 = arith.constant 0 : i32
    %c0_i32_1 = arith.constant 0 : i32
    %c0_i32_2 = arith.constant 0 : i32
    %c0_i32_3 = arith.constant 0 : i32
    return %c0_i32, %c0_i32_0, %c0_i32_1, %c0_i32_2 : i32, i32, i32, i32
  }
  func.func @transform_6(%arg0: i32) -> (i32, i32, i32) {
    %c0_i32 = arith.constant 0 : i32
    %c0_i32_0 = arith.constant 0 : i32
    %c0_i32_1 = arith.constant 0 : i32
    %c0_i32_2 = arith.constant 0 : i32
    return %c0_i32, %c0_i32_0, %c0_i32_1 : i32, i32, i32
  }
  func.func @transform_7(%arg0: i32) -> (i32, i32, i32) {
    %c0_i32 = arith.constant 0 : i32
    %c0_i32_0 = arith.constant 0 : i32
    %c0_i32_1 = arith.constant 0 : i32
    %c0_i32_2 = arith.constant 0 : i32
    return %c0_i32, %c0_i32_0, %c0_i32_1 : i32, i32, i32
  }
  func.func @transform_8(%arg0: i32) -> (i32, i32, i32) {
    %c0_i32 = arith.constant 0 : i32
    %c0_i32_0 = arith.constant 0 : i32
    %c0_i32_1 = arith.constant 0 : i32
    %c0_i32_2 = arith.constant 0 : i32
    return %c0_i32, %c0_i32_0, %c0_i32_1 : i32, i32, i32
  }
  func.func @transform_9(%arg0: i32) -> (i32, i32, i32) {
    %c0_i32 = arith.constant 0 : i32
    %c0_i32_0 = arith.constant 0 : i32
    %c0_i32_1 = arith.constant 0 : i32
    %c0_i32_2 = arith.constant 0 : i32
    return %c0_i32, %c0_i32_0, %c0_i32_1 : i32, i32, i32
  }
  func.func @transform_10(%arg0: i32) -> (i32, i32, i32) {
    %c0_i32 = arith.constant 0 : i32
    %c0_i32_0 = arith.constant 0 : i32
    %c0_i32_1 = arith.constant 0 : i32
    %c0_i32_2 = arith.constant 0 : i32
    return %c0_i32, %c0_i32_0, %c0_i32_1 : i32, i32, i32
  }
  func.func @transform_11(%arg0: i32) -> (i32, i32, i32) {
    %c0_i32 = arith.constant 0 : i32
    %c0_i32_0 = arith.constant 0 : i32
    %c0_i32_1 = arith.constant 0 : i32
    %c0_i32_2 = arith.constant 0 : i32
    return %c0_i32, %c0_i32_0, %c0_i32_1 : i32, i32, i32
  }
  func.func @transform_12(%arg0: i32) -> (i32, i32, i32) {
    %c0_i32 = arith.constant 0 : i32
    %c0_i32_0 = arith.constant 0 : i32
    %c0_i32_1 = arith.constant 0 : i32
    %c0_i32_2 = arith.constant 0 : i32
    return %c0_i32, %c0_i32_0, %c0_i32_1 : i32, i32, i32
  }
  func.func @transform_13(%arg0: i32) -> (i32, i32, i32) {
    %c0_i32 = arith.constant 0 : i32
    %c0_i32_0 = arith.constant 0 : i32
    %c0_i32_1 = arith.constant 0 : i32
    %c0_i32_2 = arith.constant 0 : i32
    return %c0_i32, %c0_i32_0, %c0_i32_1 : i32, i32, i32
  }
  func.func @transform_14(%arg0: i32) -> (i32, i32, i32) {
    %c0_i32 = arith.constant 0 : i32
    %c0_i32_0 = arith.constant 0 : i32
    %c0_i32_1 = arith.constant 0 : i32
    %c0_i32_2 = arith.constant 0 : i32
    return %c0_i32, %c0_i32_0, %c0_i32_1 : i32, i32, i32
  }
  func.func @transform_15(%arg0: i32) -> (i32, i32, i32) {
    %c0_i32 = arith.constant 0 : i32
    %c0_i32_0 = arith.constant 0 : i32
    %c0_i32_1 = arith.constant 0 : i32
    %c0_i32_2 = arith.constant 0 : i32
    return %c0_i32, %c0_i32_0, %c0_i32_1 : i32, i32, i32
  }
  func.func @transform_16(%arg0: i32) -> (i32, i32) {
    %c0_i32 = arith.constant 0 : i32
    %c0_i32_0 = arith.constant 0 : i32
    %c0_i32_1 = arith.constant 0 : i32
    return %c0_i32, %c0_i32_0 : i32, i32
  }
  func.func @transform_17(%arg0: i32) -> (i32, i32) {
    %c0_i32 = arith.constant 0 : i32
    %c0_i32_0 = arith.constant 0 : i32
    %c0_i32_1 = arith.constant 0 : i32
    return %c0_i32, %c0_i32_0 : i32, i32
  }
  func.func @transform_18(%arg0: i32) -> (i32, i32, i32) {
    %c0_i32 = arith.constant 0 : i32
    %c0_i32_0 = arith.constant 0 : i32
    %c0_i32_1 = arith.constant 0 : i32
    return %arg0, %c0_i32, %c0_i32_0 : i32, i32, i32
  }
}

</mosaic_0001>

<llo_original>
// kernel: mrc_for_cpc_forward.1
$region0: #{mrc_for_cpc_forward.1}
  #allocation0 [shape = 'u32[]', space=smem, size = 0x4, offset = 0x4, fixed_abs, tag = 'smem constant byte address 0x4 - core index']
  #allocation1 [shape = 'u32[144,128]{1,0:T(1,128)}', space=vmem, size = 0x12000, scoped, tag = 'internal scratch']
  %s0 = inlined_call_operand.vmem [shape: f32[2,8,32], index: 0, kind: input, shape index: {}]
  %s1 = inlined_call_operand.vmem [shape: f32[2,1,8], index: 1, kind: input, shape index: {}]
  %s2 = inlined_call_operand.vmem [shape: f32[1,32], index: 2, kind: input, shape index: {}]
  %s3 = inlined_call_operand.vmem [shape: f32[1,32], index: 3, kind: input, shape index: {}]
  %s4 = inlined_call_operand.vmem [shape: bf16[2,4,32,24], index: 4, kind: input, shape index: {}]
  %s5 = inlined_call_operand.vmem [shape: f32[2,4,1,24], index: 5, kind: input, shape index: {}]
  %s6 = inlined_call_operand.vmem [shape: bf16[2,32,32], index: 6, kind: input, shape index: {}]
  %s7 = inlined_call_operand.vmem [shape: f32[2,1,32], index: 7, kind: input, shape index: {}]
  %s8 = inlined_call_operand.vmem [shape: f32[2,1,32], index: 8, kind: input, shape index: {}]
  %s9 = inlined_call_operand.vmem [shape: f32[2,1,32], index: 9, kind: input, shape index: {}]
  %s10 = inlined_call_operand.vmem [shape: bf16[2,32,64], index: 10, kind: input, shape index: {}]
  %s11 = inlined_call_operand.vmem [shape: f32[2,1,64], index: 11, kind: input, shape index: {}]
  %s12 = inlined_call_operand.vmem [shape: bf16[2,64,32], index: 12, kind: input, shape index: {}]
  %s13 = inlined_call_operand.vmem [shape: f32[2,1,32], index: 13, kind: input, shape index: {}]
  %s14 = inlined_call_operand.vmem [shape: f32[2,1,32], index: 14, kind: input, shape index: {}]
  %s15 = inlined_call_operand.vmem [shape: f32[2,1,32], index: 15, kind: input, shape index: {}]
  %s16 = inlined_call_operand.vmem [shape: bf16[32,128], index: 16, kind: input, shape index: {}]
  %s17 = inlined_call_operand.vmem [shape: f32[1,128], index: 17, kind: input, shape index: {}]
  %s18 = inlined_call_operand.hbm [shape: f32[2,1,128], index: 18, kind: output, shape index: {}]
  %s19 = sld [smem:[#allocation0]]
  $region105: #{mrc_for_cpc_forward.1} parent=0
    _
  %s21 = ssub.s32 1, %s19
  %s22 = scalar_select 0, %s21, %s19
  $region1: #{mrc_for_cpc_forward.1} parent=0
    #allocation2 [shape = 'u8[1024]{0}', space=vmem, size = 0x400, scoped, tag = 'output window, operand 0']
    #allocation3 [shape = 's32[2]{0}', space=sflag, size = 0x8, scoped, tag = 'scoped memory for mrc_for_cpc_forward.1']
    %23 = vsyncpa [#allocation3], 0
    %s24 = scalar_lea.sflag [#allocation3], 1
    %25 = vsyncpa %s24, 0
    loop: start=0, step=1, limit=4
    $region2: #{mrc_for_cpc_forward.1} parent=1 // loop_pre_header
      _
    $region3: #{mrc_for_cpc_forward.1} parent=1 // loop_header
      %s27 = sphi 0, %s31
      %p28 = scmp.ge.s32.totalorder %s27, 4
      %s37 = sphi 0, %s39
      %s40 = sphi 0, %s37
      %s41 = sphi 0, %s40
      %s57 = sphi 0, %s41
      %s63 = sphi 0, %s65
      %s66 = sphi 0, %s63
      %s67 = sphi 0, %s66
      %s83 = sphi 0, %s67
      %s87 = sphi 0, %s87
      %s89 = sphi 0, %s87
      %s90 = sphi 0, %s89
      %s104 = sphi 0, %s90
      %s108 = sphi 0, %s108
      %s110 = sphi 0, %s108
      %s111 = sphi 0, %s110
      %s125 = sphi 0, %s111
      %s129 = sphi 0, %s129
      %s131 = sphi 0, %s129
      %s132 = sphi 0, %s131
      %s146 = sphi 0, %s132
      %s150 = sphi 0, %s150
      %s152 = sphi 0, %s150
      %s153 = sphi 0, %s152
      %s167 = sphi 0, %s153
      %s171 = sphi 0, %s171
      %s173 = sphi 0, %s171
      %s174 = sphi 0, %s173
      %s188 = sphi 0, %s174
      %s192 = sphi 0, %s192
      %s194 = sphi 0, %s192
      %s195 = sphi 0, %s194
      %s209 = sphi 0, %s195
      %s213 = sphi 0, %s213
      %s215 = sphi 0, %s213
      %s216 = sphi 0, %s215
      %s230 = sphi 0, %s216
      %s234 = sphi 0, %s234
      %s236 = sphi 0, %s234
      %s237 = sphi 0, %s236
      %s251 = sphi 0, %s237
      %s255 = sphi 0, %s255
      %s257 = sphi 0, %s255
      %s258 = sphi 0, %s257
      %s272 = sphi 0, %s258
      %s276 = sphi 0, %s276
      %s278 = sphi 0, %s276
      %s279 = sphi 0, %s278
      %s293 = sphi 0, %s279
      %s297 = sphi 0, %s297
      %s299 = sphi 0, %s297
      %s300 = sphi 0, %s299
      %s314 = sphi 0, %s300
      %s318 = sphi 0, %s318
      %s320 = sphi 0, %s318
      %s321 = sphi 0, %s320
      %s335 = sphi 0, %s321
      %s339 = sphi 0, %s339
      %s341 = sphi 0, %s339
      %s342 = sphi 0, %s341
      %s356 = sphi 0, %s342
      %s360 = sphi 0, %s360
      %s362 = sphi 0, %s360
      %s363 = sphi 0, %s362
      %s377 = sphi 0, %s363
      %s381 = sphi 0, %s381
      %s383 = sphi 0, %s381
      %s384 = sphi 0, %s383
      %s398 = sphi 0, %s384
      %s402 = sphi 0, %s402
      %s404 = sphi 0, %s402
      %s405 = sphi 0, %s404
      %s419 = sphi 0, %s405
      %s425 = sphi 0, %s427
      %s428 = sphi 0, %s425
      %s429 = sphi 0, %s428
      %s445 = sphi 0, %s429
    $region4: #{mrc_for_cpc_forward.1} parent=1 // loop_header_branch
      %30 = sbr.rel (%p28) target = $region8
    $region5: #{mrc_for_cpc_forward.1} parent=1 // loop_body
      %s32 = ssub.s32 %s27, 1
      %s33 = ssub.s32 %s27, 2
      %s34 = sadd.s32 %s27, 1
      %s35 = ssub.s32 %s27, %s34
      %p36 = scmp.eq.s32.totalorder %s35, 0
      %s38 = sadd.s32 %s37, 1
      %s39 = scalar_select %p36, %s37, %s38
      %p42 = pneg %p36
      %p43 = scmp.eq.s32.totalorder %s27, 1
      %p44 = por %p42, %p43
      %p45 = scmp.ne.s32.totalorder %s37, %s40
      %p46 = scmp.eq.s32.totalorder %s27, 0
      %p47 = por %p45, %p46
      %p48 = scmp.ne.s32.totalorder %s37, %s40
      %p49 = scmp.eq.s32.totalorder %s32, 1
      %p50 = por %p48, %p49
      %p51 = scmp.ne.s32.totalorder %s40, %s41
      %p52 = scmp.eq.s32.totalorder %s32, 0
      %p53 = por %p51, %p52
      %p54 = scmp.ne.s32.totalorder %s40, %s41
      %p55 = scmp.eq.s32.totalorder %s33, 1
      %p56 = por %p54, %p55
      %p58 = scmp.ne.s32.totalorder %s41, %s57
      %p59 = scmp.eq.s32.totalorder %s33, 0
      %p60 = por %p58, %p59
      %s61 = ssub.s32 %s27, %s34
      %p62 = scmp.eq.s32.totalorder %s61, 0
      %s64 = sadd.s32 %s63, 1
      %s65 = scalar_select %p62, %s63, %s64
      %p68 = pneg %p62
      %p69 = scmp.eq.s32.totalorder %s27, 1
      %p70 = por %p68, %p69
      %p71 = scmp.ne.s32.totalorder %s63, %s66
      %p72 = scmp.eq.s32.totalorder %s27, 0
      %p73 = por %p71, %p72
      %p74 = scmp.ne.s32.totalorder %s63, %s66
      %p75 = scmp.eq.s32.totalorder %s32, 1
      %p76 = por %p74, %p75
      %p77 = scmp.ne.s32.totalorder %s66, %s67
      %p78 = scmp.eq.s32.totalorder %s32, 0
      %p79 = por %p77, %p78
      %p80 = scmp.ne.s32.totalorder %s66, %s67
      %p81 = scmp.eq.s32.totalorder %s33, 1
      %p82 = por %p80, %p81
      %p84 = scmp.ne.s32.totalorder %s67, %s83
      %p85 = scmp.eq.s32.totalorder %s33, 0
      %p86 = por %p84, %p85
      %s88 = sadd.s32 %s87, 1
      %p91 = scmp.eq.s32.totalorder %s27, 1
      %p92 = scmp.ne.s32.totalorder %s87, %s89
      %p93 = scmp.eq.s32.totalorder %s27, 0
      %p94 = por %p92, %p93
      %p95 = scmp.ne.s32.totalorder %s87, %s89
      %p96 = scmp.eq.s32.totalorder %s32, 1
      %p97 = por %p95, %p96
      %p98 = scmp.ne.s32.totalorder %s89, %s90
      %p99 = scmp.eq.s32.totalorder %s32, 0
      %p100 = por %p98, %p99
      %p101 = scmp.ne.s32.totalorder %s89, %s90
      %p102 = scmp.eq.s32.totalorder %s33, 1
      %p103 = por %p101, %p102
      %p105 = scmp.ne.s32.totalorder %s90, %s104
      %p106 = scmp.eq.s32.totalorder %s33, 0
      %p107 = por %p105, %p106
      %s109 = sadd.s32 %s108, 1
      %p112 = scmp.eq.s32.totalorder %s27, 1
      %p113 = scmp.ne.s32.totalorder %s108, %s110
      %p114 = scmp.eq.s32.totalorder %s27, 0
      %p115 = por %p113, %p114
      %p116 = scmp.ne.s32.totalorder %s108, %s110
      %p117 = scmp.eq.s32.totalorder %s32, 1
      %p118 = por %p116, %p117
      %p119 = scmp.ne.s32.totalorder %s110, %s111
      %p120 = scmp.eq.s32.totalorder %s32, 0
      %p121 = por %p119, %p120
      %p122 = scmp.ne.s32.totalorder %s110, %s111
      %p123 = scmp.eq.s32.totalorder %s33, 1
      %p124 = por %p122, %p123
      %p126 = scmp.ne.s32.totalorder %s111, %s125
      %p127 = scmp.eq.s32.totalorder %s33, 0
      %p128 = por %p126, %p127
      %s130 = sadd.s32 %s129, 1
      %p133 = scmp.eq.s32.totalorder %s27, 1
      %p134 = scmp.ne.s32.totalorder %s129, %s131
      %p135 = scmp.eq.s32.totalorder %s27, 0
      %p136 = por %p134, %p135
      %p137 = scmp.ne.s32.totalorder %s129, %s131
      %p138 = scmp.eq.s32.totalorder %s32, 1
      %p139 = por %p137, %p138
      %p140 = scmp.ne.s32.totalorder %s131, %s132
      %p141 = scmp.eq.s32.totalorder %s32, 0
      %p142 = por %p140, %p141
      %p143 = scmp.ne.s32.totalorder %s131, %s132
      %p144 = scmp.eq.s32.totalorder %s33, 1
      %p145 = por %p143, %p144
      %p147 = scmp.ne.s32.totalorder %s132, %s146
      %p148 = scmp.eq.s32.totalorder %s33, 0
      %p149 = por %p147, %p148
      %s151 = sadd.s32 %s150, 1
      %p154 = scmp.eq.s32.totalorder %s27, 1
      %p155 = scmp.ne.s32.totalorder %s150, %s152
      %p156 = scmp.eq.s32.totalorder %s27, 0
      %p157 = por %p155, %p156
      %p158 = scmp.ne.s32.totalorder %s150, %s152
      %p159 = scmp.eq.s32.totalorder %s32, 1
      %p160 = por %p158, %p159
      %p161 = scmp.ne.s32.totalorder %s152, %s153
      %p162 = scmp.eq.s32.totalorder %s32, 0
      %p163 = por %p161, %p162
      %p164 = scmp.ne.s32.totalorder %s152, %s153
      %p165 = scmp.eq.s32.totalorder %s33, 1
      %p166 = por %p164, %p165
      %p168 = scmp.ne.s32.totalorder %s153, %s167
      %p169 = scmp.eq.s32.totalorder %s33, 0
      %p170 = por %p168, %p169
      %s172 = sadd.s32 %s171, 1
      %p175 = scmp.eq.s32.totalorder %s27, 1
      %p176 = scmp.ne.s32.totalorder %s171, %s173
      %p177 = scmp.eq.s32.totalorder %s27, 0
      %p178 = por %p176, %p177
      %p179 = scmp.ne.s32.totalorder %s171, %s173
      %p180 = scmp.eq.s32.totalorder %s32, 1
      %p181 = por %p179, %p180
      %p182 = scmp.ne.s32.totalorder %s173, %s174
      %p183 = scmp.eq.s32.totalorder %s32, 0
      %p184 = por %p182, %p183
      %p185 = scmp.ne.s32.totalorder %s173, %s174
      %p186 = scmp.eq.s32.totalorder %s33, 1
      %p187 = por %p185, %p186
      %p189 = scmp.ne.s32.totalorder %s174, %s188
      %p190 = scmp.eq.s32.totalorder %s33, 0
      %p191 = por %p189, %p190
      %s193 = sadd.s32 %s192, 1
      %p196 = scmp.eq.s32.totalorder %s27, 1
      %p197 = scmp.ne.s32.totalorder %s192, %s194
      %p198 = scmp.eq.s32.totalorder %s27, 0
      %p199 = por %p197, %p198
      %p200 = scmp.ne.s32.totalorder %s192, %s194
      %p201 = scmp.eq.s32.totalorder %s32, 1
      %p202 = por %p200, %p201
      %p203 = scmp.ne.s32.totalorder %s194, %s195
      %p204 = scmp.eq.s32.totalorder %s32, 0
      %p205 = por %p203, %p204
      %p206 = scmp.ne.s32.totalorder %s194, %s195
      %p207 = scmp.eq.s32.totalorder %s33, 1
      %p208 = por %p206, %p207
      %p210 = scmp.ne.s32.totalorder %s195, %s209
      %p211 = scmp.eq.s32.totalorder %s33, 0
      %p212 = por %p210, %p211
      %s214 = sadd.s32 %s213, 1
      %p217 = scmp.eq.s32.totalorder %s27, 1
      %p218 = scmp.ne.s32.totalorder %s213, %s215
      %p219 = scmp.eq.s32.totalorder %s27, 0
      %p220 = por %p218, %p219
      %p221 = scmp.ne.s32.totalorder %s213, %s215
      %p222 = scmp.eq.s32.totalorder %s32, 1
      %p223 = por %p221, %p222
      %p224 = scmp.ne.s32.totalorder %s215, %s216
      %p225 = scmp.eq.s32.totalorder %s32, 0
      %p226 = por %p224, %p225
      %p227 = scmp.ne.s32.totalorder %s215, %s216
      %p228 = scmp.eq.s32.totalorder %s33, 1
      %p229 = por %p227, %p228
      %p231 = scmp.ne.s32.totalorder %s216, %s230
      %p232 = scmp.eq.s32.totalorder %s33, 0
      %p233 = por %p231, %p232
      %s235 = sadd.s32 %s234, 1
      %p238 = scmp.eq.s32.totalorder %s27, 1
      %p239 = scmp.ne.s32.totalorder %s234, %s236
      %p240 = scmp.eq.s32.totalorder %s27, 0
      %p241 = por %p239, %p240
      %p242 = scmp.ne.s32.totalorder %s234, %s236
      %p243 = scmp.eq.s32.totalorder %s32, 1
      %p244 = por %p242, %p243
      %p245 = scmp.ne.s32.totalorder %s236, %s237
      %p246 = scmp.eq.s32.totalorder %s32, 0
      %p247 = por %p245, %p246
      %p248 = scmp.ne.s32.totalorder %s236, %s237
      %p249 = scmp.eq.s32.totalorder %s33, 1
      %p250 = por %p248, %p249
      %p252 = scmp.ne.s32.totalorder %s237, %s251
      %p253 = scmp.eq.s32.totalorder %s33, 0
      %p254 = por %p252, %p253
      %s256 = sadd.s32 %s255, 1
      %p259 = scmp.eq.s32.totalorder %s27, 1
      %p260 = scmp.ne.s32.totalorder %s255, %s257
      %p261 = scmp.eq.s32.totalorder %s27, 0
      %p262 = por %p260, %p261
      %p263 = scmp.ne.s32.totalorder %s255, %s257
      %p264 = scmp.eq.s32.totalorder %s32, 1
      %p265 = por %p263, %p264
      %p266 = scmp.ne.s32.totalorder %s257, %s258
      %p267 = scmp.eq.s32.totalorder %s32, 0
      %p268 = por %p266, %p267
      %p269 = scmp.ne.s32.totalorder %s257, %s258
      %p270 = scmp.eq.s32.totalorder %s33, 1
      %p271 = por %p269, %p270
      %p273 = scmp.ne.s32.totalorder %s258, %s272
      %p274 = scmp.eq.s32.totalorder %s33, 0
      %p275 = por %p273, %p274
      %s277 = sadd.s32 %s276, 1
      %p280 = scmp.eq.s32.totalorder %s27, 1
      %p281 = scmp.ne.s32.totalorder %s276, %s278
      %p282 = scmp.eq.s32.totalorder %s27, 0
      %p283 = por %p281, %p282
      %p284 = scmp.ne.s32.totalorder %s276, %s278
      %p285 = scmp.eq.s32.totalorder %s32, 1
      %p286 = por %p284, %p285
      %p287 = scmp.ne.s32.totalorder %s278, %s279
      %p288 = scmp.eq.s32.totalorder %s32, 0
      %p289 = por %p287, %p288
      %p290 = scmp.ne.s32.totalorder %s278, %s279
      %p291 = scmp.eq.s32.totalorder %s33, 1
      %p292 = por %p290, %p291
      %p294 = scmp.ne.s32.totalorder %s279, %s293
      %p295 = scmp.eq.s32.totalorder %s33, 0
      %p296 = por %p294, %p295
      %s298 = sadd.s32 %s297, 1
      %p301 = scmp.eq.s32.totalorder %s27, 1
      %p302 = scmp.ne.s32.totalorder %s297, %s299
      %p303 = scmp.eq.s32.totalorder %s27, 0
      %p304 = por %p302, %p303
      %p305 = scmp.ne.s32.totalorder %s297, %s299
      %p306 = scmp.eq.s32.totalorder %s32, 1
      %p307 = por %p305, %p306
      %p308 = scmp.ne.s32.totalorder %s299, %s300
      %p309 = scmp.eq.s32.totalorder %s32, 0
      %p310 = por %p308, %p309
      %p311 = scmp.ne.s32.totalorder %s299, %s300
      %p312 = scmp.eq.s32.totalorder %s33, 1
      %p313 = por %p311, %p312
      %p315 = scmp.ne.s32.totalorder %s300, %s314
      %p316 = scmp.eq.s32.totalorder %s33, 0
      %p317 = por %p315, %p316
      %s319 = sadd.s32 %s318, 1
      %p322 = scmp.eq.s32.totalorder %s27, 1
      %p323 = scmp.ne.s32.totalorder %s318, %s320
      %p324 = scmp.eq.s32.totalorder %s27, 0
      %p325 = por %p323, %p324
      %p326 = scmp.ne.s32.totalorder %s318, %s320
      %p327 = scmp.eq.s32.totalorder %s32, 1
      %p328 = por %p326, %p327
      %p329 = scmp.ne.s32.totalorder %s320, %s321
      %p330 = scmp.eq.s32.totalorder %s32, 0
      %p331 = por %p329, %p330
      %p332 = scmp.ne.s32.totalorder %s320, %s321
      %p333 = scmp.eq.s32.totalorder %s33, 1
      %p334 = por %p332, %p333
      %p336 = scmp.ne.s32.totalorder %s321, %s335
      %p337 = scmp.eq.s32.totalorder %s33, 0
      %p338 = por %p336, %p337
      %s340 = sadd.s32 %s339, 1
      %p343 = scmp.eq.s32.totalorder %s27, 1
      %p344 = scmp.ne.s32.totalorder %s339, %s341
      %p345 = scmp.eq.s32.totalorder %s27, 0
      %p346 = por %p344, %p345
      %p347 = scmp.ne.s32.totalorder %s339, %s341
      %p348 = scmp.eq.s32.totalorder %s32, 1
      %p349 = por %p347, %p348
      %p350 = scmp.ne.s32.totalorder %s341, %s342
      %p351 = scmp.eq.s32.totalorder %s32, 0
      %p352 = por %p350, %p351
      %p353 = scmp.ne.s32.totalorder %s341, %s342
      %p354 = scmp.eq.s32.totalorder %s33, 1
      %p355 = por %p353, %p354
      %p357 = scmp.ne.s32.totalorder %s342, %s356
      %p358 = scmp.eq.s32.totalorder %s33, 0
      %p359 = por %p357, %p358
      %s361 = sadd.s32 %s360, 1
      %p364 = scmp.eq.s32.totalorder %s27, 1
      %p365 = scmp.ne.s32.totalorder %s360, %s362
      %p366 = scmp.eq.s32.totalorder %s27, 0
      %p367 = por %p365, %p366
      %p368 = scmp.ne.s32.totalorder %s360, %s362
      %p369 = scmp.eq.s32.totalorder %s32, 1
      %p370 = por %p368, %p369
      %p371 = scmp.ne.s32.totalorder %s362, %s363
      %p372 = scmp.eq.s32.totalorder %s32, 0
      %p373 = por %p371, %p372
      %p374 = scmp.ne.s32.totalorder %s362, %s363
      %p375 = scmp.eq.s32.totalorder %s33, 1
      %p376 = por %p374, %p375
      %p378 = scmp.ne.s32.totalorder %s363, %s377
      %p379 = scmp.eq.s32.totalorder %s33, 0
      %p380 = por %p378, %p379
      %s382 = sadd.s32 %s381, 1
      %p385 = scmp.eq.s32.totalorder %s27, 1
      %p386 = scmp.ne.s32.totalorder %s381, %s383
      %p387 = scmp.eq.s32.totalorder %s27, 0
      %p388 = por %p386, %p387
      %p389 = scmp.ne.s32.totalorder %s381, %s383
      %p390 = scmp.eq.s32.totalorder %s32, 1
      %p391 = por %p389, %p390
      %p392 = scmp.ne.s32.totalorder %s383, %s384
      %p393 = scmp.eq.s32.totalorder %s32, 0
      %p394 = por %p392, %p393
      %p395 = scmp.ne.s32.totalorder %s383, %s384
      %p396 = scmp.eq.s32.totalorder %s33, 1
      %p397 = por %p395, %p396
      %p399 = scmp.ne.s32.totalorder %s384, %s398
      %p400 = scmp.eq.s32.totalorder %s33, 0
      %p401 = por %p399, %p400
      %s403 = sadd.s32 %s402, 1
      %p406 = scmp.eq.s32.totalorder %s27, 1
      %p407 = scmp.ne.s32.totalorder %s402, %s404
      %p408 = scmp.eq.s32.totalorder %s27, 0
      %p409 = por %p407, %p408
      %p410 = scmp.ne.s32.totalorder %s402, %s404
      %p411 = scmp.eq.s32.totalorder %s32, 1
      %p412 = por %p410, %p411
      %p413 = scmp.ne.s32.totalorder %s404, %s405
      %p414 = scmp.eq.s32.totalorder %s32, 0
      %p415 = por %p413, %p414
      %p416 = scmp.ne.s32.totalorder %s404, %s405
      %p417 = scmp.eq.s32.totalorder %s33, 1
      %p418 = por %p416, %p417
      %p420 = scmp.ne.s32.totalorder %s405, %s419
      %p421 = scmp.eq.s32.totalorder %s33, 0
      %p422 = por %p420, %p421
      %s423 = ssub.s32 %s27, %s34
      %p424 = scmp.eq.s32.totalorder %s423, 0
      %s426 = sadd.s32 %s425, 1
      %s427 = scalar_select %p424, %s425, %s426
      %p430 = pneg %p424
      %p431 = scmp.eq.s32.totalorder %s27, 1
      %p432 = por %p430, %p431
      %p433 = scmp.ne.s32.totalorder %s425, %s428
      %p434 = scmp.eq.s32.totalorder %s27, 0
      %p435 = por %p433, %p434
      %p436 = scmp.ne.s32.totalorder %s425, %s428
      %p437 = scmp.eq.s32.totalorder %s32, 1
      %p438 = por %p436, %p437
      %p439 = scmp.ne.s32.totalorder %s428, %s429
      %p440 = scmp.eq.s32.totalorder %s32, 0
      %p441 = por %p439, %p440
      %p442 = scmp.ne.s32.totalorder %s428, %s429
      %p443 = scmp.eq.s32.totalorder %s33, 1
      %p444 = por %p442, %p443
      %p446 = scmp.ne.s32.totalorder %s429, %s445
      %p447 = scmp.eq.s32.totalorder %s33, 0
      %p448 = por %p446, %p447
      %p449 = scmp.le.s32.totalorder 1, %s27
      %p450 = scmp.lt.s32.totalorder %s27, 3
      %p451 = pnand %p449, %p450
      %p452 = pneg %p451
      // Predicated region
      $region9: #{mrc_for_cpc_forward.1} parent=5 // pred_check
        _
      $region10: #{mrc_for_cpc_forward.1} parent=5 // pred_check_branch
        %454 = sbr.rel (%p451) target = $region12
      $region11: #{mrc_for_cpc_forward.1} parent=5 // pred_region
        %s455 = ssub.s32 %s27, 1
        // Predicated region
        $region13: #{mrc_for_cpc_forward.1} parent=11 // pred_check
          %p456 = pneg %p100
        $region14: #{mrc_for_cpc_forward.1} parent=11 // pred_check_branch
          %458 = sbr.rel (%p456) target = $region16
        $region15: #{mrc_for_cpc_forward.1} parent=11 // pred_region
          _
        $region16: #{mrc_for_cpc_forward.1} parent=11 // pred_fallthru
          _
        // Predicated region
        $region17: #{mrc_for_cpc_forward.1} parent=11 // pred_check
          %p459 = pneg %p121
        $region18: #{mrc_for_cpc_forward.1} parent=11 // pred_check_branch
          %461 = sbr.rel (%p459) target = $region20
        $region19: #{mrc_for_cpc_forward.1} parent=11 // pred_region
          _
        $region20: #{mrc_for_cpc_forward.1} parent=11 // pred_fallthru
          _
        // Predicated region
        $region21: #{mrc_for_cpc_forward.1} parent=11 // pred_check
          %p462 = pneg %p142
        $region22: #{mrc_for_cpc_forward.1} parent=11 // pred_check_branch
          %464 = sbr.rel (%p462) target = $region24
        $region23: #{mrc_for_cpc_forward.1} parent=11 // pred_region
          _
        $region24: #{mrc_for_cpc_forward.1} parent=11 // pred_fallthru
          _
        // Predicated region
        $region25: #{mrc_for_cpc_forward.1} parent=11 // pred_check
          %p465 = pneg %p163
        $region26: #{mrc_for_cpc_forward.1} parent=11 // pred_check_branch
          %467 = sbr.rel (%p465) target = $region28
        $region27: #{mrc_for_cpc_forward.1} parent=11 // pred_region
          _
        $region28: #{mrc_for_cpc_forward.1} parent=11 // pred_fallthru
          _
        // Predicated region
        $region29: #{mrc_for_cpc_forward.1} parent=11 // pred_check
          %p468 = pneg %p184
        $region30: #{mrc_for_cpc_forward.1} parent=11 // pred_check_branch
          %470 = sbr.rel (%p468) target = $region32
        $region31: #{mrc_for_cpc_forward.1} parent=11 // pred_region
          _
        $region32: #{mrc_for_cpc_forward.1} parent=11 // pred_fallthru
          _
        // Predicated region
        $region33: #{mrc_for_cpc_forward.1} parent=11 // pred_check
          %p471 = pneg %p205
        $region34: #{mrc_for_cpc_forward.1} parent=11 // pred_check_branch
          %473 = sbr.rel (%p471) target = $region36
        $region35: #{mrc_for_cpc_forward.1} parent=11 // pred_region
          _
        $region36: #{mrc_for_cpc_forward.1} parent=11 // pred_fallthru
          _
        // Predicated region
        $region37: #{mrc_for_cpc_forward.1} parent=11 // pred_check
          %p474 = pneg %p226
        $region38: #{mrc_for_cpc_forward.1} parent=11 // pred_check_branch
          %476 = sbr.rel (%p474) target = $region40
        $region39: #{mrc_for_cpc_forward.1} parent=11 // pred_region
          _
        $region40: #{mrc_for_cpc_forward.1} parent=11 // pred_fallthru
          _
        // Predicated region
        $region41: #{mrc_for_cpc_forward.1} parent=11 // pred_check
          %p477 = pneg %p247
        $region42: #{mrc_for_cpc_forward.1} parent=11 // pred_check_branch
          %479 = sbr.rel (%p477) target = $region44
        $region43: #{mrc_for_cpc_forward.1} parent=11 // pred_region
          _
        $region44: #{mrc_for_cpc_forward.1} parent=11 // pred_fallthru
          _
        // Predicated region
        $region45: #{mrc_for_cpc_forward.1} parent=11 // pred_check
          %p480 = pneg %p268
        $region46: #{mrc_for_cpc_forward.1} parent=11 // pred_check_branch
          %482 = sbr.rel (%p480) target = $region48
        $region47: #{mrc_for_cpc_forward.1} parent=11 // pred_region
          _
        $region48: #{mrc_for_cpc_forward.1} parent=11 // pred_fallthru
          _
        // Predicated region
        $region49: #{mrc_for_cpc_forward.1} parent=11 // pred_check
          %p483 = pneg %p289
        $region50: #{mrc_for_cpc_forward.1} parent=11 // pred_check_branch
          %485 = sbr.rel (%p483) target = $region52
        $region51: #{mrc_for_cpc_forward.1} parent=11 // pred_region
          _
        $region52: #{mrc_for_cpc_forward.1} parent=11 // pred_fallthru
          _
        // Predicated region
        $region53: #{mrc_for_cpc_forward.1} parent=11 // pred_check
          %p486 = pneg %p310
        $region54: #{mrc_for_cpc_forward.1} parent=11 // pred_check_branch
          %488 = sbr.rel (%p486) target = $region56
        $region55: #{mrc_for_cpc_forward.1} parent=11 // pred_region
          _
        $region56: #{mrc_for_cpc_forward.1} parent=11 // pred_fallthru
          _
        // Predicated region
        $region57: #{mrc_for_cpc_forward.1} parent=11 // pred_check
          %p489 = pneg %p331
        $region58: #{mrc_for_cpc_forward.1} parent=11 // pred_check_branch
          %491 = sbr.rel (%p489) target = $region60
        $region59: #{mrc_for_cpc_forward.1} parent=11 // pred_region
          _
        $region60: #{mrc_for_cpc_forward.1} parent=11 // pred_fallthru
          _
        // Predicated region
        $region61: #{mrc_for_cpc_forward.1} parent=11 // pred_check
          %p492 = pneg %p352
        $region62: #{mrc_for_cpc_forward.1} parent=11 // pred_check_branch
          %494 = sbr.rel (%p492) target = $region64
        $region63: #{mrc_for_cpc_forward.1} parent=11 // pred_region
          _
        $region64: #{mrc_for_cpc_forward.1} parent=11 // pred_fallthru
          _
        // Predicated region
        $region65: #{mrc_for_cpc_forward.1} parent=11 // pred_check
          %p495 = pneg %p373
        $region66: #{mrc_for_cpc_forward.1} parent=11 // pred_check_branch
          %497 = sbr.rel (%p495) target = $region68
        $region67: #{mrc_for_cpc_forward.1} parent=11 // pred_region
          _
        $region68: #{mrc_for_cpc_forward.1} parent=11 // pred_fallthru
          _
        // Predicated region
        $region69: #{mrc_for_cpc_forward.1} parent=11 // pred_check
          %p498 = pneg %p394
        $region70: #{mrc_for_cpc_forward.1} parent=11 // pred_check_branch
          %500 = sbr.rel (%p498) target = $region72
        $region71: #{mrc_for_cpc_forward.1} parent=11 // pred_region
          _
        $region72: #{mrc_for_cpc_forward.1} parent=11 // pred_fallthru
          _
        // Predicated region
        $region73: #{mrc_for_cpc_forward.1} parent=11 // pred_check
          %p501 = pneg %p415
        $region74: #{mrc_for_cpc_forward.1} parent=11 // pred_check_branch
          %503 = sbr.rel (%p501) target = $region76
        $region75: #{mrc_for_cpc_forward.1} parent=11 // pred_region
          _
        $region76: #{mrc_for_cpc_forward.1} parent=11 // pred_fallthru
          _
      $region12: #{mrc_for_cpc_forward.1} parent=5 // pred_fallthru
        _
      %p504 = scmp.lt.s32.totalorder %s27, 2
      // Predicated region
      $region77: #{mrc_for_cpc_forward.1} parent=5 // pred_check
        %p505 = pneg %p504
      $region78: #{mrc_for_cpc_forward.1} parent=5 // pred_check_branch
        %507 = sbr.rel (%p505) target = $region80
      $region79: #{mrc_for_cpc_forward.1} parent=5 // pred_region
        // Predicated region
        $region81: #{mrc_for_cpc_forward.1} parent=79 // pred_check
          %p508 = pneg %p47
        $region82: #{mrc_for_cpc_forward.1} parent=79 // pred_check_branch
          %510 = sbr.rel (%p508) target = $region84
        $region83: #{mrc_for_cpc_forward.1} parent=79 // pred_region
          %p511 = scmp.lt.s32.totalorder %s27, 1
          %s512 = scalar_select %p511, %s27, 1
          %s513 = smul.addr %s512, 8
          %s514 = scalar_lea.vmem %s0, %s513
        $region84: #{mrc_for_cpc_forward.1} parent=79 // pred_fallthru
          _
        // Predicated region
        $region85: #{mrc_for_cpc_forward.1} parent=79 // pred_check
          %p515 = pneg %p73
        $region86: #{mrc_for_cpc_forward.1} parent=79 // pred_check_branch
          %517 = sbr.rel (%p515) target = $region88
        $region87: #{mrc_for_cpc_forward.1} parent=79 // pred_region
          %p518 = scmp.lt.s32.totalorder %s27, 1
          %s519 = scalar_select %p518, %s27, 1
          %s520 = scalar_lea.vmem %s1, %s519
        $region88: #{mrc_for_cpc_forward.1} parent=79 // pred_fallthru
          _
      $region80: #{mrc_for_cpc_forward.1} parent=5 // pred_fallthru
        _
      %p521 = scmp.le.s32.totalorder 1, %s27
      %p522 = scmp.lt.s32.totalorder %s27, 3
      %p523 = pnand %p521, %p522
      %p524 = pneg %p523
      // Predicated region
      $region89: #{mrc_for_cpc_forward.1} parent=5 // pred_check
        _
      $region90: #{mrc_for_cpc_forward.1} parent=5 // pred_check_branch
        %526 = sbr.rel (%p523) target = $region92
      $region91: #{mrc_for_cpc_forward.1} parent=5 // pred_region
        %s527 = ssub.s32 %s27, 1
        %p528 = scmp.lt.s32.totalorder %s32, 1
        %s529 = scalar_select %p528, %s32, 1
        %s530 = smul.addr %s529, 8
        %s531 = scalar_lea.vmem %s0, %s530
        %p532 = pneg %p53
        %p533 = pneg %p50
        %p534 = scmp.lt.s32.totalorder %s32, 1
        %s535 = scalar_select %p534, %s32, 1
        %s536 = scalar_lea.vmem %s1, %s535
        %p537 = pneg %p79
        %p538 = pneg %p76
        %p539 = pneg %p100
        %p540 = pneg %p97
        %p541 = pneg %p121
        %p542 = pneg %p118
        %p543 = pneg %p142
        %p544 = pneg %p139
        %p545 = pneg %p163
        %p546 = pneg %p160
        %p547 = pneg %p184
        %p548 = pneg %p181
        %p549 = pneg %p205
        %p550 = pneg %p202
        %p551 = pneg %p226
        %p552 = pneg %p223
        %p553 = pneg %p247
        %p554 = pneg %p244
        %p555 = pneg %p268
        %p556 = pneg %p265
        %p557 = pneg %p289
        %p558 = pneg %p286
        %p559 = pneg %p310
        %p560 = pneg %p307
        %p561 = pneg %p331
        %p562 = pneg %p328
        %p563 = pneg %p352
        %p564 = pneg %p349
        %p565 = pneg %p373
        %p566 = pneg %p370
        %p567 = pneg %p394
        %p568 = pneg %p391
        %p569 = pneg %p415
        %p570 = pneg %p412
        %p571 = pneg %p441
        %p572 = pneg %p438
        %s573 = sand.u32 %s428, 1
        %s574 = scalar_lea.sflag [#allocation3], %s573
        %s575 = sand.u32 %s428, 1
        %s576 = scalar_lea.vmem [#allocation2], %s575
        %p577 = scmp.lt.s32.totalorder %s32, 1
        %s578 = scalar_select %p577, %s32, 1
        %s579 = smul.addr %s578, 8
        %s580 = scalar_lea.vmem %s0, %s579
        %p581 = scmp.lt.s32.totalorder %s32, 1
        %s582 = scalar_select %p581, %s32, 1
        %s583 = scalar_lea.vmem %s1, %s582
        %v585 = vld [vmem:[%s580] sm:$0xff]
        %v586 = vld [vmem:[%s2] sm:$0x1]
        %v587 = vld [vmem:[%s3] sm:$0x1]
        %vm588 = vcmask 261120
        %v589 = vsel %vm588, %v585, 0.0
        %590 = vadd.xlane.f32.xlu0 %v589
        %v591 = vpop.xlane.xlu0 %590
        %v592 = vrcp.pop 32.0
        %v593 = vmul.f32 %v591, %v592
        %v594 = vsub.f32 %v585, %v593
        %v595 = vmul.f32 %v594, %v594
        %v596 = vsel %vm588, %v595, 0.0
        %597 = vadd.xlane.f32.xlu0 %v596
        %v598 = vpop.xlane.xlu0 %597
        %v599 = vmul.f32 %v598, %v592
        %v600 = vadd.f32 %v599, 1e-07
        %v601 = vrsqrt.pop %v600
        %v602 = vmul.f32 %v594, %v601
        %v604 = vlaneseq
        %v605 = vshrl.u32 %v604, 7
        %v606 = vsub.s32 0, %v605
        %v607 = vrot.slane %v586, %v606
        %v609 = vmul.f32 %v602, %v607
        %v611 = vlaneseq
        %v612 = vshrl.u32 %v611, 7
        %v613 = vsub.s32 0, %v612
        %v614 = vrot.slane %v587, %v613
        %v616 = vadd.f32 %v609, %v614
        %v617 = vld [vmem:[%s583] sm:$0x1]
        %v619 = vlaneseq
        %v620 = vshrl.u32 %v619, 7
        %v621 = vsub.s32 0, %v620
        %v622 = vrot.slane %v617, %v621
        %v624 = vpack.c.bf16 %v616, %v616
        %v625 = vld [vmem:[%s4] sm:$0xf]
        %v626 = vld [vmem:[%s4 + $0x4] sm:$0xf]
        %v627 = vld [vmem:[%s4 + $0x8] sm:$0xf]
        %v628 = vld [vmem:[%s4 + $0xc] sm:$0xf]
        %v629 = vld [vmem:[%s4 + $0x10] sm:$0xf]
        %v630 = vld [vmem:[%s4 + $0x14] sm:$0xf]
        %v631 = vld [vmem:[%s4 + $0x18] sm:$0xf]
        %v632 = vld [vmem:[%s4 + $0x1c] sm:$0xf]
        %v633 = vld [vmem:[%s4 + $0x20] sm:$0xf]
        %v634 = vld [vmem:[%s4 + $0x24] sm:$0xf]
        %v635 = vld [vmem:[%s4 + $0x28] sm:$0xf]
        %v636 = vld [vmem:[%s4 + $0x2c] sm:$0xf]
        %v637 = vld [vmem:[%s4 + $0x30] sm:$0xf]
        %v638 = vld [vmem:[%s4 + $0x34] sm:$0xf]
        %v639 = vld [vmem:[%s4 + $0x38] sm:$0xf]
        %v640 = vld [vmem:[%s4 + $0x3c] sm:$0xf]
        %v641 = vld [vmem:[%s5] sm:$0x1]
        %v642 = vld [vmem:[%s5 + $0x1] sm:$0x1]
        %v643 = vld [vmem:[%s5 + $0x2] sm:$0x1]
        %v644 = vld [vmem:[%s5 + $0x3] sm:$0x1]
        %v649 = vlaneseq
        %v650 = vshrl.u32 %v649, 7
        %v651 = vsub.s32 0, %v650
        %v652 = vrot.slane %v641, %v651
        %v653 = vlaneseq
        %v654 = vshrl.u32 %v653, 7
        %v655 = vsub.s32 0, %v654
        %v656 = vrot.slane %v642, %v655
        %v657 = vlaneseq
        %v658 = vshrl.u32 %v657, 7
        %v659 = vsub.s32 0, %v658
        %v660 = vrot.slane %v643, %v659
        %v661 = vlaneseq
        %v662 = vshrl.u32 %v661, 7
        %v663 = vsub.s32 0, %v662
        %v664 = vrot.slane %v644, %v663
        %v673 = vunpack.c.l.b16 %v625
        %v674 = vunpack.c.l.b16 %v626
        %v675 = vunpack.c.l.b16 %v627
        %v676 = vunpack.c.l.b16 %v628
        %v677 = vpack.c.b16 %v674, %v673
        %v678 = vpack.c.b16 %v676, %v675
        %v682 = vsel %vm588, %v624, 0
        %684 = vmatprep.subr.bf16.mxu0 0
        %685 = vmatpush1.bf16.msra.mxu0 %v677
        %686 = vmatprep.subr.bf16.mxu0 0
        %687 = vmatpush1.bf16.msra.mxu0 %v678
        %688 = vmatprep.subr.bf16.mxu0 0
        %689 = vmatpush1.bf16.msra.mxu0 0
        %690 = vmatprep.subr.bf16.mxu0 0
        %691 = vmatpush1.bf16.msra.mxu0 0
        %692 = vmatprep.subr.bf16.mxu0 0
        %693 = vmatpush1.bf16.msra.mxu0 0
        %694 = vmatprep.subr.bf16.mxu0 0
        %695 = vmatpush1.bf16.msra.mxu0 0
        %696 = vmatprep.subr.bf16.mxu0 0
        %697 = vmatpush1.bf16.msra.mxu0 0
        %698 = vmatprep.subr.bf16.mxu0 0
        %699 = vmatpush1.bf16.msra.mxu0 0
        %700 = vmatprep.subr.bf16.mxu0 0
        %701 = vmatpush1.bf16.msra.mxu0 0
        %702 = vmatprep.subr.bf16.mxu0 0
        %703 = vmatpush1.bf16.msra.mxu0 0
        %704 = vmatprep.subr.bf16.mxu0 0
        %705 = vmatpush1.bf16.msra.mxu0 0
        %706 = vmatprep.subr.bf16.mxu0 0
        %707 = vmatpush1.bf16.msra.mxu0 0
        %708 = vmatprep.subr.bf16.mxu0 0
        %709 = vmatpush1.bf16.msra.mxu0 0
        %710 = vmatprep.subr.bf16.mxu0 0
        %711 = vmatpush1.bf16.msra.mxu0 0
        %712 = vmatprep.subr.bf16.mxu0 0
        %713 = vmatpush1.bf16.msra.mxu0 0
        %714 = vmatprep.subr.bf16.mxu0 0
        %715 = vmatpush1.bf16.msra.mxu0 0
        %716 = vmatprep.mubr.bf16.mxu0 0
        %717 = vmatmul.mubr.bf16.gmra.mrb[0].mxu0 %v682
        %v718 = vpop.f32.mrb[0].mxu0
        %v719 = vadd.f32 %v652, %v718
        %v720 = vpop.f32.mrb[0].mxu0
        %v721 = vpop.f32.mrb[0].mxu0
        %v722 = vpop.f32.mrb[0].mxu0
        %723 = vdwg.mxu0
        %v728 = vunpack.c.l.b16 %v629
        %v729 = vunpack.c.l.b16 %v630
        %v730 = vunpack.c.l.b16 %v631
        %v731 = vunpack.c.l.b16 %v632
        %v732 = vpack.c.b16 %v729, %v728
        %v733 = vpack.c.b16 %v731, %v730
        %736 = vmatprep.subr.bf16.mxu0 0
        %737 = vmatpush1.bf16.msra.mxu0 %v732
        %738 = vmatprep.subr.bf16.mxu0 0
        %739 = vmatpush1.bf16.msra.mxu0 %v733
        %740 = vmatprep.subr.bf16.mxu0 0
        %741 = vmatpush1.bf16.msra.mxu0 0
        %742 = vmatprep.subr.bf16.mxu0 0
        %743 = vmatpush1.bf16.msra.mxu0 0
        %744 = vmatprep.subr.bf16.mxu0 0
        %745 = vmatpush1.bf16.msra.mxu0 0
        %746 = vmatprep.subr.bf16.mxu0 0
        %747 = vmatpush1.bf16.msra.mxu0 0
        %748 = vmatprep.subr.bf16.mxu0 0
        %749 = vmatpush1.bf16.msra.mxu0 0
        %750 = vmatprep.subr.bf16.mxu0 0
        %751 = vmatpush1.bf16.msra.mxu0 0
        %752 = vmatprep.subr.bf16.mxu0 0
        %753 = vmatpush1.bf16.msra.mxu0 0
        %754 = vmatprep.subr.bf16.mxu0 0
        %755 = vmatpush1.bf16.msra.mxu0 0
        %756 = vmatprep.subr.bf16.mxu0 0
        %757 = vmatpush1.bf16.msra.mxu0 0
        %758 = vmatprep.subr.bf16.mxu0 0
        %759 = vmatpush1.bf16.msra.mxu0 0
        %760 = vmatprep.subr.bf16.mxu0 0
        %761 = vmatpush1.bf16.msra.mxu0 0
        %762 = vmatprep.subr.bf16.mxu0 0
        %763 = vmatpush1.bf16.msra.mxu0 0
        %764 = vmatprep.subr.bf16.mxu0 0
        %765 = vmatpush1.bf16.msra.mxu0 0
        %766 = vmatprep.subr.bf16.mxu0 0
        %767 = vmatpush1.bf16.msra.mxu0 0
        %768 = vmatprep.mubr.bf16.mxu0 0
        %769 = vmatmul.mubr.bf16.gmra.mrb[0].mxu0 %v682
        %v770 = vpop.f32.mrb[0].mxu0
        %v771 = vadd.f32 %v656, %v770
        %v772 = vpop.f32.mrb[0].mxu0
        %v773 = vpop.f32.mrb[0].mxu0
        %v774 = vpop.f32.mrb[0].mxu0
        %775 = vdwg.mxu0
        %v780 = vunpack.c.l.b16 %v633
        %v781 = vunpack.c.l.b16 %v634
        %v782 = vunpack.c.l.b16 %v635
        %v783 = vunpack.c.l.b16 %v636
        %v784 = vpack.c.b16 %v781, %v780
        %v785 = vpack.c.b16 %v783, %v782
        %788 = vmatprep.subr.bf16.mxu0 0
        %789 = vmatpush1.bf16.msra.mxu0 %v784
        %790 = vmatprep.subr.bf16.mxu0 0
        %791 = vmatpush1.bf16.msra.mxu0 %v785
        %792 = vmatprep.subr.bf16.mxu0 0
        %793 = vmatpush1.bf16.msra.mxu0 0
        %794 = vmatprep.subr.bf16.mxu0 0
        %795 = vmatpush1.bf16.msra.mxu0 0
        %796 = vmatprep.subr.bf16.mxu0 0
        %797 = vmatpush1.bf16.msra.mxu0 0
        %798 = vmatprep.subr.bf16.mxu0 0
        %799 = vmatpush1.bf16.msra.mxu0 0
        %800 = vmatprep.subr.bf16.mxu0 0
        %801 = vmatpush1.bf16.msra.mxu0 0
        %802 = vmatprep.subr.bf16.mxu0 0
        %803 = vmatpush1.bf16.msra.mxu0 0
        %804 = vmatprep.subr.bf16.mxu0 0
        %805 = vmatpush1.bf16.msra.mxu0 0
        %806 = vmatprep.subr.bf16.mxu0 0
        %807 = vmatpush1.bf16.msra.mxu0 0
        %808 = vmatprep.subr.bf16.mxu0 0
        %809 = vmatpush1.bf16.msra.mxu0 0
        %810 = vmatprep.subr.bf16.mxu0 0
        %811 = vmatpush1.bf16.msra.mxu0 0
        %812 = vmatprep.subr.bf16.mxu0 0
        %813 = vmatpush1.bf16.msra.mxu0 0
        %814 = vmatprep.subr.bf16.mxu0 0
        %815 = vmatpush1.bf16.msra.mxu0 0
        %816 = vmatprep.subr.bf16.mxu0 0
        %817 = vmatpush1.bf16.msra.mxu0 0
        %818 = vmatprep.subr.bf16.mxu0 0
        %819 = vmatpush1.bf16.msra.mxu0 0
        %820 = vmatprep.mubr.bf16.mxu0 0
        %821 = vmatmul.mubr.bf16.gmra.mrb[0].mxu0 %v682
        %v822 = vpop.f32.mrb[0].mxu0
        %v823 = vadd.f32 %v660, %v822
        %v824 = vpop.f32.mrb[0].mxu0
        %v825 = vpop.f32.mrb[0].mxu0
        %v826 = vpop.f32.mrb[0].mxu0
        %827 = vdwg.mxu0
        %v832 = vunpack.c.l.b16 %v637
        %v833 = vunpack.c.l.b16 %v638
        %v834 = vunpack.c.l.b16 %v639
        %v835 = vunpack.c.l.b16 %v640
        %v836 = vpack.c.b16 %v833, %v832
        %v837 = vpack.c.b16 %v835, %v834
        %840 = vmatprep.subr.bf16.mxu0 0
        %841 = vmatpush1.bf16.msra.mxu0 %v836
        %842 = vmatprep.subr.bf16.mxu0 0
        %843 = vmatpush1.bf16.msra.mxu0 %v837
        %844 = vmatprep.subr.bf16.mxu0 0
        %845 = vmatpush1.bf16.msra.mxu0 0
        %846 = vmatprep.subr.bf16.mxu0 0
        %847 = vmatpush1.bf16.msra.mxu0 0
        %848 = vmatprep.subr.bf16.mxu0 0
        %849 = vmatpush1.bf16.msra.mxu0 0
        %850 = vmatprep.subr.bf16.mxu0 0
        %851 = vmatpush1.bf16.msra.mxu0 0
        %852 = vmatprep.subr.bf16.mxu0 0
        %853 = vmatpush1.bf16.msra.mxu0 0
        %854 = vmatprep.subr.bf16.mxu0 0
        %855 = vmatpush1.bf16.msra.mxu0 0
        %856 = vmatprep.subr.bf16.mxu0 0
        %857 = vmatpush1.bf16.msra.mxu0 0
        %858 = vmatprep.subr.bf16.mxu0 0
        %859 = vmatpush1.bf16.msra.mxu0 0
        %860 = vmatprep.subr.bf16.mxu0 0
        %861 = vmatpush1.bf16.msra.mxu0 0
        %862 = vmatprep.subr.bf16.mxu0 0
        %863 = vmatpush1.bf16.msra.mxu0 0
        %864 = vmatprep.subr.bf16.mxu0 0
        %865 = vmatpush1.bf16.msra.mxu0 0
        %866 = vmatprep.subr.bf16.mxu0 0
        %867 = vmatpush1.bf16.msra.mxu0 0
        %868 = vmatprep.subr.bf16.mxu0 0
        %869 = vmatpush1.bf16.msra.mxu0 0
        %870 = vmatprep.subr.bf16.mxu0 0
        %871 = vmatpush1.bf16.msra.mxu0 0
        %872 = vmatprep.mubr.bf16.mxu0 0
        %873 = vmatmul.mubr.bf16.gmra.mrb[0].mxu0 %v682
        %v874 = vpop.f32.mrb[0].mxu0
        %v875 = vadd.f32 %v664, %v874
        %v876 = vpop.f32.mrb[0].mxu0
        %v877 = vpop.f32.mrb[0].mxu0
        %v878 = vpop.f32.mrb[0].mxu0
        %879 = vdwg.mxu0
        %v880 = vmul.f32 %v719, 0.35355338
        %v881 = vmul.f32 %v771, 0.35355338
        %v882 = vmul.f32 %v823, 0.35355338
        %v883 = vmul.f32 %v875, 0.35355338
        %v884 = vpack.c.bf16 %v880, %v880
        %v885 = vpack.c.bf16 %v881, %v881
        %v886 = vpack.c.bf16 %v882, %v882
        %v887 = vpack.c.bf16 %v883, %v883
        %v888 = vpack.c.bf16 %v719, %v719
        %v889 = vpack.c.bf16 %v771, %v771
        %v890 = vpack.c.bf16 %v823, %v823
        %v891 = vpack.c.bf16 %v875, %v875
        %893 = vrot.lane.b32.xlu0 %v888, 120
        %v894 = vpop.permute.xlu0 %893
        %vm895 = vcmask 64512
        %v897 = vsel %vm895, %v884, 0
        %v900 = vsel %vm895, %v894, 0
        %902 = vmatprep.subr.bf16.mxu0 0
        %903 = vmatpush1.bf16.xpose.msra.mxu0 %v900
        %904 = vmatprep.subr.bf16.mxu0 0
        %905 = vmatpush1.bf16.xpose.msra.mxu0 0
        %906 = vmatprep.subr.bf16.mxu0 0
        %907 = vmatpush1.bf16.xpose.msra.mxu0 0
        %908 = vmatprep.subr.bf16.mxu0 0
        %909 = vmatpush1.bf16.xpose.msra.mxu0 0
        %910 = vmatprep.subr.bf16.mxu0 0
        %911 = vmatpush1.bf16.xpose.msra.mxu0 0
        %912 = vmatprep.subr.bf16.mxu0 0
        %913 = vmatpush1.bf16.xpose.msra.mxu0 0
        %914 = vmatprep.subr.bf16.mxu0 0
        %915 = vmatpush1.bf16.xpose.msra.mxu0 0
        %916 = vmatprep.subr.bf16.mxu0 0
        %917 = vmatpush1.bf16.xpose.msra.mxu0 0
        %918 = vmatprep.subr.bf16.mxu0 0
        %919 = vmatpush1.bf16.xpose.msra.mxu0 0
        %920 = vmatprep.subr.bf16.mxu0 0
        %921 = vmatpush1.bf16.xpose.msra.mxu0 0
        %922 = vmatprep.subr.bf16.mxu0 0
        %923 = vmatpush1.bf16.xpose.msra.mxu0 0
        %924 = vmatprep.subr.bf16.mxu0 0
        %925 = vmatpush1.bf16.xpose.msra.mxu0 0
        %926 = vmatprep.subr.bf16.mxu0 0
        %927 = vmatpush1.bf16.xpose.msra.mxu0 0
        %928 = vmatprep.subr.bf16.mxu0 0
        %929 = vmatpush1.bf16.xpose.msra.mxu0 0
        %930 = vmatprep.subr.bf16.mxu0 0
        %931 = vmatpush1.bf16.xpose.msra.mxu0 0
        %932 = vmatprep.subr.bf16.mxu0 0
        %933 = vmatpush1.bf16.xpose.msra.mxu0 0
        %934 = vmatprep.mubr.bf16.mxu0 0
        %935 = vmatmul.mubr.bf16.gmra.mrb[0].mxu0 %v897
        %v936 = vpop.f32.mrb[0].mxu0
        %v937 = vadd.f32 %v622, %v936
        %v938 = vpop.f32.mrb[0].mxu0
        %v939 = vpop.f32.mrb[0].mxu0
        %v940 = vpop.f32.mrb[0].mxu0
        %941 = vdwg.mxu0
        %943 = vrot.lane.b32.xlu0 %v889, 120
        %v944 = vpop.permute.xlu0 %943
        %v946 = vsel %vm895, %v885, 0
        %v949 = vsel %vm895, %v944, 0
        %951 = vmatprep.subr.bf16.mxu0 0
        %952 = vmatpush1.bf16.xpose.msra.mxu0 %v949
        %953 = vmatprep.subr.bf16.mxu0 0
        %954 = vmatpush1.bf16.xpose.msra.mxu0 0
        %955 = vmatprep.subr.bf16.mxu0 0
        %956 = vmatpush1.bf16.xpose.msra.mxu0 0
        %957 = vmatprep.subr.bf16.mxu0 0
        %958 = vmatpush1.bf16.xpose.msra.mxu0 0
        %959 = vmatprep.subr.bf16.mxu0 0
        %960 = vmatpush1.bf16.xpose.msra.mxu0 0
        %961 = vmatprep.subr.bf16.mxu0 0
        %962 = vmatpush1.bf16.xpose.msra.mxu0 0
        %963 = vmatprep.subr.bf16.mxu0 0
        %964 = vmatpush1.bf16.xpose.msra.mxu0 0
        %965 = vmatprep.subr.bf16.mxu0 0
        %966 = vmatpush1.bf16.xpose.msra.mxu0 0
        %967 = vmatprep.subr.bf16.mxu0 0
        %968 = vmatpush1.bf16.xpose.msra.mxu0 0
        %969 = vmatprep.subr.bf16.mxu0 0
        %970 = vmatpush1.bf16.xpose.msra.mxu0 0
        %971 = vmatprep.subr.bf16.mxu0 0
        %972 = vmatpush1.bf16.xpose.msra.mxu0 0
        %973 = vmatprep.subr.bf16.mxu0 0
        %974 = vmatpush1.bf16.xpose.msra.mxu0 0
        %975 = vmatprep.subr.bf16.mxu0 0
        %976 = vmatpush1.bf16.xpose.msra.mxu0 0
        %977 = vmatprep.subr.bf16.mxu0 0
        %978 = vmatpush1.bf16.xpose.msra.mxu0 0
        %979 = vmatprep.subr.bf16.mxu0 0
        %980 = vmatpush1.bf16.xpose.msra.mxu0 0
        %981 = vmatprep.subr.bf16.mxu0 0
        %982 = vmatpush1.bf16.xpose.msra.mxu0 0
        %983 = vmatprep.mubr.bf16.mxu0 0
        %984 = vmatmul.mubr.bf16.gmra.mrb[0].mxu0 %v946
        %v985 = vpop.f32.mrb[0].mxu0
        %v986 = vadd.f32 %v622, %v985
        %v987 = vpop.f32.mrb[0].mxu0
        %v988 = vpop.f32.mrb[0].mxu0
        %v989 = vpop.f32.mrb[0].mxu0
        %990 = vdwg.mxu0
        %992 = vrot.lane.b32.xlu0 %v890, 120
        %v993 = vpop.permute.xlu0 %992
        %v995 = vsel %vm895, %v886, 0
        %v998 = vsel %vm895, %v993, 0
        %1000 = vmatprep.subr.bf16.mxu0 0
        %1001 = vmatpush1.bf16.xpose.msra.mxu0 %v998
        %1002 = vmatprep.subr.bf16.mxu0 0
        %1003 = vmatpush1.bf16.xpose.msra.mxu0 0
        %1004 = vmatprep.subr.bf16.mxu0 0
        %1005 = vmatpush1.bf16.xpose.msra.mxu0 0
        %1006 = vmatprep.subr.bf16.mxu0 0
        %1007 = vmatpush1.bf16.xpose.msra.mxu0 0
        %1008 = vmatprep.subr.bf16.mxu0 0
        %1009 = vmatpush1.bf16.xpose.msra.mxu0 0
        %1010 = vmatprep.subr.bf16.mxu0 0
        %1011 = vmatpush1.bf16.xpose.msra.mxu0 0
        %1012 = vmatprep.subr.bf16.mxu0 0
        %1013 = vmatpush1.bf16.xpose.msra.mxu0 0
        %1014 = vmatprep.subr.bf16.mxu0 0
        %1015 = vmatpush1.bf16.xpose.msra.mxu0 0
        %1016 = vmatprep.subr.bf16.mxu0 0
        %1017 = vmatpush1.bf16.xpose.msra.mxu0 0
        %1018 = vmatprep.subr.bf16.mxu0 0
        %1019 = vmatpush1.bf16.xpose.msra.mxu0 0
        %1020 = vmatprep.subr.bf16.mxu0 0
        %1021 = vmatpush1.bf16.xpose.msra.mxu0 0
        %1022 = vmatprep.subr.bf16.mxu0 0
        %1023 = vmatpush1.bf16.xpose.msra.mxu0 0
        %1024 = vmatprep.subr.bf16.mxu0 0
        %1025 = vmatpush1.bf16.xpose.msra.mxu0 0
        %1026 = vmatprep.subr.bf16.mxu0 0
        %1027 = vmatpush1.bf16.xpose.msra.mxu0 0
        %1028 = vmatprep.subr.bf16.mxu0 0
        %1029 = vmatpush1.bf16.xpose.msra.mxu0 0
        %1030 = vmatprep.subr.bf16.mxu0 0
        %1031 = vmatpush1.bf16.xpose.msra.mxu0 0
        %1032 = vmatprep.mubr.bf16.mxu0 0
        %1033 = vmatmul.mubr.bf16.gmra.mrb[0].mxu0 %v995
        %v1034 = vpop.f32.mrb[0].mxu0
        %v1035 = vadd.f32 %v622, %v1034
        %v1036 = vpop.f32.mrb[0].mxu0
        %v1037 = vpop.f32.mrb[0].mxu0
        %v1038 = vpop.f32.mrb[0].mxu0
        %1039 = vdwg.mxu0
        %1041 = vrot.lane.b32.xlu0 %v891, 120
        %v1042 = vpop.permute.xlu0 %1041
        %v1044 = vsel %vm895, %v887, 0
        %v1047 = vsel %vm895, %v1042, 0
        %1049 = vmatprep.subr.bf16.mxu0 0
        %1050 = vmatpush1.bf16.xpose.msra.mxu0 %v1047
        %1051 = vmatprep.subr.bf16.mxu0 0
        %1052 = vmatpush1.bf16.xpose.msra.mxu0 0
        %1053 = vmatprep.subr.bf16.mxu0 0
        %1054 = vmatpush1.bf16.xpose.msra.mxu0 0
        %1055 = vmatprep.subr.bf16.mxu0 0
        %1056 = vmatpush1.bf16.xpose.msra.mxu0 0
        %1057 = vmatprep.subr.bf16.mxu0 0
        %1058 = vmatpush1.bf16.xpose.msra.mxu0 0
        %1059 = vmatprep.subr.bf16.mxu0 0
        %1060 = vmatpush1.bf16.xpose.msra.mxu0 0
        %1061 = vmatprep.subr.bf16.mxu0 0
        %1062 = vmatpush1.bf16.xpose.msra.mxu0 0
        %1063 = vmatprep.subr.bf16.mxu0 0
        %1064 = vmatpush1.bf16.xpose.msra.mxu0 0
        %1065 = vmatprep.subr.bf16.mxu0 0
        %1066 = vmatpush1.bf16.xpose.msra.mxu0 0
        %1067 = vmatprep.subr.bf16.mxu0 0
        %1068 = vmatpush1.bf16.xpose.msra.mxu0 0
        %1069 = vmatprep.subr.bf16.mxu0 0
        %1070 = vmatpush1.bf16.xpose.msra.mxu0 0
        %1071 = vmatprep.subr.bf16.mxu0 0
        %1072 = vmatpush1.bf16.xpose.msra.mxu0 0
        %1073 = vmatprep.subr.bf16.mxu0 0
        %1074 = vmatpush1.bf16.xpose.msra.mxu0 0
        %1075 = vmatprep.subr.bf16.mxu0 0
        %1076 = vmatpush1.bf16.xpose.msra.mxu0 0
        %1077 = vmatprep.subr.bf16.mxu0 0
        %1078 = vmatpush1.bf16.xpose.msra.mxu0 0
        %1079 = vmatprep.subr.bf16.mxu0 0
        %1080 = vmatpush1.bf16.xpose.msra.mxu0 0
        %1081 = vmatprep.mubr.bf16.mxu0 0
        %1082 = vmatmul.mubr.bf16.gmra.mrb[0].mxu0 %v1044
        %v1083 = vpop.f32.mrb[0].mxu0
        %v1084 = vadd.f32 %v622, %v1083
        %v1085 = vpop.f32.mrb[0].mxu0
        %v1086 = vpop.f32.mrb[0].mxu0
        %v1087 = vpop.f32.mrb[0].mxu0
        %1088 = vdwg.mxu0
        %v1089 = vsel %vm895, %v937, -inf
        %1090 = vmax.xlane.f32.xlu0 %v1089
        %v1091 = vpop.xlane.xlu0 %1090
        %v1092 = vsel %vm895, %v986, -inf
        %1093 = vmax.xlane.f32.xlu0 %v1092
        %v1094 = vpop.xlane.xlu0 %1093
        %v1095 = vsel %vm895, %v1035, -inf
        %1096 = vmax.xlane.f32.xlu0 %v1095
        %v1097 = vpop.xlane.xlu0 %1096
        %v1098 = vsel %vm895, %v1084, -inf
        %1099 = vmax.xlane.f32.xlu0 %v1098
        %v1100 = vpop.xlane.xlu0 %1099
        %v1101 = vsub.f32 %v937, %v1091
        %v1102 = vsub.f32 %v986, %v1094
        %v1103 = vsub.f32 %v1035, %v1097
        %v1104 = vsub.f32 %v1084, %v1100
        %v1105 = vmul.f32 %v1101, 1.442695
        %v1106 = vpow.pop %v1105
        %v1107 = vmul.f32 %v1102, 1.442695
        %v1108 = vpow.pop %v1107
        %v1109 = vmul.f32 %v1103, 1.442695
        %v1110 = vpow.pop %v1109
        %v1111 = vmul.f32 %v1104, 1.442695
        %v1112 = vpow.pop %v1111
        %v1113 = vsel %vm895, %v1106, 0.0
        %1114 = vadd.xlane.f32.xlu0 %v1113
        %v1115 = vpop.xlane.xlu0 %1114
        %v1116 = vsel %vm895, %v1108, 0.0
        %1117 = vadd.xlane.f32.xlu0 %v1116
        %v1118 = vpop.xlane.xlu0 %1117
        %v1119 = vsel %vm895, %v1110, 0.0
        %1120 = vadd.xlane.f32.xlu0 %v1119
        %v1121 = vpop.xlane.xlu0 %1120
        %v1122 = vsel %vm895, %v1112, 0.0
        %1123 = vadd.xlane.f32.xlu0 %v1122
        %v1124 = vpop.xlane.xlu0 %1123
        %v1125 = vrcp.pop %v1115
        %v1126 = vrcp.pop %v1118
        %v1127 = vrcp.pop %v1121
        %v1128 = vrcp.pop %v1124
        %v1129 = vmul.f32 %v1106, %v1125
        %v1130 = vmul.f32 %v1108, %v1126
        %v1131 = vmul.f32 %v1110, %v1127
        %v1132 = vmul.f32 %v1112, %v1128
        %v1133 = vpack.c.bf16 %v1129, %v1129
        %v1134 = vpack.c.bf16 %v1130, %v1130
        %v1135 = vpack.c.bf16 %v1131, %v1131
        %v1136 = vpack.c.bf16 %v1132, %v1132
        %1137 = vrot.lane.b32.xlu0 %v888, 112
        %v1138 = vpop.permute.xlu0 %1137
        %v1140 = vsel %vm895, %v1133, 0
        %vm1142 = vcmask 1043456
        %v1144 = vsel %vm1142, %v1138, 0
        %1146 = vmatprep.subr.bf16.mxu0 0
        %1147 = vmatpush1.bf16.msra.mxu0 %v1144
        %1148 = vmatprep.subr.bf16.mxu0 0
        %1149 = vmatpush1.bf16.msra.mxu0 0
        %1150 = vmatprep.subr.bf16.mxu0 0
        %1151 = vmatpush1.bf16.msra.mxu0 0
        %1152 = vmatprep.subr.bf16.mxu0 0
        %1153 = vmatpush1.bf16.msra.mxu0 0
        %1154 = vmatprep.subr.bf16.mxu0 0
        %1155 = vmatpush1.bf16.msra.mxu0 0
        %1156 = vmatprep.subr.bf16.mxu0 0
        %1157 = vmatpush1.bf16.msra.mxu0 0
        %1158 = vmatprep.subr.bf16.mxu0 0
        %1159 = vmatpush1.bf16.msra.mxu0 0
        %1160 = vmatprep.subr.bf16.mxu0 0
        %1161 = vmatpush1.bf16.msra.mxu0 0
        %1162 = vmatprep.subr.bf16.mxu0 0
        %1163 = vmatpush1.bf16.msra.mxu0 0
        %1164 = vmatprep.subr.bf16.mxu0 0
        %1165 = vmatpush1.bf16.msra.mxu0 0
        %1166 = vmatprep.subr.bf16.mxu0 0
        %1167 = vmatpush1.bf16.msra.mxu0 0
        %1168 = vmatprep.subr.bf16.mxu0 0
        %1169 = vmatpush1.bf16.msra.mxu0 0
        %1170 = vmatprep.subr.bf16.mxu0 0
        %1171 = vmatpush1.bf16.msra.mxu0 0
        %1172 = vmatprep.subr.bf16.mxu0 0
        %1173 = vmatpush1.bf16.msra.mxu0 0
        %1174 = vmatprep.subr.bf16.mxu0 0
        %1175 = vmatpush1.bf16.msra.mxu0 0
        %1176 = vmatprep.subr.bf16.mxu0 0
        %1177 = vmatpush1.bf16.msra.mxu0 0
        %1178 = vmatprep.mubr.bf16.mxu0 0
        %1179 = vmatmul.mubr.bf16.gmra.mrb[0].mxu0 %v1140
        %v1180 = vpop.f32.mrb[0].mxu0
        %v1181 = vadd.f32 0.0, %v1180
        %v1182 = vpop.f32.mrb[0].mxu0
        %v1183 = vpop.f32.mrb[0].mxu0
        %v1184 = vpop.f32.mrb[0].mxu0
        %1185 = vdwg.mxu0
        %1186 = vrot.lane.b32.xlu0 %v889, 112
        %v1187 = vpop.permute.xlu0 %1186
        %v1189 = vsel %vm895, %v1134, 0
        %v1192 = vsel %vm1142, %v1187, 0
        %1194 = vmatprep.subr.bf16.mxu0 0
        %1195 = vmatpush1.bf16.msra.mxu0 %v1192
        %1196 = vmatprep.subr.bf16.mxu0 0
        %1197 = vmatpush1.bf16.msra.mxu0 0
        %1198 = vmatprep.subr.bf16.mxu0 0
        %1199 = vmatpush1.bf16.msra.mxu0 0
        %1200 = vmatprep.subr.bf16.mxu0 0
        %1201 = vmatpush1.bf16.msra.mxu0 0
        %1202 = vmatprep.subr.bf16.mxu0 0
        %1203 = vmatpush1.bf16.msra.mxu0 0
        %1204 = vmatprep.subr.bf16.mxu0 0
        %1205 = vmatpush1.bf16.msra.mxu0 0
        %1206 = vmatprep.subr.bf16.mxu0 0
        %1207 = vmatpush1.bf16.msra.mxu0 0
        %1208 = vmatprep.subr.bf16.mxu0 0
        %1209 = vmatpush1.bf16.msra.mxu0 0
        %1210 = vmatprep.subr.bf16.mxu0 0
        %1211 = vmatpush1.bf16.msra.mxu0 0
        %1212 = vmatprep.subr.bf16.mxu0 0
        %1213 = vmatpush1.bf16.msra.mxu0 0
        %1214 = vmatprep.subr.bf16.mxu0 0
        %1215 = vmatpush1.bf16.msra.mxu0 0
        %1216 = vmatprep.subr.bf16.mxu0 0
        %1217 = vmatpush1.bf16.msra.mxu0 0
        %1218 = vmatprep.subr.bf16.mxu0 0
        %1219 = vmatpush1.bf16.msra.mxu0 0
        %1220 = vmatprep.subr.bf16.mxu0 0
        %1221 = vmatpush1.bf16.msra.mxu0 0
        %1222 = vmatprep.subr.bf16.mxu0 0
        %1223 = vmatpush1.bf16.msra.mxu0 0
        %1224 = vmatprep.subr.bf16.mxu0 0
        %1225 = vmatpush1.bf16.msra.mxu0 0
        %1226 = vmatprep.mubr.bf16.mxu0 0
        %1227 = vmatmul.mubr.bf16.gmra.mrb[0].mxu0 %v1189
        %v1228 = vpop.f32.mrb[0].mxu0
        %v1229 = vadd.f32 0.0, %v1228
        %v1230 = vpop.f32.mrb[0].mxu0
        %v1231 = vpop.f32.mrb[0].mxu0
        %v1232 = vpop.f32.mrb[0].mxu0
        %1233 = vdwg.mxu0
        %1234 = vrot.lane.b32.xlu0 %v890, 112
        %v1235 = vpop.permute.xlu0 %1234
        %v1237 = vsel %vm895, %v1135, 0
        %v1240 = vsel %vm1142, %v1235, 0
        %1242 = vmatprep.subr.bf16.mxu0 0
        %1243 = vmatpush1.bf16.msra.mxu0 %v1240
        %1244 = vmatprep.subr.bf16.mxu0 0
        %1245 = vmatpush1.bf16.msra.mxu0 0
        %1246 = vmatprep.subr.bf16.mxu0 0
        %1247 = vmatpush1.bf16.msra.mxu0 0
        %1248 = vmatprep.subr.bf16.mxu0 0
        %1249 = vmatpush1.bf16.msra.mxu0 0
        %1250 = vmatprep.subr.bf16.mxu0 0
        %1251 = vmatpush1.bf16.msra.mxu0 0
        %1252 = vmatprep.subr.bf16.mxu0 0
        %1253 = vmatpush1.bf16.msra.mxu0 0
        %1254 = vmatprep.subr.bf16.mxu0 0
        %1255 = vmatpush1.bf16.msra.mxu0 0
        %1256 = vmatprep.subr.bf16.mxu0 0
        %1257 = vmatpush1.bf16.msra.mxu0 0
        %1258 = vmatprep.subr.bf16.mxu0 0
        %1259 = vmatpush1.bf16.msra.mxu0 0
        %1260 = vmatprep.subr.bf16.mxu0 0
        %1261 = vmatpush1.bf16.msra.mxu0 0
        %1262 = vmatprep.subr.bf16.mxu0 0
        %1263 = vmatpush1.bf16.msra.mxu0 0
        %1264 = vmatprep.subr.bf16.mxu0 0
        %1265 = vmatpush1.bf16.msra.mxu0 0
        %1266 = vmatprep.subr.bf16.mxu0 0
        %1267 = vmatpush1.bf16.msra.mxu0 0
        %1268 = vmatprep.subr.bf16.mxu0 0
        %1269 = vmatpush1.bf16.msra.mxu0 0
        %1270 = vmatprep.subr.bf16.mxu0 0
        %1271 = vmatpush1.bf16.msra.mxu0 0
        %1272 = vmatprep.subr.bf16.mxu0 0
        %1273 = vmatpush1.bf16.msra.mxu0 0
        %1274 = vmatprep.mubr.bf16.mxu0 0
        %1275 = vmatmul.mubr.bf16.gmra.mrb[0].mxu0 %v1237
        %v1276 = vpop.f32.mrb[0].mxu0
        %v1277 = vadd.f32 0.0, %v1276
        %v1278 = vpop.f32.mrb[0].mxu0
        %v1279 = vpop.f32.mrb[0].mxu0
        %v1280 = vpop.f32.mrb[0].mxu0
        %1281 = vdwg.mxu0
        %1282 = vrot.lane.b32.xlu0 %v891, 112
        %v1283 = vpop.permute.xlu0 %1282
        %v1285 = vsel %vm895, %v1136, 0
        %v1288 = vsel %vm1142, %v1283, 0
        %1290 = vmatprep.subr.bf16.mxu0 0
        %1291 = vmatpush1.bf16.msra.mxu0 %v1288
        %1292 = vmatprep.subr.bf16.mxu0 0
        %1293 = vmatpush1.bf16.msra.mxu0 0
        %1294 = vmatprep.subr.bf16.mxu0 0
        %1295 = vmatpush1.bf16.msra.mxu0 0
        %1296 = vmatprep.subr.bf16.mxu0 0
        %1297 = vmatpush1.bf16.msra.mxu0 0
        %1298 = vmatprep.subr.bf16.mxu0 0
        %1299 = vmatpush1.bf16.msra.mxu0 0
        %1300 = vmatprep.subr.bf16.mxu0 0
        %1301 = vmatpush1.bf16.msra.mxu0 0
        %1302 = vmatprep.subr.bf16.mxu0 0
        %1303 = vmatpush1.bf16.msra.mxu0 0
        %1304 = vmatprep.subr.bf16.mxu0 0
        %1305 = vmatpush1.bf16.msra.mxu0 0
        %1306 = vmatprep.subr.bf16.mxu0 0
        %1307 = vmatpush1.bf16.msra.mxu0 0
        %1308 = vmatprep.subr.bf16.mxu0 0
        %1309 = vmatpush1.bf16.msra.mxu0 0
        %1310 = vmatprep.subr.bf16.mxu0 0
        %1311 = vmatpush1.bf16.msra.mxu0 0
        %1312 = vmatprep.subr.bf16.mxu0 0
        %1313 = vmatpush1.bf16.msra.mxu0 0
        %1314 = vmatprep.subr.bf16.mxu0 0
        %1315 = vmatpush1.bf16.msra.mxu0 0
        %1316 = vmatprep.subr.bf16.mxu0 0
        %1317 = vmatpush1.bf16.msra.mxu0 0
        %1318 = vmatprep.subr.bf16.mxu0 0
        %1319 = vmatpush1.bf16.msra.mxu0 0
        %1320 = vmatprep.subr.bf16.mxu0 0
        %1321 = vmatpush1.bf16.msra.mxu0 0
        %1322 = vmatprep.mubr.bf16.mxu0 0
        %1323 = vmatmul.mubr.bf16.gmra.mrb[0].mxu0 %v1285
        %v1324 = vpop.f32.mrb[0].mxu0
        %v1325 = vadd.f32 0.0, %v1324
        %v1326 = vpop.f32.mrb[0].mxu0
        %v1327 = vpop.f32.mrb[0].mxu0
        %v1328 = vpop.f32.mrb[0].mxu0
        %1329 = vdwg.mxu0
        %1331 = vrot.lane.b32.xlu0 %v1229, 8
        %v1332 = vpop.permute.xlu0 %1331
        %1335 = vrot.lane.b32.xlu0 %v1277, 16
        %v1336 = vpop.permute.xlu0 %1335
        %1339 = vrot.lane.b32.xlu0 %v1325, 24
        %v1340 = vpop.permute.xlu0 %1339
        %v1342 = vsel %vm895, %v1181, %v1332
        %vm1343 = vcmask 130048
        %v1344 = vsel %vm1343, %v1342, %v1336
        %vm1345 = vcmask 195584
        %v1346 = vsel %vm1345, %v1344, %v1340
        %v1347 = vpack.c.bf16 %v1346, %v1346
        %v1348 = vld [vmem:[%s6] sm:$0xf]
        %v1349 = vld [vmem:[%s6 + $0x4] sm:$0xf]
        %v1350 = vld [vmem:[%s6 + $0x8] sm:$0xf]
        %v1351 = vld [vmem:[%s6 + $0xc] sm:$0xf]
        %v1352 = vld [vmem:[%s7] sm:$0x1]
        %v1354 = vlaneseq
        %v1355 = vshrl.u32 %v1354, 7
        %v1356 = vsub.s32 0, %v1355
        %v1357 = vrot.slane %v1352, %v1356
        %v1363 = vunpack.c.l.b16 %v1348
        %v1364 = vunpack.c.l.b16 %v1349
        %v1365 = vunpack.c.l.b16 %v1350
        %v1366 = vunpack.c.l.b16 %v1351
        %v1367 = vpack.c.b16 %v1364, %v1363
        %v1368 = vpack.c.b16 %v1366, %v1365
        %v1372 = vsel %vm588, %v1347, 0
        %1374 = vmatprep.subr.bf16.mxu0 0
        %1375 = vmatpush1.bf16.msra.mxu0 %v1367
        %1376 = vmatprep.subr.bf16.mxu0 0
        %1377 = vmatpush1.bf16.msra.mxu0 %v1368
        %1378 = vmatprep.subr.bf16.mxu0 0
        %1379 = vmatpush1.bf16.msra.mxu0 0
        %1380 = vmatprep.subr.bf16.mxu0 0
        %1381 = vmatpush1.bf16.msra.mxu0 0
        %1382 = vmatprep.subr.bf16.mxu0 0
        %1383 = vmatpush1.bf16.msra.mxu0 0
        %1384 = vmatprep.subr.bf16.mxu0 0
        %1385 = vmatpush1.bf16.msra.mxu0 0
        %1386 = vmatprep.subr.bf16.mxu0 0
        %1387 = vmatpush1.bf16.msra.mxu0 0
        %1388 = vmatprep.subr.bf16.mxu0 0
        %1389 = vmatpush1.bf16.msra.mxu0 0
        %1390 = vmatprep.subr.bf16.mxu0 0
        %1391 = vmatpush1.bf16.msra.mxu0 0
        %1392 = vmatprep.subr.bf16.mxu0 0
        %1393 = vmatpush1.bf16.msra.mxu0 0
        %1394 = vmatprep.subr.bf16.mxu0 0
        %1395 = vmatpush1.bf16.msra.mxu0 0
        %1396 = vmatprep.subr.bf16.mxu0 0
        %1397 = vmatpush1.bf16.msra.mxu0 0
        %1398 = vmatprep.subr.bf16.mxu0 0
        %1399 = vmatpush1.bf16.msra.mxu0 0
        %1400 = vmatprep.subr.bf16.mxu0 0
        %1401 = vmatpush1.bf16.msra.mxu0 0
        %1402 = vmatprep.subr.bf16.mxu0 0
        %1403 = vmatpush1.bf16.msra.mxu0 0
        %1404 = vmatprep.subr.bf16.mxu0 0
        %1405 = vmatpush1.bf16.msra.mxu0 0
        %1406 = vmatprep.mubr.bf16.mxu0 0
        %1407 = vmatmul.mubr.bf16.gmra.mrb[0].mxu0 %v1372
        %v1408 = vpop.f32.mrb[0].mxu0
        %v1409 = vadd.f32 %v1357, %v1408
        %v1410 = vpop.f32.mrb[0].mxu0
        %v1411 = vpop.f32.mrb[0].mxu0
        %v1412 = vpop.f32.mrb[0].mxu0
        %1413 = vdwg.mxu0
        %v1414 = vadd.f32 %v1409, %v616
        %v1415 = vld [vmem:[%s8] sm:$0x1]
        %v1416 = vld [vmem:[%s9] sm:$0x1]
        %v1417 = vsel %vm588, %v1414, 0.0
        %1418 = vadd.xlane.f32.xlu0 %v1417
        %v1419 = vpop.xlane.xlu0 %1418
        %v1420 = vmul.f32 %v1419, %v592
        %v1421 = vsub.f32 %v1414, %v1420
        %v1422 = vmul.f32 %v1421, %v1421
        %v1423 = vsel %vm588, %v1422, 0.0
        %1424 = vadd.xlane.f32.xlu0 %v1423
        %v1425 = vpop.xlane.xlu0 %1424
        %v1426 = vmul.f32 %v1425, %v592
        %v1427 = vadd.f32 %v1426, 1e-07
        %v1428 = vrsqrt.pop %v1427
        %v1429 = vmul.f32 %v1421, %v1428
        %v1431 = vlaneseq
        %v1432 = vshrl.u32 %v1431, 7
        %v1433 = vsub.s32 0, %v1432
        %v1434 = vrot.slane %v1415, %v1433
        %v1436 = vmul.f32 %v1429, %v1434
        %v1438 = vlaneseq
        %v1439 = vshrl.u32 %v1438, 7
        %v1440 = vsub.s32 0, %v1439
        %v1441 = vrot.slane %v1416, %v1440
        %v1443 = vadd.f32 %v1436, %v1441
        %v1444 = vpack.c.bf16 %v1443, %v1443
        %v1445 = vld [vmem:[%s10] sm:$0xf]
        %v1446 = vld [vmem:[%s10 + $0x4] sm:$0xf]
        %v1447 = vld [vmem:[%s10 + $0x8] sm:$0xf]
        %v1448 = vld [vmem:[%s10 + $0xc] sm:$0xf]
        %v1449 = vld [vmem:[%s11] sm:$0x1]
        %v1451 = vlaneseq
        %v1452 = vshrl.u32 %v1451, 7
        %v1453 = vsub.s32 0, %v1452
        %v1454 = vrot.slane %v1449, %v1453
        %v1460 = vunpack.c.l.b16 %v1445
        %v1461 = vunpack.c.l.b16 %v1446
        %v1462 = vunpack.c.l.b16 %v1447
        %v1463 = vunpack.c.l.b16 %v1448
        %v1464 = vpack.c.b16 %v1461, %v1460
        %v1465 = vpack.c.b16 %v1463, %v1462
        %v1469 = vsel %vm588, %v1444, 0
        %1471 = vmatprep.subr.bf16.mxu0 0
        %1472 = vmatpush1.bf16.msra.mxu0 %v1464
        %1473 = vmatprep.subr.bf16.mxu0 0
        %1474 = vmatpush1.bf16.msra.mxu0 %v1465
        %1475 = vmatprep.subr.bf16.mxu0 0
        %1476 = vmatpush1.bf16.msra.mxu0 0
        %1477 = vmatprep.subr.bf16.mxu0 0
        %1478 = vmatpush1.bf16.msra.mxu0 0
        %1479 = vmatprep.subr.bf16.mxu0 0
        %1480 = vmatpush1.bf16.msra.mxu0 0
        %1481 = vmatprep.subr.bf16.mxu0 0
        %1482 = vmatpush1.bf16.msra.mxu0 0
        %1483 = vmatprep.subr.bf16.mxu0 0
        %1484 = vmatpush1.bf16.msra.mxu0 0
        %1485 = vmatprep.subr.bf16.mxu0 0
        %1486 = vmatpush1.bf16.msra.mxu0 0
        %1487 = vmatprep.subr.bf16.mxu0 0
        %1488 = vmatpush1.bf16.msra.mxu0 0
        %1489 = vmatprep.subr.bf16.mxu0 0
        %1490 = vmatpush1.bf16.msra.mxu0 0
        %1491 = vmatprep.subr.bf16.mxu0 0
        %1492 = vmatpush1.bf16.msra.mxu0 0
        %1493 = vmatprep.subr.bf16.mxu0 0
        %1494 = vmatpush1.bf16.msra.mxu0 0
        %1495 = vmatprep.subr.bf16.mxu0 0
        %1496 = vmatpush1.bf16.msra.mxu0 0
        %1497 = vmatprep.subr.bf16.mxu0 0
        %1498 = vmatpush1.bf16.msra.mxu0 0
        %1499 = vmatprep.subr.bf16.mxu0 0
        %1500 = vmatpush1.bf16.msra.mxu0 0
        %1501 = vmatprep.subr.bf16.mxu0 0
        %1502 = vmatpush1.bf16.msra.mxu0 0
        %1503 = vmatprep.mubr.bf16.mxu0 0
        %1504 = vmatmul.mubr.bf16.gmra.mrb[0].mxu0 %v1469
        %v1505 = vpop.f32.mrb[0].mxu0
        %v1506 = vadd.f32 %v1454, %v1505
        %v1507 = vpop.f32.mrb[0].mxu0
        %v1508 = vpop.f32.mrb[0].mxu0
        %v1509 = vpop.f32.mrb[0].mxu0
        %1510 = vdwg.mxu0
        %v1511 = vmul.f32 %v1506, 0.5
        %v1512 = vmul.f32 %v1506, 0.044715
        %v1513 = vmul.f32 %v1512, %v1506
        %v1514 = vmul.f32 %v1513, %v1506
        %v1515 = vadd.f32 %v1506, %v1514
        %v1516 = vmul.f32 %v1515, 0.7978846
        %v1517 = vtanh.pop %v1516
        %v1518 = vadd.f32 %v1517, 1.0
        %v1519 = vmul.f32 %v1511, %v1518
        %v1520 = vpack.c.bf16 %v1519, %v1519
        %v1521 = vld [vmem:[%s12] sm:$0xf]
        %v1522 = vld [vmem:[%s12 + $0x4] sm:$0xf]
        %v1523 = vld [vmem:[%s12 + $0x8] sm:$0xf]
        %v1524 = vld [vmem:[%s12 + $0xc] sm:$0xf]
        %v1525 = vld [vmem:[%s12 + $0x10] sm:$0xf]
        %v1526 = vld [vmem:[%s12 + $0x14] sm:$0xf]
        %v1527 = vld [vmem:[%s12 + $0x18] sm:$0xf]
        %v1528 = vld [vmem:[%s12 + $0x1c] sm:$0xf]
        %v1529 = vld [vmem:[%s13] sm:$0x1]
        %v1531 = vlaneseq
        %v1532 = vshrl.u32 %v1531, 7
        %v1533 = vsub.s32 0, %v1532
        %v1534 = vrot.slane %v1529, %v1533
        %v1544 = vunpack.c.l.b16 %v1521
        %v1545 = vunpack.c.l.b16 %v1522
        %v1546 = vunpack.c.l.b16 %v1523
        %v1547 = vunpack.c.l.b16 %v1524
        %v1548 = vunpack.c.l.b16 %v1525
        %v1549 = vunpack.c.l.b16 %v1526
        %v1550 = vunpack.c.l.b16 %v1527
        %v1551 = vunpack.c.l.b16 %v1528
        %v1552 = vpack.c.b16 %v1545, %v1544
        %v1553 = vpack.c.b16 %v1547, %v1546
        %v1554 = vpack.c.b16 %v1549, %v1548
        %v1555 = vpack.c.b16 %v1551, %v1550
        %vm1560 = vcmask 523264
        %v1562 = vsel %vm1560, %v1520, 0
        %1564 = vmatprep.subr.bf16.mxu0 0
        %1565 = vmatpush1.bf16.msra.mxu0 %v1552
        %1566 = vmatprep.subr.bf16.mxu0 0
        %1567 = vmatpush1.bf16.msra.mxu0 %v1553
        %1568 = vmatprep.subr.bf16.mxu0 0
        %1569 = vmatpush1.bf16.msra.mxu0 %v1554
        %1570 = vmatprep.subr.bf16.mxu0 0
        %1571 = vmatpush1.bf16.msra.mxu0 %v1555
        %1572 = vmatprep.subr.bf16.mxu0 0
        %1573 = vmatpush1.bf16.msra.mxu0 0
        %1574 = vmatprep.subr.bf16.mxu0 0
        %1575 = vmatpush1.bf16.msra.mxu0 0
        %1576 = vmatprep.subr.bf16.mxu0 0
        %1577 = vmatpush1.bf16.msra.mxu0 0
        %1578 = vmatprep.subr.bf16.mxu0 0
        %1579 = vmatpush1.bf16.msra.mxu0 0
        %1580 = vmatprep.subr.bf16.mxu0 0
        %1581 = vmatpush1.bf16.msra.mxu0 0
        %1582 = vmatprep.subr.bf16.mxu0 0
        %1583 = vmatpush1.bf16.msra.mxu0 0
        %1584 = vmatprep.subr.bf16.mxu0 0
        %1585 = vmatpush1.bf16.msra.mxu0 0
        %1586 = vmatprep.subr.bf16.mxu0 0
        %1587 = vmatpush1.bf16.msra.mxu0 0
        %1588 = vmatprep.subr.bf16.mxu0 0
        %1589 = vmatpush1.bf16.msra.mxu0 0
        %1590 = vmatprep.subr.bf16.mxu0 0
        %1591 = vmatpush1.bf16.msra.mxu0 0
        %1592 = vmatprep.subr.bf16.mxu0 0
        %1593 = vmatpush1.bf16.msra.mxu0 0
        %1594 = vmatprep.subr.bf16.mxu0 0
        %1595 = vmatpush1.bf16.msra.mxu0 0
        %1596 = vmatprep.mubr.bf16.mxu0 0
        %1597 = vmatmul.mubr.bf16.gmra.mrb[0].mxu0 %v1562
        %v1598 = vpop.f32.mrb[0].mxu0
        %v1599 = vadd.f32 %v1534, %v1598
        %v1600 = vpop.f32.mrb[0].mxu0
        %v1601 = vpop.f32.mrb[0].mxu0
        %v1602 = vpop.f32.mrb[0].mxu0
        %1603 = vdwg.mxu0
        %v1604 = vadd.f32 %v1599, %v1443
        %v1605 = vld [vmem:[%s14] sm:$0x1]
        %v1606 = vld [vmem:[%s15] sm:$0x1]
        %v1607 = vsel %vm588, %v1604, 0.0
        %1608 = vadd.xlane.f32.xlu0 %v1607
        %v1609 = vpop.xlane.xlu0 %1608
        %v1610 = vmul.f32 %v1609, %v592
        %v1611 = vsub.f32 %v1604, %v1610
        %v1612 = vmul.f32 %v1611, %v1611
        %v1613 = vsel %vm588, %v1612, 0.0
        %1614 = vadd.xlane.f32.xlu0 %v1613
        %v1615 = vpop.xlane.xlu0 %1614
        %v1616 = vmul.f32 %v1615, %v592
        %v1617 = vadd.f32 %v1616, 1e-07
        %v1618 = vrsqrt.pop %v1617
        %v1619 = vmul.f32 %v1611, %v1618
        %v1621 = vlaneseq
        %v1622 = vshrl.u32 %v1621, 7
        %v1623 = vsub.s32 0, %v1622
        %v1624 = vrot.slane %v1605, %v1623
        %v1626 = vmul.f32 %v1619, %v1624
        %v1628 = vlaneseq
        %v1629 = vshrl.u32 %v1628, 7
        %v1630 = vsub.s32 0, %v1629
        %v1631 = vrot.slane %v1606, %v1630
        %v1633 = vadd.f32 %v1626, %v1631
        %v1634 = vpack.c.bf16 %v1633, %v1633
        %s1635 = scalar_lea.vmem %s4, 64
        %v1636 = vld [vmem:[%s1635] sm:$0xf]
        %v1637 = vld [vmem:[%s1635 + $0x4] sm:$0xf]
        %v1638 = vld [vmem:[%s1635 + $0x8] sm:$0xf]
        %v1639 = vld [vmem:[%s1635 + $0xc] sm:$0xf]
        %v1640 = vld [vmem:[%s1635 + $0x10] sm:$0xf]
        %v1641 = vld [vmem:[%s1635 + $0x14] sm:$0xf]
        %v1642 = vld [vmem:[%s1635 + $0x18] sm:$0xf]
        %v1643 = vld [vmem:[%s1635 + $0x1c] sm:$0xf]
        %v1644 = vld [vmem:[%s1635 + $0x20] sm:$0xf]
        %v1645 = vld [vmem:[%s1635 + $0x24] sm:$0xf]
        %v1646 = vld [vmem:[%s1635 + $0x28] sm:$0xf]
        %v1647 = vld [vmem:[%s1635 + $0x2c] sm:$0xf]
        %v1648 = vld [vmem:[%s1635 + $0x30] sm:$0xf]
        %v1649 = vld [vmem:[%s1635 + $0x34] sm:$0xf]
        %v1650 = vld [vmem:[%s1635 + $0x38] sm:$0xf]
        %v1651 = vld [vmem:[%s1635 + $0x3c] sm:$0xf]
        %s1652 = scalar_lea.vmem %s5, 4
        %v1653 = vld [vmem:[%s1652] sm:$0x1]
        %v1654 = vld [vmem:[%s1652 + $0x1] sm:$0x1]
        %v1655 = vld [vmem:[%s1652 + $0x2] sm:$0x1]
        %v1656 = vld [vmem:[%s1652 + $0x3] sm:$0x1]
        %v1661 = vlaneseq
        %v1662 = vshrl.u32 %v1661, 7
        %v1663 = vsub.s32 0, %v1662
        %v1664 = vrot.slane %v1653, %v1663
        %v1665 = vlaneseq
        %v1666 = vshrl.u32 %v1665, 7
        %v1667 = vsub.s32 0, %v1666
        %v1668 = vrot.slane %v1654, %v1667
        %v1669 = vlaneseq
        %v1670 = vshrl.u32 %v1669, 7
        %v1671 = vsub.s32 0, %v1670
        %v1672 = vrot.slane %v1655, %v1671
        %v1673 = vlaneseq
        %v1674 = vshrl.u32 %v1673, 7
        %v1675 = vsub.s32 0, %v1674
        %v1676 = vrot.slane %v1656, %v1675
        %v1685 = vunpack.c.l.b16 %v1636
        %v1686 = vunpack.c.l.b16 %v1637
        %v1687 = vunpack.c.l.b16 %v1638
        %v1688 = vunpack.c.l.b16 %v1639
        %v1689 = vpack.c.b16 %v1686, %v1685
        %v1690 = vpack.c.b16 %v1688, %v1687
        %v1694 = vsel %vm588, %v1634, 0
        %1696 = vmatprep.subr.bf16.mxu0 0
        %1697 = vmatpush1.bf16.msra.mxu0 %v1689
        %1698 = vmatprep.subr.bf16.mxu0 0
        %1699 = vmatpush1.bf16.msra.mxu0 %v1690
        %1700 = vmatprep.subr.bf16.mxu0 0
        %1701 = vmatpush1.bf16.msra.mxu0 0
        %1702 = vmatprep.subr.bf16.mxu0 0
        %1703 = vmatpush1.bf16.msra.mxu0 0
        %1704 = vmatprep.subr.bf16.mxu0 0
        %1705 = vmatpush1.bf16.msra.mxu0 0
        %1706 = vmatprep.subr.bf16.mxu0 0
        %1707 = vmatpush1.bf16.msra.mxu0 0
        %1708 = vmatprep.subr.bf16.mxu0 0
        %1709 = vmatpush1.bf16.msra.mxu0 0
        %1710 = vmatprep.subr.bf16.mxu0 0
        %1711 = vmatpush1.bf16.msra.mxu0 0
        %1712 = vmatprep.subr.bf16.mxu0 0
        %1713 = vmatpush1.bf16.msra.mxu0 0
        %1714 = vmatprep.subr.bf16.mxu0 0
        %1715 = vmatpush1.bf16.msra.mxu0 0
        %1716 = vmatprep.subr.bf16.mxu0 0
        %1717 = vmatpush1.bf16.msra.mxu0 0
        %1718 = vmatprep.subr.bf16.mxu0 0
        %1719 = vmatpush1.bf16.msra.mxu0 0
        %1720 = vmatprep.subr.bf16.mxu0 0
        %1721 = vmatpush1.bf16.msra.mxu0 0
        %1722 = vmatprep.subr.bf16.mxu0 0
        %1723 = vmatpush1.bf16.msra.mxu0 0
        %1724 = vmatprep.subr.bf16.mxu0 0
        %1725 = vmatpush1.bf16.msra.mxu0 0
        %1726 = vmatprep.subr.bf16.mxu0 0
        %1727 = vmatpush1.bf16.msra.mxu0 0
        %1728 = vmatprep.mubr.bf16.mxu0 0
        %1729 = vmatmul.mubr.bf16.gmra.mrb[0].mxu0 %v1694
        %v1730 = vpop.f32.mrb[0].mxu0
        %v1731 = vadd.f32 %v1664, %v1730
        %v1732 = vpop.f32.mrb[0].mxu0
        %v1733 = vpop.f32.mrb[0].mxu0
        %v1734 = vpop.f32.mrb[0].mxu0
        %1735 = vdwg.mxu0
        %v1740 = vunpack.c.l.b16 %v1640
        %v1741 = vunpack.c.l.b16 %v1641
        %v1742 = vunpack.c.l.b16 %v1642
        %v1743 = vunpack.c.l.b16 %v1643
        %v1744 = vpack.c.b16 %v1741, %v1740
        %v1745 = vpack.c.b16 %v1743, %v1742
        %1748 = vmatprep.subr.bf16.mxu0 0
        %1749 = vmatpush1.bf16.msra.mxu0 %v1744
        %1750 = vmatprep.subr.bf16.mxu0 0
        %1751 = vmatpush1.bf16.msra.mxu0 %v1745
        %1752 = vmatprep.subr.bf16.mxu0 0
        %1753 = vmatpush1.bf16.msra.mxu0 0
        %1754 = vmatprep.subr.bf16.mxu0 0
        %1755 = vmatpush1.bf16.msra.mxu0 0
        %1756 = vmatprep.subr.bf16.mxu0 0
        %1757 = vmatpush1.bf16.msra.mxu0 0
        %1758 = vmatprep.subr.bf16.mxu0 0
        %1759 = vmatpush1.bf16.msra.mxu0 0
        %1760 = vmatprep.subr.bf16.mxu0 0
        %1761 = vmatpush1.bf16.msra.mxu0 0
        %1762 = vmatprep.subr.bf16.mxu0 0
        %1763 = vmatpush1.bf16.msra.mxu0 0
        %1764 = vmatprep.subr.bf16.mxu0 0
        %1765 = vmatpush1.bf16.msra.mxu0 0
        %1766 = vmatprep.subr.bf16.mxu0 0
        %1767 = vmatpush1.bf16.msra.mxu0 0
        %1768 = vmatprep.subr.bf16.mxu0 0
        %1769 = vmatpush1.bf16.msra.mxu0 0
        %1770 = vmatprep.subr.bf16.mxu0 0
        %1771 = vmatpush1.bf16.msra.mxu0 0
        %1772 = vmatprep.subr.bf16.mxu0 0
        %1773 = vmatpush1.bf16.msra.mxu0 0
        %1774 = vmatprep.subr.bf16.mxu0 0
        %1775 = vmatpush1.bf16.msra.mxu0 0
        %1776 = vmatprep.subr.bf16.mxu0 0
        %1777 = vmatpush1.bf16.msra.mxu0 0
        %1778 = vmatprep.subr.bf16.mxu0 0
        %1779 = vmatpush1.bf16.msra.mxu0 0
        %1780 = vmatprep.mubr.bf16.mxu0 0
        %1781 = vmatmul.mubr.bf16.gmra.mrb[0].mxu0 %v1694
        %v1782 = vpop.f32.mrb[0].mxu0
        %v1783 = vadd.f32 %v1668, %v1782
        %v1784 = vpop.f32.mrb[0].mxu0
        %v1785 = vpop.f32.mrb[0].mxu0
        %v1786 = vpop.f32.mrb[0].mxu0
        %1787 = vdwg.mxu0
        %v1792 = vunpack.c.l.b16 %v1644
        %v1793 = vunpack.c.l.b16 %v1645
        %v1794 = vunpack.c.l.b16 %v1646
        %v1795 = vunpack.c.l.b16 %v1647
        %v1796 = vpack.c.b16 %v1793, %v1792
        %v1797 = vpack.c.b16 %v1795, %v1794
        %1800 = vmatprep.subr.bf16.mxu0 0
        %1801 = vmatpush1.bf16.msra.mxu0 %v1796
        %1802 = vmatprep.subr.bf16.mxu0 0
        %1803 = vmatpush1.bf16.msra.mxu0 %v1797
        %1804 = vmatprep.subr.bf16.mxu0 0
        %1805 = vmatpush1.bf16.msra.mxu0 0
        %1806 = vmatprep.subr.bf16.mxu0 0
        %1807 = vmatpush1.bf16.msra.mxu0 0
        %1808 = vmatprep.subr.bf16.mxu0 0
        %1809 = vmatpush1.bf16.msra.mxu0 0
        %1810 = vmatprep.subr.bf16.mxu0 0
        %1811 = vmatpush1.bf16.msra.mxu0 0
        %1812 = vmatprep.subr.bf16.mxu0 0
        %1813 = vmatpush1.bf16.msra.mxu0 0
        %1814 = vmatprep.subr.bf16.mxu0 0
        %1815 = vmatpush1.bf16.msra.mxu0 0
        %1816 = vmatprep.subr.bf16.mxu0 0
        %1817 = vmatpush1.bf16.msra.mxu0 0
        %1818 = vmatprep.subr.bf16.mxu0 0
        %1819 = vmatpush1.bf16.msra.mxu0 0
        %1820 = vmatprep.subr.bf16.mxu0 0
        %1821 = vmatpush1.bf16.msra.mxu0 0
        %1822 = vmatprep.subr.bf16.mxu0 0
        %1823 = vmatpush1.bf16.msra.mxu0 0
        %1824 = vmatprep.subr.bf16.mxu0 0
        %1825 = vmatpush1.bf16.msra.mxu0 0
        %1826 = vmatprep.subr.bf16.mxu0 0
        %1827 = vmatpush1.bf16.msra.mxu0 0
        %1828 = vmatprep.subr.bf16.mxu0 0
        %1829 = vmatpush1.bf16.msra.mxu0 0
        %1830 = vmatprep.subr.bf16.mxu0 0
        %1831 = vmatpush1.bf16.msra.mxu0 0
        %1832 = vmatprep.mubr.bf16.mxu0 0
        %1833 = vmatmul.mubr.bf16.gmra.mrb[0].mxu0 %v1694
        %v1834 = vpop.f32.mrb[0].mxu0
        %v1835 = vadd.f32 %v1672, %v1834
        %v1836 = vpop.f32.mrb[0].mxu0
        %v1837 = vpop.f32.mrb[0].mxu0
        %v1838 = vpop.f32.mrb[0].mxu0
        %1839 = vdwg.mxu0
        %v1844 = vunpack.c.l.b16 %v1648
        %v1845 = vunpack.c.l.b16 %v1649
        %v1846 = vunpack.c.l.b16 %v1650
        %v1847 = vunpack.c.l.b16 %v1651
        %v1848 = vpack.c.b16 %v1845, %v1844
        %v1849 = vpack.c.b16 %v1847, %v1846
        %1852 = vmatprep.subr.bf16.mxu0 0
        %1853 = vmatpush1.bf16.msra.mxu0 %v1848
        %1854 = vmatprep.subr.bf16.mxu0 0
        %1855 = vmatpush1.bf16.msra.mxu0 %v1849
        %1856 = vmatprep.subr.bf16.mxu0 0
        %1857 = vmatpush1.bf16.msra.mxu0 0
        %1858 = vmatprep.subr.bf16.mxu0 0
        %1859 = vmatpush1.bf16.msra.mxu0 0
        %1860 = vmatprep.subr.bf16.mxu0 0
        %1861 = vmatpush1.bf16.msra.mxu0 0
        %1862 = vmatprep.subr.bf16.mxu0 0
        %1863 = vmatpush1.bf16.msra.mxu0 0
        %1864 = vmatprep.subr.bf16.mxu0 0
        %1865 = vmatpush1.bf16.msra.mxu0 0
        %1866 = vmatprep.subr.bf16.mxu0 0
        %1867 = vmatpush1.bf16.msra.mxu0 0
        %1868 = vmatprep.subr.bf16.mxu0 0
        %1869 = vmatpush1.bf16.msra.mxu0 0
        %1870 = vmatprep.subr.bf16.mxu0 0
        %1871 = vmatpush1.bf16.msra.mxu0 0
        %1872 = vmatprep.subr.bf16.mxu0 0
        %1873 = vmatpush1.bf16.msra.mxu0 0
        %1874 = vmatprep.subr.bf16.mxu0 0
        %1875 = vmatpush1.bf16.msra.mxu0 0
        %1876 = vmatprep.subr.bf16.mxu0 0
        %1877 = vmatpush1.bf16.msra.mxu0 0
        %1878 = vmatprep.subr.bf16.mxu0 0
        %1879 = vmatpush1.bf16.msra.mxu0 0
        %1880 = vmatprep.subr.bf16.mxu0 0
        %1881 = vmatpush1.bf16.msra.mxu0 0
        %1882 = vmatprep.subr.bf16.mxu0 0
        %1883 = vmatpush1.bf16.msra.mxu0 0
        %1884 = vmatprep.mubr.bf16.mxu0 0
        %1885 = vmatmul.mubr.bf16.gmra.mrb[0].mxu0 %v1694
        %v1886 = vpop.f32.mrb[0].mxu0
        %v1887 = vadd.f32 %v1676, %v1886
        %v1888 = vpop.f32.mrb[0].mxu0
        %v1889 = vpop.f32.mrb[0].mxu0
        %v1890 = vpop.f32.mrb[0].mxu0
        %1891 = vdwg.mxu0
        %v1892 = vmul.f32 %v1731, 0.35355338
        %v1893 = vmul.f32 %v1783, 0.35355338
        %v1894 = vmul.f32 %v1835, 0.35355338
        %v1895 = vmul.f32 %v1887, 0.35355338
        %v1896 = vpack.c.bf16 %v1892, %v1892
        %v1897 = vpack.c.bf16 %v1893, %v1893
        %v1898 = vpack.c.bf16 %v1894, %v1894
        %v1899 = vpack.c.bf16 %v1895, %v1895
        %v1900 = vpack.c.bf16 %v1731, %v1731
        %v1901 = vpack.c.bf16 %v1783, %v1783
        %v1902 = vpack.c.bf16 %v1835, %v1835
        %v1903 = vpack.c.bf16 %v1887, %v1887
        %1905 = vrot.lane.b32.xlu0 %v1900, 120
        %v1906 = vpop.permute.xlu0 %1905
        %v1908 = vsel %vm895, %v1896, 0
        %v1911 = vsel %vm895, %v1906, 0
        %1913 = vmatprep.subr.bf16.mxu0 0
        %1914 = vmatpush1.bf16.xpose.msra.mxu0 %v1911
        %1915 = vmatprep.subr.bf16.mxu0 0
        %1916 = vmatpush1.bf16.xpose.msra.mxu0 0
        %1917 = vmatprep.subr.bf16.mxu0 0
        %1918 = vmatpush1.bf16.xpose.msra.mxu0 0
        %1919 = vmatprep.subr.bf16.mxu0 0
        %1920 = vmatpush1.bf16.xpose.msra.mxu0 0
        %1921 = vmatprep.subr.bf16.mxu0 0
        %1922 = vmatpush1.bf16.xpose.msra.mxu0 0
        %1923 = vmatprep.subr.bf16.mxu0 0
        %1924 = vmatpush1.bf16.xpose.msra.mxu0 0
        %1925 = vmatprep.subr.bf16.mxu0 0
        %1926 = vmatpush1.bf16.xpose.msra.mxu0 0
        %1927 = vmatprep.subr.bf16.mxu0 0
        %1928 = vmatpush1.bf16.xpose.msra.mxu0 0
        %1929 = vmatprep.subr.bf16.mxu0 0
        %1930 = vmatpush1.bf16.xpose.msra.mxu0 0
        %1931 = vmatprep.subr.bf16.mxu0 0
        %1932 = vmatpush1.bf16.xpose.msra.mxu0 0
        %1933 = vmatprep.subr.bf16.mxu0 0
        %1934 = vmatpush1.bf16.xpose.msra.mxu0 0
        %1935 = vmatprep.subr.bf16.mxu0 0
        %1936 = vmatpush1.bf16.xpose.msra.mxu0 0
        %1937 = vmatprep.subr.bf16.mxu0 0
        %1938 = vmatpush1.bf16.xpose.msra.mxu0 0
        %1939 = vmatprep.subr.bf16.mxu0 0
        %1940 = vmatpush1.bf16.xpose.msra.mxu0 0
        %1941 = vmatprep.subr.bf16.mxu0 0
        %1942 = vmatpush1.bf16.xpose.msra.mxu0 0
        %1943 = vmatprep.subr.bf16.mxu0 0
        %1944 = vmatpush1.bf16.xpose.msra.mxu0 0
        %1945 = vmatprep.mubr.bf16.mxu0 0
        %1946 = vmatmul.mubr.bf16.gmra.mrb[0].mxu0 %v1908
        %v1947 = vpop.f32.mrb[0].mxu0
        %v1948 = vadd.f32 %v622, %v1947
        %v1949 = vpop.f32.mrb[0].mxu0
        %v1950 = vpop.f32.mrb[0].mxu0
        %v1951 = vpop.f32.mrb[0].mxu0
        %1952 = vdwg.mxu0
        %1954 = vrot.lane.b32.xlu0 %v1901, 120
        %v1955 = vpop.permute.xlu0 %1954
        %v1957 = vsel %vm895, %v1897, 0
        %v1960 = vsel %vm895, %v1955, 0
        %1962 = vmatprep.subr.bf16.mxu0 0
        %1963 = vmatpush1.bf16.xpose.msra.mxu0 %v1960
        %1964 = vmatprep.subr.bf16.mxu0 0
        %1965 = vmatpush1.bf16.xpose.msra.mxu0 0
        %1966 = vmatprep.subr.bf16.mxu0 0
        %1967 = vmatpush1.bf16.xpose.msra.mxu0 0
        %1968 = vmatprep.subr.bf16.mxu0 0
        %1969 = vmatpush1.bf16.xpose.msra.mxu0 0
        %1970 = vmatprep.subr.bf16.mxu0 0
        %1971 = vmatpush1.bf16.xpose.msra.mxu0 0
        %1972 = vmatprep.subr.bf16.mxu0 0
        %1973 = vmatpush1.bf16.xpose.msra.mxu0 0
        %1974 = vmatprep.subr.bf16.mxu0 0
        %1975 = vmatpush1.bf16.xpose.msra.mxu0 0
        %1976 = vmatprep.subr.bf16.mxu0 0
        %1977 = vmatpush1.bf16.xpose.msra.mxu0 0
        %1978 = vmatprep.subr.bf16.mxu0 0
        %1979 = vmatpush1.bf16.xpose.msra.mxu0 0
        %1980 = vmatprep.subr.bf16.mxu0 0
        %1981 = vmatpush1.bf16.xpose.msra.mxu0 0
        %1982 = vmatprep.subr.bf16.mxu0 0
        %1983 = vmatpush1.bf16.xpose.msra.mxu0 0
        %1984 = vmatprep.subr.bf16.mxu0 0
        %1985 = vmatpush1.bf16.xpose.msra.mxu0 0
        %1986 = vmatprep.subr.bf16.mxu0 0
        %1987 = vmatpush1.bf16.xpose.msra.mxu0 0
        %1988 = vmatprep.subr.bf16.mxu0 0
        %1989 = vmatpush1.bf16.xpose.msra.mxu0 0
        %1990 = vmatprep.subr.bf16.mxu0 0
        %1991 = vmatpush1.bf16.xpose.msra.mxu0 0
        %1992 = vmatprep.subr.bf16.mxu0 0
        %1993 = vmatpush1.bf16.xpose.msra.mxu0 0
        %1994 = vmatprep.mubr.bf16.mxu0 0
        %1995 = vmatmul.mubr.bf16.gmra.mrb[0].mxu0 %v1957
        %v1996 = vpop.f32.mrb[0].mxu0
        %v1997 = vadd.f32 %v622, %v1996
        %v1998 = vpop.f32.mrb[0].mxu0
        %v1999 = vpop.f32.mrb[0].mxu0
        %v2000 = vpop.f32.mrb[0].mxu0
        %2001 = vdwg.mxu0
        %2003 = vrot.lane.b32.xlu0 %v1902, 120
        %v2004 = vpop.permute.xlu0 %2003
        %v2006 = vsel %vm895, %v1898, 0
        %v2009 = vsel %vm895, %v2004, 0
        %2011 = vmatprep.subr.bf16.mxu0 0
        %2012 = vmatpush1.bf16.xpose.msra.mxu0 %v2009
        %2013 = vmatprep.subr.bf16.mxu0 0
        %2014 = vmatpush1.bf16.xpose.msra.mxu0 0
        %2015 = vmatprep.subr.bf16.mxu0 0
        %2016 = vmatpush1.bf16.xpose.msra.mxu0 0
        %2017 = vmatprep.subr.bf16.mxu0 0
        %2018 = vmatpush1.bf16.xpose.msra.mxu0 0
        %2019 = vmatprep.subr.bf16.mxu0 0
        %2020 = vmatpush1.bf16.xpose.msra.mxu0 0
        %2021 = vmatprep.subr.bf16.mxu0 0
        %2022 = vmatpush1.bf16.xpose.msra.mxu0 0
        %2023 = vmatprep.subr.bf16.mxu0 0
        %2024 = vmatpush1.bf16.xpose.msra.mxu0 0
        %2025 = vmatprep.subr.bf16.mxu0 0
        %2026 = vmatpush1.bf16.xpose.msra.mxu0 0
        %2027 = vmatprep.subr.bf16.mxu0 0
        %2028 = vmatpush1.bf16.xpose.msra.mxu0 0
        %2029 = vmatprep.subr.bf16.mxu0 0
        %2030 = vmatpush1.bf16.xpose.msra.mxu0 0
        %2031 = vmatprep.subr.bf16.mxu0 0
        %2032 = vmatpush1.bf16.xpose.msra.mxu0 0
        %2033 = vmatprep.subr.bf16.mxu0 0
        %2034 = vmatpush1.bf16.xpose.msra.mxu0 0
        %2035 = vmatprep.subr.bf16.mxu0 0
        %2036 = vmatpush1.bf16.xpose.msra.mxu0 0
        %2037 = vmatprep.subr.bf16.mxu0 0
        %2038 = vmatpush1.bf16.xpose.msra.mxu0 0
        %2039 = vmatprep.subr.bf16.mxu0 0
        %2040 = vmatpush1.bf16.xpose.msra.mxu0 0
        %2041 = vmatprep.subr.bf16.mxu0 0
        %2042 = vmatpush1.bf16.xpose.msra.mxu0 0
        %2043 = vmatprep.mubr.bf16.mxu0 0
        %2044 = vmatmul.mubr.bf16.gmra.mrb[0].mxu0 %v2006
        %v2045 = vpop.f32.mrb[0].mxu0
        %v2046 = vadd.f32 %v622, %v2045
        %v2047 = vpop.f32.mrb[0].mxu0
        %v2048 = vpop.f32.mrb[0].mxu0
        %v2049 = vpop.f32.mrb[0].mxu0
        %2050 = vdwg.mxu0
        %2052 = vrot.lane.b32.xlu0 %v1903, 120
        %v2053 = vpop.permute.xlu0 %2052
        %v2055 = vsel %vm895, %v1899, 0
        %v2058 = vsel %vm895, %v2053, 0
        %2060 = vmatprep.subr.bf16.mxu0 0
        %2061 = vmatpush1.bf16.xpose.msra.mxu0 %v2058
        %2062 = vmatprep.subr.bf16.mxu0 0
        %2063 = vmatpush1.bf16.xpose.msra.mxu0 0
        %2064 = vmatprep.subr.bf16.mxu0 0
        %2065 = vmatpush1.bf16.xpose.msra.mxu0 0
        %2066 = vmatprep.subr.bf16.mxu0 0
        %2067 = vmatpush1.bf16.xpose.msra.mxu0 0
        %2068 = vmatprep.subr.bf16.mxu0 0
        %2069 = vmatpush1.bf16.xpose.msra.mxu0 0
        %2070 = vmatprep.subr.bf16.mxu0 0
        %2071 = vmatpush1.bf16.xpose.msra.mxu0 0
        %2072 = vmatprep.subr.bf16.mxu0 0
        %2073 = vmatpush1.bf16.xpose.msra.mxu0 0
        %2074 = vmatprep.subr.bf16.mxu0 0
        %2075 = vmatpush1.bf16.xpose.msra.mxu0 0
        %2076 = vmatprep.subr.bf16.mxu0 0
        %2077 = vmatpush1.bf16.xpose.msra.mxu0 0
        %2078 = vmatprep.subr.bf16.mxu0 0
        %2079 = vmatpush1.bf16.xpose.msra.mxu0 0
        %2080 = vmatprep.subr.bf16.mxu0 0
        %2081 = vmatpush1.bf16.xpose.msra.mxu0 0
        %2082 = vmatprep.subr.bf16.mxu0 0
        %2083 = vmatpush1.bf16.xpose.msra.mxu0 0
        %2084 = vmatprep.subr.bf16.mxu0 0
        %2085 = vmatpush1.bf16.xpose.msra.mxu0 0
        %2086 = vmatprep.subr.bf16.mxu0 0
        %2087 = vmatpush1.bf16.xpose.msra.mxu0 0
        %2088 = vmatprep.subr.bf16.mxu0 0
        %2089 = vmatpush1.bf16.xpose.msra.mxu0 0
        %2090 = vmatprep.subr.bf16.mxu0 0
        %2091 = vmatpush1.bf16.xpose.msra.mxu0 0
        %2092 = vmatprep.mubr.bf16.mxu0 0
        %2093 = vmatmul.mubr.bf16.gmra.mrb[0].mxu0 %v2055
        %v2094 = vpop.f32.mrb[0].mxu0
        %v2095 = vadd.f32 %v622, %v2094
        %v2096 = vpop.f32.mrb[0].mxu0
        %v2097 = vpop.f32.mrb[0].mxu0
        %v2098 = vpop.f32.mrb[0].mxu0
        %2099 = vdwg.mxu0
        %v2100 = vsel %vm895, %v1948, -inf
        %2101 = vmax.xlane.f32.xlu0 %v2100
        %v2102 = vpop.xlane.xlu0 %2101
        %v2103 = vsel %vm895, %v1997, -inf
        %2104 = vmax.xlane.f32.xlu0 %v2103
        %v2105 = vpop.xlane.xlu0 %2104
        %v2106 = vsel %vm895, %v2046, -inf
        %2107 = vmax.xlane.f32.xlu0 %v2106
        %v2108 = vpop.xlane.xlu0 %2107
        %v2109 = vsel %vm895, %v2095, -inf
        %2110 = vmax.xlane.f32.xlu0 %v2109
        %v2111 = vpop.xlane.xlu0 %2110
        %v2112 = vsub.f32 %v1948, %v2102
        %v2113 = vsub.f32 %v1997, %v2105
        %v2114 = vsub.f32 %v2046, %v2108
        %v2115 = vsub.f32 %v2095, %v2111
        %v2116 = vmul.f32 %v2112, 1.442695
        %v2117 = vpow.pop %v2116
        %v2118 = vmul.f32 %v2113, 1.442695
        %v2119 = vpow.pop %v2118
        %v2120 = vmul.f32 %v2114, 1.442695
        %v2121 = vpow.pop %v2120
        %v2122 = vmul.f32 %v2115, 1.442695
        %v2123 = vpow.pop %v2122
        %v2124 = vsel %vm895, %v2117, 0.0
        %2125 = vadd.xlane.f32.xlu0 %v2124
        %v2126 = vpop.xlane.xlu0 %2125
        %v2127 = vsel %vm895, %v2119, 0.0
        %2128 = vadd.xlane.f32.xlu0 %v2127
        %v2129 = vpop.xlane.xlu0 %2128
        %v2130 = vsel %vm895, %v2121, 0.0
        %2131 = vadd.xlane.f32.xlu0 %v2130
        %v2132 = vpop.xlane.xlu0 %2131
        %v2133 = vsel %vm895, %v2123, 0.0
        %2134 = vadd.xlane.f32.xlu0 %v2133
        %v2135 = vpop.xlane.xlu0 %2134
        %v2136 = vrcp.pop %v2126
        %v2137 = vrcp.pop %v2129
        %v2138 = vrcp.pop %v2132
        %v2139 = vrcp.pop %v2135
        %v2140 = vmul.f32 %v2117, %v2136
        %v2141 = vmul.f32 %v2119, %v2137
        %v2142 = vmul.f32 %v2121, %v2138
        %v2143 = vmul.f32 %v2123, %v2139
        %v2144 = vpack.c.bf16 %v2140, %v2140
        %v2145 = vpack.c.bf16 %v2141, %v2141
        %v2146 = vpack.c.bf16 %v2142, %v2142
        %v2147 = vpack.c.bf16 %v2143, %v2143
        %2148 = vrot.lane.b32.xlu0 %v1900, 112
        %v2149 = vpop.permute.xlu0 %2148
        %v2151 = vsel %vm895, %v2144, 0
        %v2154 = vsel %vm1142, %v2149, 0
        %2156 = vmatprep.subr.bf16.mxu0 0
        %2157 = vmatpush1.bf16.msra.mxu0 %v2154
        %2158 = vmatprep.subr.bf16.mxu0 0
        %2159 = vmatpush1.bf16.msra.mxu0 0
        %2160 = vmatprep.subr.bf16.mxu0 0
        %2161 = vmatpush1.bf16.msra.mxu0 0
        %2162 = vmatprep.subr.bf16.mxu0 0
        %2163 = vmatpush1.bf16.msra.mxu0 0
        %2164 = vmatprep.subr.bf16.mxu0 0
        %2165 = vmatpush1.bf16.msra.mxu0 0
        %2166 = vmatprep.subr.bf16.mxu0 0
        %2167 = vmatpush1.bf16.msra.mxu0 0
        %2168 = vmatprep.subr.bf16.mxu0 0
        %2169 = vmatpush1.bf16.msra.mxu0 0
        %2170 = vmatprep.subr.bf16.mxu0 0
        %2171 = vmatpush1.bf16.msra.mxu0 0
        %2172 = vmatprep.subr.bf16.mxu0 0
        %2173 = vmatpush1.bf16.msra.mxu0 0
        %2174 = vmatprep.subr.bf16.mxu0 0
        %2175 = vmatpush1.bf16.msra.mxu0 0
        %2176 = vmatprep.subr.bf16.mxu0 0
        %2177 = vmatpush1.bf16.msra.mxu0 0
        %2178 = vmatprep.subr.bf16.mxu0 0
        %2179 = vmatpush1.bf16.msra.mxu0 0
        %2180 = vmatprep.subr.bf16.mxu0 0
        %2181 = vmatpush1.bf16.msra.mxu0 0
        %2182 = vmatprep.subr.bf16.mxu0 0
        %2183 = vmatpush1.bf16.msra.mxu0 0
        %2184 = vmatprep.subr.bf16.mxu0 0
        %2185 = vmatpush1.bf16.msra.mxu0 0
        %2186 = vmatprep.subr.bf16.mxu0 0
        %2187 = vmatpush1.bf16.msra.mxu0 0
        %2188 = vmatprep.mubr.bf16.mxu0 0
        %2189 = vmatmul.mubr.bf16.gmra.mrb[0].mxu0 %v2151
        %v2190 = vpop.f32.mrb[0].mxu0
        %v2191 = vadd.f32 0.0, %v2190
        %v2192 = vpop.f32.mrb[0].mxu0
        %v2193 = vpop.f32.mrb[0].mxu0
        %v2194 = vpop.f32.mrb[0].mxu0
        %2195 = vdwg.mxu0
        %2196 = vrot.lane.b32.xlu0 %v1901, 112
        %v2197 = vpop.permute.xlu0 %2196
        %v2199 = vsel %vm895, %v2145, 0
        %v2202 = vsel %vm1142, %v2197, 0
        %2204 = vmatprep.subr.bf16.mxu0 0
        %2205 = vmatpush1.bf16.msra.mxu0 %v2202
        %2206 = vmatprep.subr.bf16.mxu0 0
        %2207 = vmatpush1.bf16.msra.mxu0 0
        %2208 = vmatprep.subr.bf16.mxu0 0
        %2209 = vmatpush1.bf16.msra.mxu0 0
        %2210 = vmatprep.subr.bf16.mxu0 0
        %2211 = vmatpush1.bf16.msra.mxu0 0
        %2212 = vmatprep.subr.bf16.mxu0 0
        %2213 = vmatpush1.bf16.msra.mxu0 0
        %2214 = vmatprep.subr.bf16.mxu0 0
        %2215 = vmatpush1.bf16.msra.mxu0 0
        %2216 = vmatprep.subr.bf16.mxu0 0
        %2217 = vmatpush1.bf16.msra.mxu0 0
        %2218 = vmatprep.subr.bf16.mxu0 0
        %2219 = vmatpush1.bf16.msra.mxu0 0
        %2220 = vmatprep.subr.bf16.mxu0 0
        %2221 = vmatpush1.bf16.msra.mxu0 0
        %2222 = vmatprep.subr.bf16.mxu0 0
        %2223 = vmatpush1.bf16.msra.mxu0 0
        %2224 = vmatprep.subr.bf16.mxu0 0
        %2225 = vmatpush1.bf16.msra.mxu0 0
        %2226 = vmatprep.subr.bf16.mxu0 0
        %2227 = vmatpush1.bf16.msra.mxu0 0
        %2228 = vmatprep.subr.bf16.mxu0 0
        %2229 = vmatpush1.bf16.msra.mxu0 0
        %2230 = vmatprep.subr.bf16.mxu0 0
        %2231 = vmatpush1.bf16.msra.mxu0 0
        %2232 = vmatprep.subr.bf16.mxu0 0
        %2233 = vmatpush1.bf16.msra.mxu0 0
        %2234 = vmatprep.subr.bf16.mxu0 0
        %2235 = vmatpush1.bf16.msra.mxu0 0
        %2236 = vmatprep.mubr.bf16.mxu0 0
        %2237 = vmatmul.mubr.bf16.gmra.mrb[0].mxu0 %v2199
        %v2238 = vpop.f32.mrb[0].mxu0
        %v2239 = vadd.f32 0.0, %v2238
        %v2240 = vpop.f32.mrb[0].mxu0
        %v2241 = vpop.f32.mrb[0].mxu0
        %v2242 = vpop.f32.mrb[0].mxu0
        %2243 = vdwg.mxu0
        %2244 = vrot.lane.b32.xlu0 %v1902, 112
        %v2245 = vpop.permute.xlu0 %2244
        %v2247 = vsel %vm895, %v2146, 0
        %v2250 = vsel %vm1142, %v2245, 0
        %2252 = vmatprep.subr.bf16.mxu0 0
        %2253 = vmatpush1.bf16.msra.mxu0 %v2250
        %2254 = vmatprep.subr.bf16.mxu0 0
        %2255 = vmatpush1.bf16.msra.mxu0 0
        %2256 = vmatprep.subr.bf16.mxu0 0
        %2257 = vmatpush1.bf16.msra.mxu0 0
        %2258 = vmatprep.subr.bf16.mxu0 0
        %2259 = vmatpush1.bf16.msra.mxu0 0
        %2260 = vmatprep.subr.bf16.mxu0 0
        %2261 = vmatpush1.bf16.msra.mxu0 0
        %2262 = vmatprep.subr.bf16.mxu0 0
        %2263 = vmatpush1.bf16.msra.mxu0 0
        %2264 = vmatprep.subr.bf16.mxu0 0
        %2265 = vmatpush1.bf16.msra.mxu0 0
        %2266 = vmatprep.subr.bf16.mxu0 0
        %2267 = vmatpush1.bf16.msra.mxu0 0
        %2268 = vmatprep.subr.bf16.mxu0 0
        %2269 = vmatpush1.bf16.msra.mxu0 0
        %2270 = vmatprep.subr.bf16.mxu0 0
        %2271 = vmatpush1.bf16.msra.mxu0 0
        %2272 = vmatprep.subr.bf16.mxu0 0
        %2273 = vmatpush1.bf16.msra.mxu0 0
        %2274 = vmatprep.subr.bf16.mxu0 0
        %2275 = vmatpush1.bf16.msra.mxu0 0
        %2276 = vmatprep.subr.bf16.mxu0 0
        %2277 = vmatpush1.bf16.msra.mxu0 0
        %2278 = vmatprep.subr.bf16.mxu0 0
        %2279 = vmatpush1.bf16.msra.mxu0 0
        %2280 = vmatprep.subr.bf16.mxu0 0
        %2281 = vmatpush1.bf16.msra.mxu0 0
        %2282 = vmatprep.subr.bf16.mxu0 0
        %2283 = vmatpush1.bf16.msra.mxu0 0
        %2284 = vmatprep.mubr.bf16.mxu0 0
        %2285 = vmatmul.mubr.bf16.gmra.mrb[0].mxu0 %v2247
        %v2286 = vpop.f32.mrb[0].mxu0
        %v2287 = vadd.f32 0.0, %v2286
        %v2288 = vpop.f32.mrb[0].mxu0
        %v2289 = vpop.f32.mrb[0].mxu0
        %v2290 = vpop.f32.mrb[0].mxu0
        %2291 = vdwg.mxu0
        %2292 = vrot.lane.b32.xlu0 %v1903, 112
        %v2293 = vpop.permute.xlu0 %2292
        %v2295 = vsel %vm895, %v2147, 0
        %v2298 = vsel %vm1142, %v2293, 0
        %2300 = vmatprep.subr.bf16.mxu0 0
        %2301 = vmatpush1.bf16.msra.mxu0 %v2298
        %2302 = vmatprep.subr.bf16.mxu0 0
        %2303 = vmatpush1.bf16.msra.mxu0 0
        %2304 = vmatprep.subr.bf16.mxu0 0
        %2305 = vmatpush1.bf16.msra.mxu0 0
        %2306 = vmatprep.subr.bf16.mxu0 0
        %2307 = vmatpush1.bf16.msra.mxu0 0
        %2308 = vmatprep.subr.bf16.mxu0 0
        %2309 = vmatpush1.bf16.msra.mxu0 0
        %2310 = vmatprep.subr.bf16.mxu0 0
        %2311 = vmatpush1.bf16.msra.mxu0 0
        %2312 = vmatprep.subr.bf16.mxu0 0
        %2313 = vmatpush1.bf16.msra.mxu0 0
        %2314 = vmatprep.subr.bf16.mxu0 0
        %2315 = vmatpush1.bf16.msra.mxu0 0
        %2316 = vmatprep.subr.bf16.mxu0 0
        %2317 = vmatpush1.bf16.msra.mxu0 0
        %2318 = vmatprep.subr.bf16.mxu0 0
        %2319 = vmatpush1.bf16.msra.mxu0 0
        %2320 = vmatprep.subr.bf16.mxu0 0
        %2321 = vmatpush1.bf16.msra.mxu0 0
        %2322 = vmatprep.subr.bf16.mxu0 0
        %2323 = vmatpush1.bf16.msra.mxu0 0
        %2324 = vmatprep.subr.bf16.mxu0 0
        %2325 = vmatpush1.bf16.msra.mxu0 0
        %2326 = vmatprep.subr.bf16.mxu0 0
        %2327 = vmatpush1.bf16.msra.mxu0 0
        %2328 = vmatprep.subr.bf16.mxu0 0
        %2329 = vmatpush1.bf16.msra.mxu0 0
        %2330 = vmatprep.subr.bf16.mxu0 0
        %2331 = vmatpush1.bf16.msra.mxu0 0
        %2332 = vmatprep.mubr.bf16.mxu0 0
        %2333 = vmatmul.mubr.bf16.gmra.mrb[0].mxu0 %v2295
        %v2334 = vpop.f32.mrb[0].mxu0
        %v2335 = vadd.f32 0.0, %v2334
        %v2336 = vpop.f32.mrb[0].mxu0
        %v2337 = vpop.f32.mrb[0].mxu0
        %v2338 = vpop.f32.mrb[0].mxu0
        %2339 = vdwg.mxu0
        %2341 = vrot.lane.b32.xlu0 %v2239, 8
        %v2342 = vpop.permute.xlu0 %2341
        %2345 = vrot.lane.b32.xlu0 %v2287, 16
        %v2346 = vpop.permute.xlu0 %2345
        %2349 = vrot.lane.b32.xlu0 %v2335, 24
        %v2350 = vpop.permute.xlu0 %2349
        %v2352 = vsel %vm895, %v2191, %v2342
        %v2353 = vsel %vm1343, %v2352, %v2346
        %v2354 = vsel %vm1345, %v2353, %v2350
        %v2355 = vpack.c.bf16 %v2354, %v2354
        %s2356 = scalar_lea.vmem %s6, 16
        %v2357 = vld [vmem:[%s2356] sm:$0xf]
        %v2358 = vld [vmem:[%s2356 + $0x4] sm:$0xf]
        %v2359 = vld [vmem:[%s2356 + $0x8] sm:$0xf]
        %v2360 = vld [vmem:[%s2356 + $0xc] sm:$0xf]
        %s2361 = scalar_lea.vmem %s7, 1
        %v2362 = vld [vmem:[%s2361] sm:$0x1]
        %v2364 = vlaneseq
        %v2365 = vshrl.u32 %v2364, 7
        %v2366 = vsub.s32 0, %v2365
        %v2367 = vrot.slane %v2362, %v2366
        %v2373 = vunpack.c.l.b16 %v2357
        %v2374 = vunpack.c.l.b16 %v2358
        %v2375 = vunpack.c.l.b16 %v2359
        %v2376 = vunpack.c.l.b16 %v2360
        %v2377 = vpack.c.b16 %v2374, %v2373
        %v2378 = vpack.c.b16 %v2376, %v2375
        %v2382 = vsel %vm588, %v2355, 0
        %2384 = vmatprep.subr.bf16.mxu0 0
        %2385 = vmatpush1.bf16.msra.mxu0 %v2377
        %2386 = vmatprep.subr.bf16.mxu0 0
        %2387 = vmatpush1.bf16.msra.mxu0 %v2378
        %2388 = vmatprep.subr.bf16.mxu0 0
        %2389 = vmatpush1.bf16.msra.mxu0 0
        %2390 = vmatprep.subr.bf16.mxu0 0
        %2391 = vmatpush1.bf16.msra.mxu0 0
        %2392 = vmatprep.subr.bf16.mxu0 0
        %2393 = vmatpush1.bf16.msra.mxu0 0
        %2394 = vmatprep.subr.bf16.mxu0 0
        %2395 = vmatpush1.bf16.msra.mxu0 0
        %2396 = vmatprep.subr.bf16.mxu0 0
        %2397 = vmatpush1.bf16.msra.mxu0 0
        %2398 = vmatprep.subr.bf16.mxu0 0
        %2399 = vmatpush1.bf16.msra.mxu0 0
        %2400 = vmatprep.subr.bf16.mxu0 0
        %2401 = vmatpush1.bf16.msra.mxu0 0
        %2402 = vmatprep.subr.bf16.mxu0 0
        %2403 = vmatpush1.bf16.msra.mxu0 0
        %2404 = vmatprep.subr.bf16.mxu0 0
        %2405 = vmatpush1.bf16.msra.mxu0 0
        %2406 = vmatprep.subr.bf16.mxu0 0
        %2407 = vmatpush1.bf16.msra.mxu0 0
        %2408 = vmatprep.subr.bf16.mxu0 0
        %2409 = vmatpush1.bf16.msra.mxu0 0
        %2410 = vmatprep.subr.bf16.mxu0 0
        %2411 = vmatpush1.bf16.msra.mxu0 0
        %2412 = vmatprep.subr.bf16.mxu0 0
        %2413 = vmatpush1.bf16.msra.mxu0 0
        %2414 = vmatprep.subr.bf16.mxu0 0
        %2415 = vmatpush1.bf16.msra.mxu0 0
        %2416 = vmatprep.mubr.bf16.mxu0 0
        %2417 = vmatmul.mubr.bf16.gmra.mrb[0].mxu0 %v2382
        %v2418 = vpop.f32.mrb[0].mxu0
        %v2419 = vadd.f32 %v2367, %v2418
        %v2420 = vpop.f32.mrb[0].mxu0
        %v2421 = vpop.f32.mrb[0].mxu0
        %v2422 = vpop.f32.mrb[0].mxu0
        %2423 = vdwg.mxu0
        %v2424 = vadd.f32 %v2419, %v1633
        %s2425 = scalar_lea.vmem %s8, 1
        %v2426 = vld [vmem:[%s2425] sm:$0x1]
        %s2427 = scalar_lea.vmem %s9, 1
        %v2428 = vld [vmem:[%s2427] sm:$0x1]
        %v2429 = vsel %vm588, %v2424, 0.0
        %2430 = vadd.xlane.f32.xlu0 %v2429
        %v2431 = vpop.xlane.xlu0 %2430
        %v2432 = vmul.f32 %v2431, %v592
        %v2433 = vsub.f32 %v2424, %v2432
        %v2434 = vmul.f32 %v2433, %v2433
        %v2435 = vsel %vm588, %v2434, 0.0
        %2436 = vadd.xlane.f32.xlu0 %v2435
        %v2437 = vpop.xlane.xlu0 %2436
        %v2438 = vmul.f32 %v2437, %v592
        %v2439 = vadd.f32 %v2438, 1e-07
        %v2440 = vrsqrt.pop %v2439
        %v2441 = vmul.f32 %v2433, %v2440
        %v2443 = vlaneseq
        %v2444 = vshrl.u32 %v2443, 7
        %v2445 = vsub.s32 0, %v2444
        %v2446 = vrot.slane %v2426, %v2445
        %v2448 = vmul.f32 %v2441, %v2446
        %v2450 = vlaneseq
        %v2451 = vshrl.u32 %v2450, 7
        %v2452 = vsub.s32 0, %v2451
        %v2453 = vrot.slane %v2428, %v2452
        %v2455 = vadd.f32 %v2448, %v2453
        %v2456 = vpack.c.bf16 %v2455, %v2455
        %s2457 = scalar_lea.vmem %s10, 16
        %v2458 = vld [vmem:[%s2457] sm:$0xf]
        %v2459 = vld [vmem:[%s2457 + $0x4] sm:$0xf]
        %v2460 = vld [vmem:[%s2457 + $0x8] sm:$0xf]
        %v2461 = vld [vmem:[%s2457 + $0xc] sm:$0xf]
        %s2462 = scalar_lea.vmem %s11, 1
        %v2463 = vld [vmem:[%s2462] sm:$0x1]
        %v2465 = vlaneseq
        %v2466 = vshrl.u32 %v2465, 7
        %v2467 = vsub.s32 0, %v2466
        %v2468 = vrot.slane %v2463, %v2467
        %v2474 = vunpack.c.l.b16 %v2458
        %v2475 = vunpack.c.l.b16 %v2459
        %v2476 = vunpack.c.l.b16 %v2460
        %v2477 = vunpack.c.l.b16 %v2461
        %v2478 = vpack.c.b16 %v2475, %v2474
        %v2479 = vpack.c.b16 %v2477, %v2476
        %v2483 = vsel %vm588, %v2456, 0
        %2485 = vmatprep.subr.bf16.mxu0 0
        %2486 = vmatpush1.bf16.msra.mxu0 %v2478
        %2487 = vmatprep.subr.bf16.mxu0 0
        %2488 = vmatpush1.bf16.msra.mxu0 %v2479
        %2489 = vmatprep.subr.bf16.mxu0 0
        %2490 = vmatpush1.bf16.msra.mxu0 0
        %2491 = vmatprep.subr.bf16.mxu0 0
        %2492 = vmatpush1.bf16.msra.mxu0 0
        %2493 = vmatprep.subr.bf16.mxu0 0
        %2494 = vmatpush1.bf16.msra.mxu0 0
        %2495 = vmatprep.subr.bf16.mxu0 0
        %2496 = vmatpush1.bf16.msra.mxu0 0
        %2497 = vmatprep.subr.bf16.mxu0 0
        %2498 = vmatpush1.bf16.msra.mxu0 0
        %2499 = vmatprep.subr.bf16.mxu0 0
        %2500 = vmatpush1.bf16.msra.mxu0 0
        %2501 = vmatprep.subr.bf16.mxu0 0
        %2502 = vmatpush1.bf16.msra.mxu0 0
        %2503 = vmatprep.subr.bf16.mxu0 0
        %2504 = vmatpush1.bf16.msra.mxu0 0
        %2505 = vmatprep.subr.bf16.mxu0 0
        %2506 = vmatpush1.bf16.msra.mxu0 0
        %2507 = vmatprep.subr.bf16.mxu0 0
        %2508 = vmatpush1.bf16.msra.mxu0 0
        %2509 = vmatprep.subr.bf16.mxu0 0
        %2510 = vmatpush1.bf16.msra.mxu0 0
        %2511 = vmatprep.subr.bf16.mxu0 0
        %2512 = vmatpush1.bf16.msra.mxu0 0
        %2513 = vmatprep.subr.bf16.mxu0 0
        %2514 = vmatpush1.bf16.msra.mxu0 0
        %2515 = vmatprep.subr.bf16.mxu0 0
        %2516 = vmatpush1.bf16.msra.mxu0 0
        %2517 = vmatprep.mubr.bf16.mxu0 0
        %2518 = vmatmul.mubr.bf16.gmra.mrb[0].mxu0 %v2483
        %v2519 = vpop.f32.mrb[0].mxu0
        %v2520 = vadd.f32 %v2468, %v2519
        %v2521 = vpop.f32.mrb[0].mxu0
        %v2522 = vpop.f32.mrb[0].mxu0
        %v2523 = vpop.f32.mrb[0].mxu0
        %2524 = vdwg.mxu0
        %v2525 = vmul.f32 %v2520, 0.5
        %v2526 = vmul.f32 %v2520, 0.044715
        %v2527 = vmul.f32 %v2526, %v2520
        %v2528 = vmul.f32 %v2527, %v2520
        %v2529 = vadd.f32 %v2520, %v2528
        %v2530 = vmul.f32 %v2529, 0.7978846
        %v2531 = vtanh.pop %v2530
        %v2532 = vadd.f32 %v2531, 1.0
        %v2533 = vmul.f32 %v2525, %v2532
        %v2534 = vpack.c.bf16 %v2533, %v2533
        %s2535 = scalar_lea.vmem %s12, 32
        %v2536 = vld [vmem:[%s2535] sm:$0xf]
        %v2537 = vld [vmem:[%s2535 + $0x4] sm:$0xf]
        %v2538 = vld [vmem:[%s2535 + $0x8] sm:$0xf]
        %v2539 = vld [vmem:[%s2535 + $0xc] sm:$0xf]
        %v2540 = vld [vmem:[%s2535 + $0x10] sm:$0xf]
        %v2541 = vld [vmem:[%s2535 + $0x14] sm:$0xf]
        %v2542 = vld [vmem:[%s2535 + $0x18] sm:$0xf]
        %v2543 = vld [vmem:[%s2535 + $0x1c] sm:$0xf]
        %s2544 = scalar_lea.vmem %s13, 1
        %v2545 = vld [vmem:[%s2544] sm:$0x1]
        %v2547 = vlaneseq
        %v2548 = vshrl.u32 %v2547, 7
        %v2549 = vsub.s32 0, %v2548
        %v2550 = vrot.slane %v2545, %v2549
        %v2560 = vunpack.c.l.b16 %v2536
        %v2561 = vunpack.c.l.b16 %v2537
        %v2562 = vunpack.c.l.b16 %v2538
        %v2563 = vunpack.c.l.b16 %v2539
        %v2564 = vunpack.c.l.b16 %v2540
        %v2565 = vunpack.c.l.b16 %v2541
        %v2566 = vunpack.c.l.b16 %v2542
        %v2567 = vunpack.c.l.b16 %v2543
        %v2568 = vpack.c.b16 %v2561, %v2560
        %v2569 = vpack.c.b16 %v2563, %v2562
        %v2570 = vpack.c.b16 %v2565, %v2564
        %v2571 = vpack.c.b16 %v2567, %v2566
        %v2577 = vsel %vm1560, %v2534, 0
        %2579 = vmatprep.subr.bf16.mxu0 0
        %2580 = vmatpush1.bf16.msra.mxu0 %v2568
        %2581 = vmatprep.subr.bf16.mxu0 0
        %2582 = vmatpush1.bf16.msra.mxu0 %v2569
        %2583 = vmatprep.subr.bf16.mxu0 0
        %2584 = vmatpush1.bf16.msra.mxu0 %v2570
        %2585 = vmatprep.subr.bf16.mxu0 0
        %2586 = vmatpush1.bf16.msra.mxu0 %v2571
        %2587 = vmatprep.subr.bf16.mxu0 0
        %2588 = vmatpush1.bf16.msra.mxu0 0
        %2589 = vmatprep.subr.bf16.mxu0 0
        %2590 = vmatpush1.bf16.msra.mxu0 0
        %2591 = vmatprep.subr.bf16.mxu0 0
        %2592 = vmatpush1.bf16.msra.mxu0 0
        %2593 = vmatprep.subr.bf16.mxu0 0
        %2594 = vmatpush1.bf16.msra.mxu0 0
        %2595 = vmatprep.subr.bf16.mxu0 0
        %2596 = vmatpush1.bf16.msra.mxu0 0
        %2597 = vmatprep.subr.bf16.mxu0 0
        %2598 = vmatpush1.bf16.msra.mxu0 0
        %2599 = vmatprep.subr.bf16.mxu0 0
        %2600 = vmatpush1.bf16.msra.mxu0 0
        %2601 = vmatprep.subr.bf16.mxu0 0
        %2602 = vmatpush1.bf16.msra.mxu0 0
        %2603 = vmatprep.subr.bf16.mxu0 0
        %2604 = vmatpush1.bf16.msra.mxu0 0
        %2605 = vmatprep.subr.bf16.mxu0 0
        %2606 = vmatpush1.bf16.msra.mxu0 0
        %2607 = vmatprep.subr.bf16.mxu0 0
        %2608 = vmatpush1.bf16.msra.mxu0 0
        %2609 = vmatprep.subr.bf16.mxu0 0
        %2610 = vmatpush1.bf16.msra.mxu0 0
        %2611 = vmatprep.mubr.bf16.mxu0 0
        %2612 = vmatmul.mubr.bf16.gmra.mrb[0].mxu0 %v2577
        %v2613 = vpop.f32.mrb[0].mxu0
        %v2614 = vadd.f32 %v2550, %v2613
        %v2615 = vpop.f32.mrb[0].mxu0
        %v2616 = vpop.f32.mrb[0].mxu0
        %v2617 = vpop.f32.mrb[0].mxu0
        %2618 = vdwg.mxu0
        %v2619 = vadd.f32 %v2614, %v2455
        %s2620 = scalar_lea.vmem %s14, 1
        %v2621 = vld [vmem:[%s2620] sm:$0x1]
        %s2622 = scalar_lea.vmem %s15, 1
        %v2623 = vld [vmem:[%s2622] sm:$0x1]
        %v2624 = vsel %vm588, %v2619, 0.0
        %2625 = vadd.xlane.f32.xlu0 %v2624
        %v2626 = vpop.xlane.xlu0 %2625
        %v2627 = vmul.f32 %v2626, %v592
        %v2628 = vsub.f32 %v2619, %v2627
        %v2629 = vmul.f32 %v2628, %v2628
        %v2630 = vsel %vm588, %v2629, 0.0
        %2631 = vadd.xlane.f32.xlu0 %v2630
        %v2632 = vpop.xlane.xlu0 %2631
        %v2633 = vmul.f32 %v2632, %v592
        %v2634 = vadd.f32 %v2633, 1e-07
        %v2635 = vrsqrt.pop %v2634
        %v2636 = vmul.f32 %v2628, %v2635
        %v2638 = vlaneseq
        %v2639 = vshrl.u32 %v2638, 7
        %v2640 = vsub.s32 0, %v2639
        %v2641 = vrot.slane %v2621, %v2640
        %v2643 = vmul.f32 %v2636, %v2641
        %v2645 = vlaneseq
        %v2646 = vshrl.u32 %v2645, 7
        %v2647 = vsub.s32 0, %v2646
        %v2648 = vrot.slane %v2623, %v2647
        %v2650 = vadd.f32 %v2643, %v2648
        %v2651 = vpack.c.bf16 %v2650, %v2650
        %v2652 = vld [vmem:[%s16] sm:$0xf]
        %v2653 = vld [vmem:[%s16 + $0x4] sm:$0xf]
        %v2654 = vld [vmem:[%s16 + $0x8] sm:$0xf]
        %v2655 = vld [vmem:[%s16 + $0xc] sm:$0xf]
        %v2656 = vld [vmem:[%s17] sm:$0x1]
        %v2661 = vunpack.c.l.b16 %v2652
        %v2662 = vunpack.c.l.b16 %v2653
        %v2663 = vunpack.c.l.b16 %v2654
        %v2664 = vunpack.c.l.b16 %v2655
        %v2665 = vpack.c.b16 %v2662, %v2661
        %v2666 = vpack.c.b16 %v2664, %v2663
        %v2670 = vsel %vm588, %v2651, 0
        %2672 = vmatprep.subr.bf16.mxu0 0
        %2673 = vmatpush1.bf16.msra.mxu0 %v2665
        %2674 = vmatprep.subr.bf16.mxu0 0
        %2675 = vmatpush1.bf16.msra.mxu0 %v2666
        %2676 = vmatprep.subr.bf16.mxu0 0
        %2677 = vmatpush1.bf16.msra.mxu0 0
        %2678 = vmatprep.subr.bf16.mxu0 0
        %2679 = vmatpush1.bf16.msra.mxu0 0
        %2680 = vmatprep.subr.bf16.mxu0 0
        %2681 = vmatpush1.bf16.msra.mxu0 0
        %2682 = vmatprep.subr.bf16.mxu0 0
        %2683 = vmatpush1.bf16.msra.mxu0 0
        %2684 = vmatprep.subr.bf16.mxu0 0
        %2685 = vmatpush1.bf16.msra.mxu0 0
        %2686 = vmatprep.subr.bf16.mxu0 0
        %2687 = vmatpush1.bf16.msra.mxu0 0
        %2688 = vmatprep.subr.bf16.mxu0 0
        %2689 = vmatpush1.bf16.msra.mxu0 0
        %2690 = vmatprep.subr.bf16.mxu0 0
        %2691 = vmatpush1.bf16.msra.mxu0 0
        %2692 = vmatprep.subr.bf16.mxu0 0
        %2693 = vmatpush1.bf16.msra.mxu0 0
        %2694 = vmatprep.subr.bf16.mxu0 0
        %2695 = vmatpush1.bf16.msra.mxu0 0
        %2696 = vmatprep.subr.bf16.mxu0 0
        %2697 = vmatpush1.bf16.msra.mxu0 0
        %2698 = vmatprep.subr.bf16.mxu0 0
        %2699 = vmatpush1.bf16.msra.mxu0 0
        %2700 = vmatprep.subr.bf16.mxu0 0
        %2701 = vmatpush1.bf16.msra.mxu0 0
        %2702 = vmatprep.subr.bf16.mxu0 0
        %2703 = vmatpush1.bf16.msra.mxu0 0
        %2704 = vmatprep.mubr.bf16.mxu0 0
        %2705 = vmatmul.mubr.bf16.gmra.mrb[0].mxu0 %v2670
        %v2706 = vpop.f32.mrb[0].mxu0
        %v2707 = vadd.f32 %v2656, %v2706
        %v2708 = vpop.f32.mrb[0].mxu0
        %v2709 = vpop.f32.mrb[0].mxu0
        %v2710 = vpop.f32.mrb[0].mxu0
        %2711 = vdwg.mxu0
        %2712 = vst [vmem:[%s576] sm:$0x1] %v2707
        %s2713 = sand.u32 %s428, 1
        %s2714 = scalar_lea.sflag [#allocation3], %s2713
        %s2715 = sand.u32 %s428, 1
        %s2716 = scalar_lea.vmem [#allocation2], %s2715
        // Predicated region
        $region93: #{mrc_for_cpc_forward.1} parent=91 // pred_check
          %p2717 = pneg %p438
        $region94: #{mrc_for_cpc_forward.1} parent=91 // pred_check_branch
          %2719 = sbr.rel (%p2717) target = $region96
        $region95: #{mrc_for_cpc_forward.1} parent=91 // pred_region
          %s2721 = ssub.s32 16, 16
          %2722 = vsyncadd %s2714, %s2721
          %s2723 = smul.addr %s32, 16
          %s2724 = scalar_lea.hbm %s18, %s2723
          %s2726 = sshll.u32 %s2716, 4
          %s2727 = int_to_ptr.vmem [resolvable:$true] %s2726
          %2729 = dma.vmem_to_hbm [thread:$0]  %s2727, 16, %s2724, %s2714
        $region96: #{mrc_for_cpc_forward.1} parent=91 // pred_fallthru
          _
      $region92: #{mrc_for_cpc_forward.1} parent=5 // pred_fallthru
        _
      %p2730 = scmp.le.s32.totalorder 2, %s27
      // Predicated region
      $region97: #{mrc_for_cpc_forward.1} parent=5 // pred_check
        %p2731 = pneg %p2730
      $region98: #{mrc_for_cpc_forward.1} parent=5 // pred_check_branch
        %2733 = sbr.rel (%p2731) target = $region100
      $region99: #{mrc_for_cpc_forward.1} parent=5 // pred_region
        %s2734 = ssub.s32 %s27, 2
        // Predicated region
        $region101: #{mrc_for_cpc_forward.1} parent=99 // pred_check
          %p2735 = pneg %p444
        $region102: #{mrc_for_cpc_forward.1} parent=99 // pred_check_branch
          %2737 = sbr.rel (%p2735) target = $region104
        $region103: #{mrc_for_cpc_forward.1} parent=99 // pred_region
          %s2738 = sand.u32 %s429, 1
          %s2739 = scalar_lea.sflag [#allocation3], %s2738
          %s2740 = sand.u32 %s429, 1
          %s2741 = scalar_lea.vmem [#allocation2], %s2740
          %2742 = dma.done %s2739, 16
        $region104: #{mrc_for_cpc_forward.1} parent=99 // pred_fallthru
          _
      $region100: #{mrc_for_cpc_forward.1} parent=5 // pred_fallthru
        _
    $region6: #{mrc_for_cpc_forward.1} parent=1 // loop_footer
      %s31 = sadd.s32 1, %s27
    $region7: #{mrc_for_cpc_forward.1} parent=1 // loop_footer_branch
      %26 = sbr.rel target = $region3
    $region8: #{mrc_for_cpc_forward.1} parent=1 // loop_exit
      _
    %2743 = vsyncpa [#allocation3], 1
    %s2744 = scalar_lea.sflag [#allocation3], 1
    %2745 = vsyncpa %s2744, 1

</llo_original>
